<compile_context>
chip_gen: v7x
topology: tpu7x:2x2x1
jax: 0.10.0
libtpu: 0.0.40
codegen_flags: <defaults>
</compile_context>

<pallas_src>
import functools
import math

import jax
import jax.numpy as jnp
from jax.experimental import pallas as pl
from jax.experimental.pallas import tpu as pltpu


# ---------------------------------------------------------------------------
# Fused kernel: one batch element per grid step.
#   x_ref    : (1, T, C)          window/token-major input slab (T = nw * N)
#   wqkv     : (C, 3*Cout) bf16   fused Q|K|V weights (Wq pre-scaled)
#   bqkv     : (1, 3*Cout) f32    fused biases (bq pre-scaled)
#   posq/posk: (N, Cout)   f32    positional encodings (posq pre-scaled)
#   mask     : (heads*N, Cout)    block-diagonal head mask (0/1)
#   w1,b1,w2,b2                   MLP 1x1-conv params (weights bf16)
#   o_ref    : (1, T, Cout)       window/token-major output slab
# ---------------------------------------------------------------------------
def _skip_attention_kernel(
    x_ref, wqkv_ref, bqkv_ref, posq_ref, posk_ref, mask_ref,
    w1_ref, b1_ref, w2_ref, b2_ref, o_ref,
    *, heads, n_tok, n_win,
):
    f32, bf16 = jnp.float32, jnp.bfloat16
    _, T, C = x_ref.shape
    cout = w1_ref.shape[0]
    N, nw = n_tok, n_win

    xs = x_ref[0]                                   # (T, C) f32, reused for residual

    # ---- fused QKV 1x1-conv projection over the whole slab (bf16 in, f32 acc)
    qkv = jnp.dot(xs.astype(bf16), wqkv_ref[...],
                  preferred_element_type=f32) + bqkv_ref[...]        # (T, 3*cout)

    # Split Q/K/V (lane slices) and view windows as the leading (batch) axis.
    # The reshapes only split the sublane axis at multiples of 8 -> no relayout.
    q3 = qkv[:, :cout].reshape(nw, N, cout) + posq_ref[...][None]    # scale folded
    k3 = qkv[:, cout:2 * cout].reshape(nw, N, cout) + posk_ref[...][None]
    v3 = qkv[:, 2 * cout:].reshape(nw, N, cout)

    mask = mask_ref[...]                            # (heads*N, cout), 0/1

    # ---- pack heads along the query-row axis (block-diagonal channel mask)
    # q_stk[w, h*N+i, c] = q3[w, i, c] if channel c belongs to head h else 0
    q_stk = (jnp.concatenate([q3] * heads, axis=1) * mask[None]).astype(bf16)
    k3b = k3.astype(bf16)
    v3b = v3.astype(bf16)

    # scores[w, h*N+i, j] = sum_{c in head h} q[w,i,c] * k[w,j,c]
    s = jnp.einsum("wqc,wkc->wqk", q_stk, k3b,
                   preferred_element_type=f32)                       # (nw, heads*N, N)

    # softmax over the QUERY axis (dim=-2 in the reference module), done per
    # (window, head) block via a layout-preserving reshape.
    s4 = s.reshape(nw, heads, N, N)
    s4 = s4 - jnp.max(s4, axis=2, keepdims=True)
    e = jnp.exp(s4)
    p4 = e * pl.reciprocal(jnp.sum(e, axis=2, keepdims=True), approx=True)
    p = p4.reshape(nw, heads * N, N).astype(bf16)

    # P @ V with full-channel V; keep each head's own output channels, then
    # fold the head row-blocks back to (N, cout) tokens.
    pv = jnp.einsum("wqk,wkc->wqc", p, v3b,
                    preferred_element_type=f32)                      # (nw, heads*N, cout)
    out_tok = (pv * mask[None]).reshape(nw, heads, N, cout).sum(axis=1)
    out_tok = out_tok.reshape(T, cout)

    # ---- MLP tail over the whole slab: W1 + bias, Mish, W2 + bias, residual
    h1 = jnp.dot(out_tok.astype(bf16), w1_ref[...],
                 preferred_element_type=f32) + b1_ref[...]           # (T, cout)

    # Mish = x * tanh(softplus(x)) with a single exp + approx reciprocal.
    n = jnp.exp(-jnp.abs(h1))
    pos_side = h1 >= 0.0
    num = jnp.where(pos_side, 1.0 + 2.0 * n, n * n + 2.0 * n)
    den = jnp.where(pos_side, 1.0 + 2.0 * n + 2.0 * n * n, n * n + 2.0 * n + 2.0)
    m = h1 * num * pl.reciprocal(den, approx=True)

    o = jnp.dot(m.astype(bf16), w2_ref[...],
                preferred_element_type=f32) + b2_ref[...] + xs
    o_ref[0, :, :] = o.astype(o_ref.dtype)


# ---------------------------------------------------------------------------
# Wrapper: one-off window/token-major relayout, scale folding, bf16 weight
# pre-cast, grid = (B,).
# ---------------------------------------------------------------------------
@functools.partial(jax.jit, static_argnums=(2, 3))
def skip_attention_forward(x, params, patch_size, heads):
    B, H, W, C = x.shape
    ph, pw = patch_size
    cout = params["wq"].shape[1]
    assert cout % heads == 0
    pc = cout // heads
    assert H % ph == 0 and W % pw == 0
    assert C == cout, "residual add requires in_channel == out_channel"
    hh, ww = H // ph, W // pw
    nw = hh * ww
    N = ph * pw
    T = nw * N
    scale = 1.0 / math.sqrt(pc)
    f32, bf16 = jnp.float32, jnp.bfloat16

    # One-off XLA relayout to window/token-major: (B, H, W, C) -> (B, T, C),
    # windows contiguous, token order (row-major inside a window) matching pos.
    x_win = (x.reshape(B, hh, ph, ww, pw, C)
              .transpose(0, 1, 3, 2, 4, 5)
              .reshape(B, T, C))

    # Fold 1/sqrt(pc) into the Q projection; pre-cast MXU weights to bf16.
    wqkv = jnp.concatenate(
        [params["wq"] * scale, params["wk"], params["wv"]], axis=1).astype(bf16)
    bqkv = jnp.concatenate(
        [params["bq"] * scale, params["bk"], params["bv"]], axis=0
    ).reshape(1, 3 * cout).astype(f32)

    # pos (pc, ph, pw) -> token-major (N, pc) -> tiled over heads -> (N, cout)
    pos_tok = jnp.tile(params["pos"].transpose(1, 2, 0).reshape(N, pc), (1, heads))
    posq = (pos_tok * scale).astype(f32)
    posk = pos_tok.astype(f32)

    # Block-diagonal head mask: row block h keeps channels [h*pc, (h+1)*pc).
    row_head = jnp.arange(heads * N, dtype=jnp.int32)[:, None] // N
    col_head = jnp.arange(cout, dtype=jnp.int32)[None, :] // pc
    head_mask = (row_head == col_head).astype(f32)

    kern = functools.partial(_skip_attention_kernel,
                             heads=heads, n_tok=N, n_win=nw)
    o_win = pl.pallas_call(
        kern,
        out_shape=jax.ShapeDtypeStruct((B, T, cout), x.dtype),
        grid_spec=pltpu.PrefetchScalarGridSpec(
            num_scalar_prefetch=0,
            grid=(B,),
            in_specs=[
                pl.BlockSpec((1, T, C), lambda b: (b, 0, 0)),
                pl.BlockSpec((C, 3 * cout), lambda b: (0, 0)),
                pl.BlockSpec((1, 3 * cout), lambda b: (0, 0)),
                pl.BlockSpec((N, cout), lambda b: (0, 0)),
                pl.BlockSpec((N, cout), lambda b: (0, 0)),
                pl.BlockSpec((heads * N, cout), lambda b: (0, 0)),
                pl.BlockSpec((cout, cout), lambda b: (0, 0)),
                pl.BlockSpec((1, cout), lambda b: (0, 0)),
                pl.BlockSpec((cout, cout), lambda b: (0, 0)),
                pl.BlockSpec((1, cout), lambda b: (0, 0)),
            ],
            out_specs=pl.BlockSpec((1, T, cout), lambda b: (b, 0, 0)),
        ),
        compiler_params=pltpu.CompilerParams(
            dimension_semantics=("parallel",)),
    )(x_win, wqkv, bqkv, posq, posk, head_mask,
      params["w1"].astype(bf16), params["b1"].reshape(1, cout).astype(f32),
      params["w2"].astype(bf16), params["b2"].reshape(1, cout).astype(f32))

    # Invert the window/token-major layout (one-off XLA transpose).
    return (o_win.reshape(B, hh, ww, ph, pw, cout)
                 .transpose(0, 1, 3, 2, 4, 5)
                 .reshape(B, H, W, cout))


# ---------------------------------------------------------------------------
# Pure-JAX reference (mirrors the PyTorch forward, NHWC layout, high precision)
# ---------------------------------------------------------------------------
def reference_forward(x, params, patch_size, heads):
    B, H, W, C = x.shape
    ph, pw = patch_size
    cout = params["wq"].shape[1]
    pc = cout // heads
    hh, ww = H // ph, W // pw
    N = ph * pw
    hi = jax.lax.Precision.HIGHEST

    def conv1x1(t, w, b):
        return jnp.einsum("bhwc,cd->bhwd", t, w, precision=hi) + b

    q = conv1x1(x, params["wq"], params["bq"])
    k = conv1x1(x, params["wk"], params["bk"])
    v = conv1x1(x, params["wv"], params["bv"])

    def rearr(t):  # (B,H,W,cout) -> (B,hh,ww,heads,pc,ph,pw)
        t = t.reshape(B, hh, ph, ww, pw, heads, pc)
        return t.transpose(0, 1, 3, 5, 6, 2, 4)

    pos = params["pos"]
    qq = rearr(q) + pos
    kk = rearr(k) + pos
    vv = rearr(v)
    qq = qq.reshape(B, hh, ww, heads, pc, N).transpose(0, 1, 2, 3, 5, 4)
    kk = kk.reshape(B, hh, ww, heads, pc, N)
    vv = vv.reshape(B, hh, ww, heads, pc, N).transpose(0, 1, 2, 3, 5, 4)
    qk = jnp.einsum("...nc,...cm->...nm", qq, kk, precision=hi) / jnp.sqrt(
        jnp.float32(pc))
    qk = jax.nn.softmax(qk, axis=-2)
    out = jnp.einsum("...nm,...mc->...nc", qk, vv, precision=hi)
    out = out.reshape(B, hh, ww, heads, ph, pw, pc)
    out = out.transpose(0, 1, 4, 2, 5, 3, 6).reshape(B, H, W, cout)
    h1 = conv1x1(out, params["w1"], params["b1"])
    m = h1 * jnp.tanh(jax.nn.softplus(h1))
    o = conv1x1(m, params["w2"], params["b2"])
    return o + x


# ---------------------------------------------------------------------------
if __name__ == "__main__":
    B, H, W = 2, 16, 16
    in_channel = out_channel = 16        # residual add requires in == out
    heads = 2
    patch_size = (8, 8)
    pc = out_channel // heads
    N = patch_size[0] * patch_size[1]

    key = jax.random.PRNGKey(0)
    ks = jax.random.split(key, 12)
    f32 = jnp.float32
    params = {
        "wq": 0.1 * jax.random.normal(ks[0], (in_channel, out_channel), f32),
        "bq": 0.01 * jax.random.normal(ks[1], (out_channel,), f32),
        "wk": 0.1 * jax.random.normal(ks[2], (in_channel, out_channel), f32),
        "bk": 0.01 * jax.random.normal(ks[3], (out_channel,), f32),
        "wv": 0.1 * jax.random.normal(ks[4], (in_channel, out_channel), f32),
        "bv": 0.01 * jax.random.normal(ks[5], (out_channel,), f32),
        # orthogonal_(empty(h*w, c//heads)).T.view(c//heads, h, w)
        "pos": jax.nn.initializers.orthogonal()(ks[6], (N, pc), f32)
               .T.reshape(pc, patch_size[0], patch_size[1]),
        "w1": 0.1 * jax.random.normal(ks[7], (out_channel, out_channel), f32),
        "b1": 0.01 * jax.random.normal(ks[8], (out_channel,), f32),
        "w2": 0.1 * jax.random.normal(ks[9], (out_channel, out_channel), f32),
        "b2": 0.01 * jax.random.normal(ks[10], (out_channel,), f32),
    }
    x = jax.random.normal(ks[11], (B, H, W, in_channel), f32)

    out = skip_attention_forward(x, params, patch_size, heads)
    out = jax.block_until_ready(out)

    ref = reference_forward(x, params, patch_size, heads)
    assert out.shape == ref.shape == (B, H, W, out_channel)
    max_err = float(jnp.max(jnp.abs(out - ref)))
    # bf16 MXU operands + approx reciprocal vs an all-f32 HIGHEST reference;
    # typical observed error is a few 1e-4 on O(1) outputs.
    assert max_err < 1e-2, f"mismatch vs reference: {max_err}"

    print("KERNEL_OK")
</pallas_src>

<mosaic_0001>
module attributes {stable_mosaic.version = 11 : i64} {
  func.func @_skip_attention_kernel(%arg0: i32, %arg1: memref<1x256x16xf32, #tpu.memory_space<vmem>>, %arg2: memref<16x48xbf16, #tpu.memory_space<vmem>>, %arg3: memref<1x48xf32, #tpu.memory_space<vmem>>, %arg4: memref<64x16xf32, #tpu.memory_space<vmem>>, %arg5: memref<64x16xf32, #tpu.memory_space<vmem>>, %arg6: memref<128x16xf32, #tpu.memory_space<vmem>>, %arg7: memref<16x16xbf16, #tpu.memory_space<vmem>>, %arg8: memref<1x16xf32, #tpu.memory_space<vmem>>, %arg9: memref<16x16xbf16, #tpu.memory_space<vmem>>, %arg10: memref<1x16xf32, #tpu.memory_space<vmem>>, %arg11: memref<1x256x16xf32, #tpu.memory_space<vmem>>) attributes {dimension_semantics = [#tpu.dimension_semantics<parallel>], iteration_bounds = array<i64: 2>, scalar_prefetch = 0 : i64, scratch_operands = 0 : i64, tpu.core_type = #tpu.core_type<tc>, window_params = [{transform_indices = @transform_0, window_bounds = array<i64: 1, 256, 16>}, {pipeline_mode = #tpu.pipeline_mode<synchronous>, transform_indices = @transform_1, window_bounds = array<i64: 16, 48>}, {pipeline_mode = #tpu.pipeline_mode<synchronous>, transform_indices = @transform_2, window_bounds = array<i64: 1, 48>}, {pipeline_mode = #tpu.pipeline_mode<synchronous>, transform_indices = @transform_3, window_bounds = array<i64: 64, 16>}, {pipeline_mode = #tpu.pipeline_mode<synchronous>, transform_indices = @transform_4, window_bounds = array<i64: 64, 16>}, {pipeline_mode = #tpu.pipeline_mode<synchronous>, transform_indices = @transform_5, window_bounds = array<i64: 128, 16>}, {pipeline_mode = #tpu.pipeline_mode<synchronous>, transform_indices = @transform_6, window_bounds = array<i64: 16, 16>}, {pipeline_mode = #tpu.pipeline_mode<synchronous>, transform_indices = @transform_7, window_bounds = array<i64: 1, 16>}, {pipeline_mode = #tpu.pipeline_mode<synchronous>, transform_indices = @transform_8, window_bounds = array<i64: 16, 16>}, {pipeline_mode = #tpu.pipeline_mode<synchronous>, transform_indices = @transform_9, window_bounds = array<i64: 1, 16>}, {transform_indices = @transform_10, window_bounds = array<i64: 1, 256, 16>}]} {
    %c0 = arith.constant 0 : index
    %c0_0 = arith.constant 0 : index
    %c0_1 = arith.constant 0 : index
    %0 = vector.load %arg1[%c0, %c0_0, %c0_1] : memref<1x256x16xf32, #tpu.memory_space<vmem>>, vector<1x256x16xf32>
    %1 = vector.shape_cast %0 : vector<1x256x16xf32> to vector<256x16xf32>
    %2 = arith.truncf %1 : vector<256x16xf32> to vector<256x16xbf16>
    %c0_2 = arith.constant 0 : index
    %c0_3 = arith.constant 0 : index
    %3 = vector.load %arg2[%c0_2, %c0_3] : memref<16x48xbf16, #tpu.memory_space<vmem>>, vector<16x48xbf16>
    %cst = arith.constant dense<0.000000e+00> : vector<256x48xf32>
    %4 = tpu.matmul %2, %3, %cst {dimension_numbers = #tpu.dot_dimension_numbers<[1], [0], [0], [1], [0, 0, 1, 1], [], []>} : vector<256x16xbf16>, vector<16x48xbf16>, vector<256x48xf32> -> vector<256x48xf32>
    %c0_4 = arith.constant 0 : index
    %c0_5 = arith.constant 0 : index
    %5 = vector.load %arg3[%c0_4, %c0_5] : memref<1x48xf32, #tpu.memory_space<vmem>>, vector<1x48xf32>
    %6 = vector.broadcast %5 : vector<1x48xf32> to vector<256x48xf32>
    %7 = arith.addf %4, %6 : vector<256x48xf32>
    %8 = vector.extract_strided_slice %7 {offsets = [0, 0], sizes = [256, 16], strides = [1, 1]} : vector<256x48xf32> to vector<256x16xf32>
    %9 = vector.shape_cast %8 : vector<256x16xf32> to vector<4x64x16xf32>
    %c0_6 = arith.constant 0 : index
    %c0_7 = arith.constant 0 : index
    %10 = vector.load %arg4[%c0_6, %c0_7] : memref<64x16xf32, #tpu.memory_space<vmem>>, vector<64x16xf32>
    %11 = vector.shape_cast %10 : vector<64x16xf32> to vector<1x64x16xf32>
    %12 = vector.broadcast %11 : vector<1x64x16xf32> to vector<4x64x16xf32>
    %13 = arith.addf %9, %12 : vector<4x64x16xf32>
    %14 = vector.extract_strided_slice %7 {offsets = [0, 16], sizes = [256, 16], strides = [1, 1]} : vector<256x48xf32> to vector<256x16xf32>
    %15 = vector.shape_cast %14 : vector<256x16xf32> to vector<4x64x16xf32>
    %c0_8 = arith.constant 0 : index
    %c0_9 = arith.constant 0 : index
    %16 = vector.load %arg5[%c0_8, %c0_9] : memref<64x16xf32, #tpu.memory_space<vmem>>, vector<64x16xf32>
    %17 = vector.shape_cast %16 : vector<64x16xf32> to vector<1x64x16xf32>
    %18 = vector.broadcast %17 : vector<1x64x16xf32> to vector<4x64x16xf32>
    %19 = arith.addf %15, %18 : vector<4x64x16xf32>
    %20 = vector.extract_strided_slice %7 {offsets = [0, 32], sizes = [256, 16], strides = [1, 1]} : vector<256x48xf32> to vector<256x16xf32>
    %21 = vector.shape_cast %20 : vector<256x16xf32> to vector<4x64x16xf32>
    %c0_10 = arith.constant 0 : index
    %c0_11 = arith.constant 0 : index
    %22 = vector.load %arg6[%c0_10, %c0_11] : memref<128x16xf32, #tpu.memory_space<vmem>>, vector<128x16xf32>
    %23 = tpu.concatenate %13, %13 in 1 : vector<4x64x16xf32>, vector<4x64x16xf32> -> vector<4x128x16xf32>
    %24 = vector.shape_cast %22 : vector<128x16xf32> to vector<1x128x16xf32>
    %25 = vector.broadcast %24 : vector<1x128x16xf32> to vector<4x128x16xf32>
    %26 = arith.mulf %23, %25 : vector<4x128x16xf32>
    %27 = arith.truncf %26 : vector<4x128x16xf32> to vector<4x128x16xbf16>
    %28 = arith.truncf %19 : vector<4x64x16xf32> to vector<4x64x16xbf16>
    %29 = arith.truncf %21 : vector<4x64x16xf32> to vector<4x64x16xbf16>
    "tpu.trace_start"() <{level = 10 : i32, message = "wqc,wkc->wqk"}> : () -> ()
    %cst_12 = arith.constant dense<0.000000e+00> : vector<4x128x64xf32>
    %30 = tpu.matmul %27, %28, %cst_12 {dimension_numbers = #tpu.dot_dimension_numbers<[2], [2], [1], [1], [0, 0, 0, 1, 1, 1], [0], [0]>} : vector<4x128x16xbf16>, vector<4x64x16xbf16>, vector<4x128x64xf32> -> vector<4x128x64xf32>
    "tpu.trace_stop"() : () -> ()
    %31 = vector.shape_cast %30 : vector<4x128x64xf32> to vector<4x2x64x64xf32>
    %cst_13 = arith.constant dense<0xFF800000> : vector<4x2x64xf32>
    %32 = vector.multi_reduction <maximumf>, %31, %cst_13 [2] : vector<4x2x64x64xf32> to vector<4x2x64xf32>
    %33 = vector.shape_cast %32 : vector<4x2x64xf32> to vector<4x2x1x64xf32>
    %34 = vector.broadcast %33 : vector<4x2x1x64xf32> to vector<4x2x64x64xf32>
    %35 = arith.subf %31, %34 : vector<4x2x64x64xf32>
    %36 = math.exp %35 : vector<4x2x64x64xf32>
    %cst_14 = arith.constant dense<0.000000e+00> : vector<4x2x64xf32>
    %37 = vector.multi_reduction <add>, %36, %cst_14 [2] : vector<4x2x64x64xf32> to vector<4x2x64xf32>
    %38 = vector.shape_cast %37 : vector<4x2x64xf32> to vector<4x2x1x64xf32>
    %39 = tpu.reciprocal %38 {approx = true} : vector<4x2x1x64xf32> -> vector<4x2x1x64xf32>
    %40 = vector.broadcast %39 : vector<4x2x1x64xf32> to vector<4x2x64x64xf32>
    %41 = arith.mulf %36, %40 : vector<4x2x64x64xf32>
    %42 = vector.shape_cast %41 : vector<4x2x64x64xf32> to vector<4x128x64xf32>
    %43 = arith.truncf %42 : vector<4x128x64xf32> to vector<4x128x64xbf16>
    "tpu.trace_start"() <{level = 10 : i32, message = "wqk,wkc->wqc"}> : () -> ()
    %cst_15 = arith.constant dense<0.000000e+00> : vector<4x128x16xf32>
    %44 = tpu.matmul %43, %29, %cst_15 {dimension_numbers = #tpu.dot_dimension_numbers<[2], [1], [1], [2], [0, 0, 0, 1, 1, 2], [0], [0]>} : vector<4x128x64xbf16>, vector<4x64x16xbf16>, vector<4x128x16xf32> -> vector<4x128x16xf32>
    "tpu.trace_stop"() : () -> ()
    %45 = vector.shape_cast %22 : vector<128x16xf32> to vector<1x128x16xf32>
    %46 = vector.broadcast %45 : vector<1x128x16xf32> to vector<4x128x16xf32>
    %47 = arith.mulf %44, %46 : vector<4x128x16xf32>
    %48 = vector.shape_cast %47 : vector<4x128x16xf32> to vector<4x2x64x16xf32>
    %cst_16 = arith.constant dense<0.000000e+00> : vector<4x64x16xf32>
    %49 = vector.multi_reduction <add>, %48, %cst_16 [1] : vector<4x2x64x16xf32> to vector<4x64x16xf32>
    %50 = vector.shape_cast %49 : vector<4x64x16xf32> to vector<256x16xf32>
    %51 = arith.truncf %50 : vector<256x16xf32> to vector<256x16xbf16>
    %c0_17 = arith.constant 0 : index
    %c0_18 = arith.constant 0 : index
    %52 = vector.load %arg7[%c0_17, %c0_18] : memref<16x16xbf16, #tpu.memory_space<vmem>>, vector<16x16xbf16>
    %cst_19 = arith.constant dense<0.000000e+00> : vector<256x16xf32>
    %53 = tpu.matmul %51, %52, %cst_19 {dimension_numbers = #tpu.dot_dimension_numbers<[1], [0], [0], [1], [0, 0, 1, 1], [], []>} : vector<256x16xbf16>, vector<16x16xbf16>, vector<256x16xf32> -> vector<256x16xf32>
    %c0_20 = arith.constant 0 : index
    %c0_21 = arith.constant 0 : index
    %54 = vector.load %arg8[%c0_20, %c0_21] : memref<1x16xf32, #tpu.memory_space<vmem>>, vector<1x16xf32>
    %55 = vector.broadcast %54 : vector<1x16xf32> to vector<256x16xf32>
    %56 = arith.addf %53, %55 : vector<256x16xf32>
    %57 = math.absf %56 : vector<256x16xf32>
    %cst_22 = arith.constant 0.000000e+00 : f32
    %58 = vector.broadcast %cst_22 : f32 to vector<256x16xf32>
    %59 = arith.subf %58, %57 : vector<256x16xf32>
    %60 = math.exp %59 : vector<256x16xf32>
    %cst_23 = arith.constant 0.000000e+00 : f32
    %61 = vector.broadcast %cst_23 : f32 to vector<256x16xf32>
    %62 = arith.cmpf oge, %56, %61 : vector<256x16xf32>
    %cst_24 = arith.constant 2.000000e+00 : f32
    %63 = vector.broadcast %cst_24 : f32 to vector<256x16xf32>
    %64 = arith.mulf %63, %60 : vector<256x16xf32>
    %cst_25 = arith.constant 1.000000e+00 : f32
    %65 = vector.broadcast %cst_25 : f32 to vector<256x16xf32>
    %66 = arith.addf %65, %64 : vector<256x16xf32>
    %67 = arith.mulf %60, %60 : vector<256x16xf32>
    %cst_26 = arith.constant 2.000000e+00 : f32
    %68 = vector.broadcast %cst_26 : f32 to vector<256x16xf32>
    %69 = arith.mulf %68, %60 : vector<256x16xf32>
    %70 = arith.addf %67, %69 : vector<256x16xf32>
    %71 = arith.select %62, %66, %70 : vector<256x16xi1>, vector<256x16xf32>
    %cst_27 = arith.constant 2.000000e+00 : f32
    %72 = vector.broadcast %cst_27 : f32 to vector<256x16xf32>
    %73 = arith.mulf %72, %60 : vector<256x16xf32>
    %cst_28 = arith.constant 1.000000e+00 : f32
    %74 = vector.broadcast %cst_28 : f32 to vector<256x16xf32>
    %75 = arith.addf %74, %73 : vector<256x16xf32>
    %cst_29 = arith.constant 2.000000e+00 : f32
    %76 = vector.broadcast %cst_29 : f32 to vector<256x16xf32>
    %77 = arith.mulf %76, %60 : vector<256x16xf32>
    %78 = arith.mulf %77, %60 : vector<256x16xf32>
    %79 = arith.addf %75, %78 : vector<256x16xf32>
    %80 = arith.mulf %60, %60 : vector<256x16xf32>
    %cst_30 = arith.constant 2.000000e+00 : f32
    %81 = vector.broadcast %cst_30 : f32 to vector<256x16xf32>
    %82 = arith.mulf %81, %60 : vector<256x16xf32>
    %83 = arith.addf %80, %82 : vector<256x16xf32>
    %cst_31 = arith.constant 2.000000e+00 : f32
    %84 = vector.broadcast %cst_31 : f32 to vector<256x16xf32>
    %85 = arith.addf %83, %84 : vector<256x16xf32>
    %86 = arith.select %62, %79, %85 : vector<256x16xi1>, vector<256x16xf32>
    %87 = arith.mulf %56, %71 : vector<256x16xf32>
    %88 = tpu.reciprocal %86 {approx = true} : vector<256x16xf32> -> vector<256x16xf32>
    %89 = arith.mulf %87, %88 : vector<256x16xf32>
    %90 = arith.truncf %89 : vector<256x16xf32> to vector<256x16xbf16>
    %c0_32 = arith.constant 0 : index
    %c0_33 = arith.constant 0 : index
    %91 = vector.load %arg9[%c0_32, %c0_33] : memref<16x16xbf16, #tpu.memory_space<vmem>>, vector<16x16xbf16>
    %cst_34 = arith.constant dense<0.000000e+00> : vector<256x16xf32>
    %92 = tpu.matmul %90, %91, %cst_34 {dimension_numbers = #tpu.dot_dimension_numbers<[1], [0], [0], [1], [0, 0, 1, 1], [], []>} : vector<256x16xbf16>, vector<16x16xbf16>, vector<256x16xf32> -> vector<256x16xf32>
    %c0_35 = arith.constant 0 : index
    %c0_36 = arith.constant 0 : index
    %93 = vector.load %arg10[%c0_35, %c0_36] : memref<1x16xf32, #tpu.memory_space<vmem>>, vector<1x16xf32>
    %94 = vector.broadcast %93 : vector<1x16xf32> to vector<256x16xf32>
    %95 = arith.addf %92, %94 : vector<256x16xf32>
    %96 = arith.addf %95, %1 : vector<256x16xf32>
    %c0_37 = arith.constant 0 : index
    %c0_38 = arith.constant 0 : index
    %c0_39 = arith.constant 0 : index
    %97 = vector.load %arg11[%c0_37, %c0_38, %c0_39] : memref<1x256x16xf32, #tpu.memory_space<vmem>>, vector<1x256x16xf32>
    %98 = vector.shape_cast %97 : vector<1x256x16xf32> to vector<256x16xf32>
    %99 = vector.shape_cast %96 : vector<256x16xf32> to vector<1x256x16xf32>
    tpu.vector_store %arg11[%c0_37, %c0_38, %c0_39], %99 {strides = array<i32>} : memref<1x256x16xf32, #tpu.memory_space<vmem>>, vector<1x256x16xf32>,
    return
  }
  func.func @transform_0(%arg0: i32) -> (i32, i32, i32) {
    %c0_i32 = arith.constant 0 : i32
    %c0_i32_0 = arith.constant 0 : i32
    %c0_i32_1 = arith.constant 0 : i32
    return %arg0, %c0_i32, %c0_i32_0 : i32, i32, i32
  }
  func.func @transform_1(%arg0: i32) -> (i32, i32) {
    %c0_i32 = arith.constant 0 : i32
    %c0_i32_0 = arith.constant 0 : i32
    %c0_i32_1 = arith.constant 0 : i32
    return %c0_i32, %c0_i32_0 : i32, i32
  }
  func.func @transform_2(%arg0: i32) -> (i32, i32) {
    %c0_i32 = arith.constant 0 : i32
    %c0_i32_0 = arith.constant 0 : i32
    %c0_i32_1 = arith.constant 0 : i32
    return %c0_i32, %c0_i32_0 : i32, i32
  }
  func.func @transform_3(%arg0: i32) -> (i32, i32) {
    %c0_i32 = arith.constant 0 : i32
    %c0_i32_0 = arith.constant 0 : i32
    %c0_i32_1 = arith.constant 0 : i32
    return %c0_i32, %c0_i32_0 : i32, i32
  }
  func.func @transform_4(%arg0: i32) -> (i32, i32) {
    %c0_i32 = arith.constant 0 : i32
    %c0_i32_0 = arith.constant 0 : i32
    %c0_i32_1 = arith.constant 0 : i32
    return %c0_i32, %c0_i32_0 : i32, i32
  }
  func.func @transform_5(%arg0: i32) -> (i32, i32) {
    %c0_i32 = arith.constant 0 : i32
    %c0_i32_0 = arith.constant 0 : i32
    %c0_i32_1 = arith.constant 0 : i32
    return %c0_i32, %c0_i32_0 : i32, i32
  }
  func.func @transform_6(%arg0: i32) -> (i32, i32) {
    %c0_i32 = arith.constant 0 : i32
    %c0_i32_0 = arith.constant 0 : i32
    %c0_i32_1 = arith.constant 0 : i32
    return %c0_i32, %c0_i32_0 : i32, i32
  }
  func.func @transform_7(%arg0: i32) -> (i32, i32) {
    %c0_i32 = arith.constant 0 : i32
    %c0_i32_0 = arith.constant 0 : i32
    %c0_i32_1 = arith.constant 0 : i32
    return %c0_i32, %c0_i32_0 : i32, i32
  }
  func.func @transform_8(%arg0: i32) -> (i32, i32) {
    %c0_i32 = arith.constant 0 : i32
    %c0_i32_0 = arith.constant 0 : i32
    %c0_i32_1 = arith.constant 0 : i32
    return %c0_i32, %c0_i32_0 : i32, i32
  }
  func.func @transform_9(%arg0: i32) -> (i32, i32) {
    %c0_i32 = arith.constant 0 : i32
    %c0_i32_0 = arith.constant 0 : i32
    %c0_i32_1 = arith.constant 0 : i32
    return %c0_i32, %c0_i32_0 : i32, i32
  }
  func.func @transform_10(%arg0: i32) -> (i32, i32, i32) {
    %c0_i32 = arith.constant 0 : i32
    %c0_i32_0 = arith.constant 0 : i32
    %c0_i32_1 = arith.constant 0 : i32
    return %arg0, %c0_i32, %c0_i32_0 : i32, i32, i32
  }
}

</mosaic_0001>

<llo_original>
// kernel: skip_attention_forward.1
$region0: #{skip_attention_forward.1}
  #allocation0 [shape = 'u32[]', space=smem, size = 0x4, offset = 0x4, fixed_abs, tag = 'smem constant byte address 0x4 - core index']
  #allocation1 [shape = 'u32[144,128]{1,0:T(1,128)}', space=vmem, size = 0x12000, scoped, tag = 'internal scratch']
  %s0 = inlined_call_operand.vmem [shape: f32[2,256,16], index: 0, kind: input, shape index: {}]
  %s1 = inlined_call_operand.vmem [shape: bf16[16,48], index: 1, kind: input, shape index: {}]
  %s2 = inlined_call_operand.vmem [shape: f32[1,48], index: 2, kind: input, shape index: {}]
  %s3 = inlined_call_operand.vmem [shape: f32[64,16], index: 3, kind: input, shape index: {}]
  %s4 = inlined_call_operand.vmem [shape: f32[64,16], index: 4, kind: input, shape index: {}]
  %s5 = inlined_call_operand.vmem [shape: f32[128,16], index: 5, kind: input, shape index: {}]
  %s6 = inlined_call_operand.vmem [shape: bf16[16,16], index: 6, kind: input, shape index: {}]
  %s7 = inlined_call_operand.vmem [shape: f32[1,16], index: 7, kind: input, shape index: {}]
  %s8 = inlined_call_operand.vmem [shape: bf16[16,16], index: 8, kind: input, shape index: {}]
  %s9 = inlined_call_operand.vmem [shape: f32[1,16], index: 9, kind: input, shape index: {}]
  %s10 = inlined_call_operand.vmem [shape: f32[2,256,16], index: 10, kind: output, shape index: {}]
  %s11 = sld [smem:[#allocation0]]
  $region73: #{skip_attention_forward.1} parent=0
    _
  %s13 = ssub.s32 1, %s11
  %s14 = scalar_select 0, %s13, %s11
  loop: start=0, step=1, limit=4
  $region2: #{skip_attention_forward.1} parent=0 // loop_pre_header
    _
  $region3: #{skip_attention_forward.1} parent=0 // loop_header
    %s16 = sphi 0, %s20
    %p17 = scmp.ge.s32.totalorder %s16, 4
    %s26 = sphi 0, %s28
    %s29 = sphi 0, %s26
    %s30 = sphi 0, %s29
    %s46 = sphi 0, %s30
    %s50 = sphi 0, %s50
    %s52 = sphi 0, %s50
    %s53 = sphi 0, %s52
    %s67 = sphi 0, %s53
    %s71 = sphi 0, %s71
    %s73 = sphi 0, %s71
    %s74 = sphi 0, %s73
    %s88 = sphi 0, %s74
    %s92 = sphi 0, %s92
    %s94 = sphi 0, %s92
    %s95 = sphi 0, %s94
    %s109 = sphi 0, %s95
    %s113 = sphi 0, %s113
    %s115 = sphi 0, %s113
    %s116 = sphi 0, %s115
    %s130 = sphi 0, %s116
    %s134 = sphi 0, %s134
    %s136 = sphi 0, %s134
    %s137 = sphi 0, %s136
    %s151 = sphi 0, %s137
    %s155 = sphi 0, %s155
    %s157 = sphi 0, %s155
    %s158 = sphi 0, %s157
    %s172 = sphi 0, %s158
    %s176 = sphi 0, %s176
    %s178 = sphi 0, %s176
    %s179 = sphi 0, %s178
    %s193 = sphi 0, %s179
    %s197 = sphi 0, %s197
    %s199 = sphi 0, %s197
    %s200 = sphi 0, %s199
    %s214 = sphi 0, %s200
    %s218 = sphi 0, %s218
    %s220 = sphi 0, %s218
    %s221 = sphi 0, %s220
    %s235 = sphi 0, %s221
    %s241 = sphi 0, %s243
    %s244 = sphi 0, %s241
    %s245 = sphi 0, %s244
    %s261 = sphi 0, %s245
  $region4: #{skip_attention_forward.1} parent=0 // loop_header_branch
    %19 = sbr.rel (%p17) target = $region8
  $region5: #{skip_attention_forward.1} parent=0 // loop_body
    %s21 = ssub.s32 %s16, 1
    %s22 = ssub.s32 %s16, 2
    %s23 = sadd.s32 %s16, 1
    %s24 = ssub.s32 %s16, %s23
    %p25 = scmp.eq.s32.totalorder %s24, 0
    %s27 = sadd.s32 %s26, 1
    %s28 = scalar_select %p25, %s26, %s27
    %p31 = pneg %p25
    %p32 = scmp.eq.s32.totalorder %s16, 1
    %p33 = por %p31, %p32
    %p34 = scmp.ne.s32.totalorder %s26, %s29
    %p35 = scmp.eq.s32.totalorder %s16, 0
    %p36 = por %p34, %p35
    %p37 = scmp.ne.s32.totalorder %s26, %s29
    %p38 = scmp.eq.s32.totalorder %s21, 1
    %p39 = por %p37, %p38
    %p40 = scmp.ne.s32.totalorder %s29, %s30
    %p41 = scmp.eq.s32.totalorder %s21, 0
    %p42 = por %p40, %p41
    %p43 = scmp.ne.s32.totalorder %s29, %s30
    %p44 = scmp.eq.s32.totalorder %s22, 1
    %p45 = por %p43, %p44
    %p47 = scmp.ne.s32.totalorder %s30, %s46
    %p48 = scmp.eq.s32.totalorder %s22, 0
    %p49 = por %p47, %p48
    %s51 = sadd.s32 %s50, 1
    %p54 = scmp.eq.s32.totalorder %s16, 1
    %p55 = scmp.ne.s32.totalorder %s50, %s52
    %p56 = scmp.eq.s32.totalorder %s16, 0
    %p57 = por %p55, %p56
    %p58 = scmp.ne.s32.totalorder %s50, %s52
    %p59 = scmp.eq.s32.totalorder %s21, 1
    %p60 = por %p58, %p59
    %p61 = scmp.ne.s32.totalorder %s52, %s53
    %p62 = scmp.eq.s32.totalorder %s21, 0
    %p63 = por %p61, %p62
    %p64 = scmp.ne.s32.totalorder %s52, %s53
    %p65 = scmp.eq.s32.totalorder %s22, 1
    %p66 = por %p64, %p65
    %p68 = scmp.ne.s32.totalorder %s53, %s67
    %p69 = scmp.eq.s32.totalorder %s22, 0
    %p70 = por %p68, %p69
    %s72 = sadd.s32 %s71, 1
    %p75 = scmp.eq.s32.totalorder %s16, 1
    %p76 = scmp.ne.s32.totalorder %s71, %s73
    %p77 = scmp.eq.s32.totalorder %s16, 0
    %p78 = por %p76, %p77
    %p79 = scmp.ne.s32.totalorder %s71, %s73
    %p80 = scmp.eq.s32.totalorder %s21, 1
    %p81 = por %p79, %p80
    %p82 = scmp.ne.s32.totalorder %s73, %s74
    %p83 = scmp.eq.s32.totalorder %s21, 0
    %p84 = por %p82, %p83
    %p85 = scmp.ne.s32.totalorder %s73, %s74
    %p86 = scmp.eq.s32.totalorder %s22, 1
    %p87 = por %p85, %p86
    %p89 = scmp.ne.s32.totalorder %s74, %s88
    %p90 = scmp.eq.s32.totalorder %s22, 0
    %p91 = por %p89, %p90
    %s93 = sadd.s32 %s92, 1
    %p96 = scmp.eq.s32.totalorder %s16, 1
    %p97 = scmp.ne.s32.totalorder %s92, %s94
    %p98 = scmp.eq.s32.totalorder %s16, 0
    %p99 = por %p97, %p98
    %p100 = scmp.ne.s32.totalorder %s92, %s94
    %p101 = scmp.eq.s32.totalorder %s21, 1
    %p102 = por %p100, %p101
    %p103 = scmp.ne.s32.totalorder %s94, %s95
    %p104 = scmp.eq.s32.totalorder %s21, 0
    %p105 = por %p103, %p104
    %p106 = scmp.ne.s32.totalorder %s94, %s95
    %p107 = scmp.eq.s32.totalorder %s22, 1
    %p108 = por %p106, %p107
    %p110 = scmp.ne.s32.totalorder %s95, %s109
    %p111 = scmp.eq.s32.totalorder %s22, 0
    %p112 = por %p110, %p111
    %s114 = sadd.s32 %s113, 1
    %p117 = scmp.eq.s32.totalorder %s16, 1
    %p118 = scmp.ne.s32.totalorder %s113, %s115
    %p119 = scmp.eq.s32.totalorder %s16, 0
    %p120 = por %p118, %p119
    %p121 = scmp.ne.s32.totalorder %s113, %s115
    %p122 = scmp.eq.s32.totalorder %s21, 1
    %p123 = por %p121, %p122
    %p124 = scmp.ne.s32.totalorder %s115, %s116
    %p125 = scmp.eq.s32.totalorder %s21, 0
    %p126 = por %p124, %p125
    %p127 = scmp.ne.s32.totalorder %s115, %s116
    %p128 = scmp.eq.s32.totalorder %s22, 1
    %p129 = por %p127, %p128
    %p131 = scmp.ne.s32.totalorder %s116, %s130
    %p132 = scmp.eq.s32.totalorder %s22, 0
    %p133 = por %p131, %p132
    %s135 = sadd.s32 %s134, 1
    %p138 = scmp.eq.s32.totalorder %s16, 1
    %p139 = scmp.ne.s32.totalorder %s134, %s136
    %p140 = scmp.eq.s32.totalorder %s16, 0
    %p141 = por %p139, %p140
    %p142 = scmp.ne.s32.totalorder %s134, %s136
    %p143 = scmp.eq.s32.totalorder %s21, 1
    %p144 = por %p142, %p143
    %p145 = scmp.ne.s32.totalorder %s136, %s137
    %p146 = scmp.eq.s32.totalorder %s21, 0
    %p147 = por %p145, %p146
    %p148 = scmp.ne.s32.totalorder %s136, %s137
    %p149 = scmp.eq.s32.totalorder %s22, 1
    %p150 = por %p148, %p149
    %p152 = scmp.ne.s32.totalorder %s137, %s151
    %p153 = scmp.eq.s32.totalorder %s22, 0
    %p154 = por %p152, %p153
    %s156 = sadd.s32 %s155, 1
    %p159 = scmp.eq.s32.totalorder %s16, 1
    %p160 = scmp.ne.s32.totalorder %s155, %s157
    %p161 = scmp.eq.s32.totalorder %s16, 0
    %p162 = por %p160, %p161
    %p163 = scmp.ne.s32.totalorder %s155, %s157
    %p164 = scmp.eq.s32.totalorder %s21, 1
    %p165 = por %p163, %p164
    %p166 = scmp.ne.s32.totalorder %s157, %s158
    %p167 = scmp.eq.s32.totalorder %s21, 0
    %p168 = por %p166, %p167
    %p169 = scmp.ne.s32.totalorder %s157, %s158
    %p170 = scmp.eq.s32.totalorder %s22, 1
    %p171 = por %p169, %p170
    %p173 = scmp.ne.s32.totalorder %s158, %s172
    %p174 = scmp.eq.s32.totalorder %s22, 0
    %p175 = por %p173, %p174
    %s177 = sadd.s32 %s176, 1
    %p180 = scmp.eq.s32.totalorder %s16, 1
    %p181 = scmp.ne.s32.totalorder %s176, %s178
    %p182 = scmp.eq.s32.totalorder %s16, 0
    %p183 = por %p181, %p182
    %p184 = scmp.ne.s32.totalorder %s176, %s178
    %p185 = scmp.eq.s32.totalorder %s21, 1
    %p186 = por %p184, %p185
    %p187 = scmp.ne.s32.totalorder %s178, %s179
    %p188 = scmp.eq.s32.totalorder %s21, 0
    %p189 = por %p187, %p188
    %p190 = scmp.ne.s32.totalorder %s178, %s179
    %p191 = scmp.eq.s32.totalorder %s22, 1
    %p192 = por %p190, %p191
    %p194 = scmp.ne.s32.totalorder %s179, %s193
    %p195 = scmp.eq.s32.totalorder %s22, 0
    %p196 = por %p194, %p195
    %s198 = sadd.s32 %s197, 1
    %p201 = scmp.eq.s32.totalorder %s16, 1
    %p202 = scmp.ne.s32.totalorder %s197, %s199
    %p203 = scmp.eq.s32.totalorder %s16, 0
    %p204 = por %p202, %p203
    %p205 = scmp.ne.s32.totalorder %s197, %s199
    %p206 = scmp.eq.s32.totalorder %s21, 1
    %p207 = por %p205, %p206
    %p208 = scmp.ne.s32.totalorder %s199, %s200
    %p209 = scmp.eq.s32.totalorder %s21, 0
    %p210 = por %p208, %p209
    %p211 = scmp.ne.s32.totalorder %s199, %s200
    %p212 = scmp.eq.s32.totalorder %s22, 1
    %p213 = por %p211, %p212
    %p215 = scmp.ne.s32.totalorder %s200, %s214
    %p216 = scmp.eq.s32.totalorder %s22, 0
    %p217 = por %p215, %p216
    %s219 = sadd.s32 %s218, 1
    %p222 = scmp.eq.s32.totalorder %s16, 1
    %p223 = scmp.ne.s32.totalorder %s218, %s220
    %p224 = scmp.eq.s32.totalorder %s16, 0
    %p225 = por %p223, %p224
    %p226 = scmp.ne.s32.totalorder %s218, %s220
    %p227 = scmp.eq.s32.totalorder %s21, 1
    %p228 = por %p226, %p227
    %p229 = scmp.ne.s32.totalorder %s220, %s221
    %p230 = scmp.eq.s32.totalorder %s21, 0
    %p231 = por %p229, %p230
    %p232 = scmp.ne.s32.totalorder %s220, %s221
    %p233 = scmp.eq.s32.totalorder %s22, 1
    %p234 = por %p232, %p233
    %p236 = scmp.ne.s32.totalorder %s221, %s235
    %p237 = scmp.eq.s32.totalorder %s22, 0
    %p238 = por %p236, %p237
    %s239 = ssub.s32 %s16, %s23
    %p240 = scmp.eq.s32.totalorder %s239, 0
    %s242 = sadd.s32 %s241, 1
    %s243 = scalar_select %p240, %s241, %s242
    %p246 = pneg %p240
    %p247 = scmp.eq.s32.totalorder %s16, 1
    %p248 = por %p246, %p247
    %p249 = scmp.ne.s32.totalorder %s241, %s244
    %p250 = scmp.eq.s32.totalorder %s16, 0
    %p251 = por %p249, %p250
    %p252 = scmp.ne.s32.totalorder %s241, %s244
    %p253 = scmp.eq.s32.totalorder %s21, 1
    %p254 = por %p252, %p253
    %p255 = scmp.ne.s32.totalorder %s244, %s245
    %p256 = scmp.eq.s32.totalorder %s21, 0
    %p257 = por %p255, %p256
    %p258 = scmp.ne.s32.totalorder %s244, %s245
    %p259 = scmp.eq.s32.totalorder %s22, 1
    %p260 = por %p258, %p259
    %p262 = scmp.ne.s32.totalorder %s245, %s261
    %p263 = scmp.eq.s32.totalorder %s22, 0
    %p264 = por %p262, %p263
    %p265 = scmp.le.s32.totalorder 1, %s16
    %p266 = scmp.lt.s32.totalorder %s16, 3
    %p267 = pnand %p265, %p266
    %p268 = pneg %p267
    // Predicated region
    $region9: #{skip_attention_forward.1} parent=5 // pred_check
      _
    $region10: #{skip_attention_forward.1} parent=5 // pred_check_branch
      %270 = sbr.rel (%p267) target = $region12
    $region11: #{skip_attention_forward.1} parent=5 // pred_region
      %s271 = ssub.s32 %s16, 1
      // Predicated region
      $region13: #{skip_attention_forward.1} parent=11 // pred_check
        %p272 = pneg %p63
      $region14: #{skip_attention_forward.1} parent=11 // pred_check_branch
        %274 = sbr.rel (%p272) target = $region16
      $region15: #{skip_attention_forward.1} parent=11 // pred_region
        _
      $region16: #{skip_attention_forward.1} parent=11 // pred_fallthru
        _
      // Predicated region
      $region17: #{skip_attention_forward.1} parent=11 // pred_check
        %p275 = pneg %p84
      $region18: #{skip_attention_forward.1} parent=11 // pred_check_branch
        %277 = sbr.rel (%p275) target = $region20
      $region19: #{skip_attention_forward.1} parent=11 // pred_region
        _
      $region20: #{skip_attention_forward.1} parent=11 // pred_fallthru
        _
      // Predicated region
      $region21: #{skip_attention_forward.1} parent=11 // pred_check
        %p278 = pneg %p105
      $region22: #{skip_attention_forward.1} parent=11 // pred_check_branch
        %280 = sbr.rel (%p278) target = $region24
      $region23: #{skip_attention_forward.1} parent=11 // pred_region
        _
      $region24: #{skip_attention_forward.1} parent=11 // pred_fallthru
        _
      // Predicated region
      $region25: #{skip_attention_forward.1} parent=11 // pred_check
        %p281 = pneg %p126
      $region26: #{skip_attention_forward.1} parent=11 // pred_check_branch
        %283 = sbr.rel (%p281) target = $region28
      $region27: #{skip_attention_forward.1} parent=11 // pred_region
        _
      $region28: #{skip_attention_forward.1} parent=11 // pred_fallthru
        _
      // Predicated region
      $region29: #{skip_attention_forward.1} parent=11 // pred_check
        %p284 = pneg %p147
      $region30: #{skip_attention_forward.1} parent=11 // pred_check_branch
        %286 = sbr.rel (%p284) target = $region32
      $region31: #{skip_attention_forward.1} parent=11 // pred_region
        _
      $region32: #{skip_attention_forward.1} parent=11 // pred_fallthru
        _
      // Predicated region
      $region33: #{skip_attention_forward.1} parent=11 // pred_check
        %p287 = pneg %p168
      $region34: #{skip_attention_forward.1} parent=11 // pred_check_branch
        %289 = sbr.rel (%p287) target = $region36
      $region35: #{skip_attention_forward.1} parent=11 // pred_region
        _
      $region36: #{skip_attention_forward.1} parent=11 // pred_fallthru
        _
      // Predicated region
      $region37: #{skip_attention_forward.1} parent=11 // pred_check
        %p290 = pneg %p189
      $region38: #{skip_attention_forward.1} parent=11 // pred_check_branch
        %292 = sbr.rel (%p290) target = $region40
      $region39: #{skip_attention_forward.1} parent=11 // pred_region
        _
      $region40: #{skip_attention_forward.1} parent=11 // pred_fallthru
        _
      // Predicated region
      $region41: #{skip_attention_forward.1} parent=11 // pred_check
        %p293 = pneg %p210
      $region42: #{skip_attention_forward.1} parent=11 // pred_check_branch
        %295 = sbr.rel (%p293) target = $region44
      $region43: #{skip_attention_forward.1} parent=11 // pred_region
        _
      $region44: #{skip_attention_forward.1} parent=11 // pred_fallthru
        _
      // Predicated region
      $region45: #{skip_attention_forward.1} parent=11 // pred_check
        %p296 = pneg %p231
      $region46: #{skip_attention_forward.1} parent=11 // pred_check_branch
        %298 = sbr.rel (%p296) target = $region48
      $region47: #{skip_attention_forward.1} parent=11 // pred_region
        _
      $region48: #{skip_attention_forward.1} parent=11 // pred_fallthru
        _
    $region12: #{skip_attention_forward.1} parent=5 // pred_fallthru
      _
    %p299 = scmp.lt.s32.totalorder %s16, 2
    // Predicated region
    $region49: #{skip_attention_forward.1} parent=5 // pred_check
      %p300 = pneg %p299
    $region50: #{skip_attention_forward.1} parent=5 // pred_check_branch
      %302 = sbr.rel (%p300) target = $region52
    $region51: #{skip_attention_forward.1} parent=5 // pred_region
      // Predicated region
      $region53: #{skip_attention_forward.1} parent=51 // pred_check
        %p303 = pneg %p36
      $region54: #{skip_attention_forward.1} parent=51 // pred_check_branch
        %305 = sbr.rel (%p303) target = $region56
      $region55: #{skip_attention_forward.1} parent=51 // pred_region
        %p306 = scmp.lt.s32.totalorder %s16, 1
        %s307 = scalar_select %p306, %s16, 1
        %s308 = smul.addr %s307, 32
        %s309 = smul.addr %s308, 8
        %s310 = scalar_lea.vmem %s0, %s309
      $region56: #{skip_attention_forward.1} parent=51 // pred_fallthru
        _
    $region52: #{skip_attention_forward.1} parent=5 // pred_fallthru
      _
    %p311 = scmp.le.s32.totalorder 1, %s16
    %p312 = scmp.lt.s32.totalorder %s16, 3
    %p313 = pnand %p311, %p312
    %p314 = pneg %p313
    // Predicated region
    $region57: #{skip_attention_forward.1} parent=5 // pred_check
      _
    $region58: #{skip_attention_forward.1} parent=5 // pred_check_branch
      %316 = sbr.rel (%p313) target = $region60
    $region59: #{skip_attention_forward.1} parent=5 // pred_region
      %s317 = ssub.s32 %s16, 1
      %p318 = scmp.lt.s32.totalorder %s21, 1
      %s319 = scalar_select %p318, %s21, 1
      %s320 = smul.addr %s319, 32
      %s321 = smul.addr %s320, 8
      %s322 = scalar_lea.vmem %s0, %s321
      %p323 = pneg %p42
      %p324 = pneg %p39
      %p325 = pneg %p63
      %p326 = pneg %p60
      %p327 = pneg %p84
      %p328 = pneg %p81
      %p329 = pneg %p105
      %p330 = pneg %p102
      %p331 = pneg %p126
      %p332 = pneg %p123
      %p333 = pneg %p147
      %p334 = pneg %p144
      %p335 = pneg %p168
      %p336 = pneg %p165
      %p337 = pneg %p189
      %p338 = pneg %p186
      %p339 = pneg %p210
      %p340 = pneg %p207
      %p341 = pneg %p231
      %p342 = pneg %p228
      %p343 = pneg %p257
      %p344 = pneg %p254
      %p345 = scmp.lt.s32.totalorder %s21, 1
      %s346 = scalar_select %p345, %s21, 1
      %s347 = smul.addr %s346, 32
      %s348 = smul.addr %s347, 8
      %s349 = scalar_lea.vmem %s10, %s348
      %p350 = scmp.lt.s32.totalorder %s21, 1
      %s351 = scalar_select %p350, %s21, 1
      %s352 = smul.addr %s351, 32
      %s353 = smul.addr %s352, 8
      %s354 = scalar_lea.vmem %s0, %s353
      %p355 = scmp.lt.s32.totalorder %s21, 1
      %s356 = scalar_select %p355, %s21, 1
      %s357 = smul.addr %s356, 32
      %s358 = smul.addr %s357, 8
      %s359 = scalar_lea.vmem %s10, %s358
      %v361 = vld [vmem:[%s354] sm:$0xff]
      %v362 = vld [vmem:[%s354 + $0x8] sm:$0xff]
      %v363 = vld [vmem:[%s354 + $0x10] sm:$0xff]
      %v364 = vld [vmem:[%s354 + $0x18] sm:$0xff]
      %v365 = vld [vmem:[%s354 + $0x20] sm:$0xff]
      %v366 = vld [vmem:[%s354 + $0x28] sm:$0xff]
      %v367 = vld [vmem:[%s354 + $0x30] sm:$0xff]
      %v368 = vld [vmem:[%s354 + $0x38] sm:$0xff]
      %v369 = vld [vmem:[%s354 + $0x40] sm:$0xff]
      %v370 = vld [vmem:[%s354 + $0x48] sm:$0xff]
      %v371 = vld [vmem:[%s354 + $0x50] sm:$0xff]
      %v372 = vld [vmem:[%s354 + $0x58] sm:$0xff]
      %v373 = vld [vmem:[%s354 + $0x60] sm:$0xff]
      %v374 = vld [vmem:[%s354 + $0x68] sm:$0xff]
      %v375 = vld [vmem:[%s354 + $0x70] sm:$0xff]
      %v376 = vld [vmem:[%s354 + $0x78] sm:$0xff]
      %v377 = vld [vmem:[%s354 + $0x80] sm:$0xff]
      %v378 = vld [vmem:[%s354 + $0x88] sm:$0xff]
      %v379 = vld [vmem:[%s354 + $0x90] sm:$0xff]
      %v380 = vld [vmem:[%s354 + $0x98] sm:$0xff]
      %v381 = vld [vmem:[%s354 + $0xa0] sm:$0xff]
      %v382 = vld [vmem:[%s354 + $0xa8] sm:$0xff]
      %v383 = vld [vmem:[%s354 + $0xb0] sm:$0xff]
      %v384 = vld [vmem:[%s354 + $0xb8] sm:$0xff]
      %v385 = vld [vmem:[%s354 + $0xc0] sm:$0xff]
      %v386 = vld [vmem:[%s354 + $0xc8] sm:$0xff]
      %v387 = vld [vmem:[%s354 + $0xd0] sm:$0xff]
      %v388 = vld [vmem:[%s354 + $0xd8] sm:$0xff]
      %v389 = vld [vmem:[%s354 + $0xe0] sm:$0xff]
      %v390 = vld [vmem:[%s354 + $0xe8] sm:$0xff]
      %v391 = vld [vmem:[%s354 + $0xf0] sm:$0xff]
      %v392 = vld [vmem:[%s354 + $0xf8] sm:$0xff]
      %v393 = vpack.c.bf16 %v362, %v361
      %v394 = vpack.c.bf16 %v364, %v363
      %v395 = vpack.c.bf16 %v366, %v365
      %v396 = vpack.c.bf16 %v368, %v367
      %v397 = vpack.c.bf16 %v370, %v369
      %v398 = vpack.c.bf16 %v372, %v371
      %v399 = vpack.c.bf16 %v374, %v373
      %v400 = vpack.c.bf16 %v376, %v375
      %v401 = vpack.c.bf16 %v378, %v377
      %v402 = vpack.c.bf16 %v380, %v379
      %v403 = vpack.c.bf16 %v382, %v381
      %v404 = vpack.c.bf16 %v384, %v383
      %v405 = vpack.c.bf16 %v386, %v385
      %v406 = vpack.c.bf16 %v388, %v387
      %v407 = vpack.c.bf16 %v390, %v389
      %v408 = vpack.c.bf16 %v392, %v391
      %v409 = vld [vmem:[%s1] sm:$0xf]
      %v410 = vld [vmem:[%s1 + $0x4] sm:$0xf]
      %v411 = vld [vmem:[%s2] sm:$0x1]
      %v413 = vlaneseq
      %v414 = vshrl.u32 %v413, 7
      %v415 = vsub.s32 0, %v414
      %v416 = vrot.slane %v411, %v415
      %v420 = vunpack.c.l.b16 %v409
      %v421 = vunpack.c.l.b16 %v410
      %v422 = vpack.c.b16 %v421, %v420
      %vm424 = vcmask 130048
      %v426 = vsel %vm424, %v393, 0
      %v429 = vsel %vm424, %v394, 0
      %v432 = vsel %vm424, %v395, 0
      %v435 = vsel %vm424, %v396, 0
      %v438 = vsel %vm424, %v397, 0
      %v441 = vsel %vm424, %v398, 0
      %v444 = vsel %vm424, %v399, 0
      %v447 = vsel %vm424, %v400, 0
      %v450 = vsel %vm424, %v401, 0
      %v453 = vsel %vm424, %v402, 0
      %v456 = vsel %vm424, %v403, 0
      %v459 = vsel %vm424, %v404, 0
      %v462 = vsel %vm424, %v405, 0
      %v465 = vsel %vm424, %v406, 0
      %v468 = vsel %vm424, %v407, 0
      %v471 = vsel %vm424, %v408, 0
      %473 = vmatprep.subr.bf16.mxu0 0
      %474 = vmatpush1.bf16.msra.mxu0 %v422
      %475 = vmatprep.subr.bf16.mxu0 0
      %476 = vmatpush1.bf16.msra.mxu0 0
      %477 = vmatprep.subr.bf16.mxu0 0
      %478 = vmatpush1.bf16.msra.mxu0 0
      %479 = vmatprep.subr.bf16.mxu0 0
      %480 = vmatpush1.bf16.msra.mxu0 0
      %481 = vmatprep.subr.bf16.mxu0 0
      %482 = vmatpush1.bf16.msra.mxu0 0
      %483 = vmatprep.subr.bf16.mxu0 0
      %484 = vmatpush1.bf16.msra.mxu0 0
      %485 = vmatprep.subr.bf16.mxu0 0
      %486 = vmatpush1.bf16.msra.mxu0 0
      %487 = vmatprep.subr.bf16.mxu0 0
      %488 = vmatpush1.bf16.msra.mxu0 0
      %489 = vmatprep.subr.bf16.mxu0 0
      %490 = vmatpush1.bf16.msra.mxu0 0
      %491 = vmatprep.subr.bf16.mxu0 0
      %492 = vmatpush1.bf16.msra.mxu0 0
      %493 = vmatprep.subr.bf16.mxu0 0
      %494 = vmatpush1.bf16.msra.mxu0 0
      %495 = vmatprep.subr.bf16.mxu0 0
      %496 = vmatpush1.bf16.msra.mxu0 0
      %497 = vmatprep.subr.bf16.mxu0 0
      %498 = vmatpush1.bf16.msra.mxu0 0
      %499 = vmatprep.subr.bf16.mxu0 0
      %500 = vmatpush1.bf16.msra.mxu0 0
      %501 = vmatprep.subr.bf16.mxu0 0
      %502 = vmatpush1.bf16.msra.mxu0 0
      %503 = vmatprep.subr.bf16.mxu0 0
      %504 = vmatpush1.bf16.msra.mxu0 0
      %505 = vmatprep.mubr.bf16.mxu0 0
      %506 = vmatmul.mubr.bf16.gmra.mrb[0].mxu0 %v426
      %v507 = vpop.f32.mrb[0].mxu0
      %v508 = vadd.f32 %v416, %v507
      %v509 = vpop.f32.mrb[0].mxu0
      %v510 = vpop.f32.mrb[0].mxu0
      %v511 = vadd.f32 %v416, %v510
      %v512 = vpop.f32.mrb[0].mxu0
      %513 = vmatprep.mubr.bf16.mxu0 0
      %514 = vmatmul.mubr.bf16.gmra.mrb[0].mxu0 %v429
      %v515 = vpop.f32.mrb[0].mxu0
      %v516 = vadd.f32 %v416, %v515
      %v517 = vpop.f32.mrb[0].mxu0
      %v518 = vpop.f32.mrb[0].mxu0
      %v519 = vadd.f32 %v416, %v518
      %v520 = vpop.f32.mrb[0].mxu0
      %521 = vmatprep.mubr.bf16.mxu0 0
      %522 = vmatmul.mubr.bf16.gmra.mrb[0].mxu0 %v432
      %v523 = vpop.f32.mrb[0].mxu0
      %v524 = vadd.f32 %v416, %v523
      %v525 = vpop.f32.mrb[0].mxu0
      %v526 = vpop.f32.mrb[0].mxu0
      %v527 = vadd.f32 %v416, %v526
      %v528 = vpop.f32.mrb[0].mxu0
      %529 = vmatprep.mubr.bf16.mxu0 0
      %530 = vmatmul.mubr.bf16.gmra.mrb[0].mxu0 %v435
      %v531 = vpop.f32.mrb[0].mxu0
      %v532 = vadd.f32 %v416, %v531
      %v533 = vpop.f32.mrb[0].mxu0
      %v534 = vpop.f32.mrb[0].mxu0
      %v535 = vadd.f32 %v416, %v534
      %v536 = vpop.f32.mrb[0].mxu0
      %537 = vmatprep.mubr.bf16.mxu0 0
      %538 = vmatmul.mubr.bf16.gmra.mrb[0].mxu0 %v438
      %v539 = vpop.f32.mrb[0].mxu0
      %v540 = vadd.f32 %v416, %v539
      %v541 = vpop.f32.mrb[0].mxu0
      %v542 = vpop.f32.mrb[0].mxu0
      %v543 = vadd.f32 %v416, %v542
      %v544 = vpop.f32.mrb[0].mxu0
      %545 = vmatprep.mubr.bf16.mxu0 0
      %546 = vmatmul.mubr.bf16.gmra.mrb[0].mxu0 %v441
      %v547 = vpop.f32.mrb[0].mxu0
      %v548 = vadd.f32 %v416, %v547
      %v549 = vpop.f32.mrb[0].mxu0
      %v550 = vpop.f32.mrb[0].mxu0
      %v551 = vadd.f32 %v416, %v550
      %v552 = vpop.f32.mrb[0].mxu0
      %553 = vmatprep.mubr.bf16.mxu0 0
      %554 = vmatmul.mubr.bf16.gmra.mrb[0].mxu0 %v444
      %v555 = vpop.f32.mrb[0].mxu0
      %v556 = vadd.f32 %v416, %v555
      %v557 = vpop.f32.mrb[0].mxu0
      %v558 = vpop.f32.mrb[0].mxu0
      %v559 = vadd.f32 %v416, %v558
      %v560 = vpop.f32.mrb[0].mxu0
      %561 = vmatprep.mubr.bf16.mxu0 0
      %562 = vmatmul.mubr.bf16.gmra.mrb[0].mxu0 %v447
      %v563 = vpop.f32.mrb[0].mxu0
      %v564 = vadd.f32 %v416, %v563
      %v565 = vpop.f32.mrb[0].mxu0
      %v566 = vpop.f32.mrb[0].mxu0
      %v567 = vadd.f32 %v416, %v566
      %v568 = vpop.f32.mrb[0].mxu0
      %569 = vmatprep.mubr.bf16.mxu0 0
      %570 = vmatmul.mubr.bf16.gmra.mrb[0].mxu0 %v450
      %v571 = vpop.f32.mrb[0].mxu0
      %v572 = vadd.f32 %v416, %v571
      %v573 = vpop.f32.mrb[0].mxu0
      %v574 = vpop.f32.mrb[0].mxu0
      %v575 = vadd.f32 %v416, %v574
      %v576 = vpop.f32.mrb[0].mxu0
      %577 = vmatprep.mubr.bf16.mxu0 0
      %578 = vmatmul.mubr.bf16.gmra.mrb[0].mxu0 %v453
      %v579 = vpop.f32.mrb[0].mxu0
      %v580 = vadd.f32 %v416, %v579
      %v581 = vpop.f32.mrb[0].mxu0
      %v582 = vpop.f32.mrb[0].mxu0
      %v583 = vadd.f32 %v416, %v582
      %v584 = vpop.f32.mrb[0].mxu0
      %585 = vmatprep.mubr.bf16.mxu0 0
      %586 = vmatmul.mubr.bf16.gmra.mrb[0].mxu0 %v456
      %v587 = vpop.f32.mrb[0].mxu0
      %v588 = vadd.f32 %v416, %v587
      %v589 = vpop.f32.mrb[0].mxu0
      %v590 = vpop.f32.mrb[0].mxu0
      %v591 = vadd.f32 %v416, %v590
      %v592 = vpop.f32.mrb[0].mxu0
      %593 = vmatprep.mubr.bf16.mxu0 0
      %594 = vmatmul.mubr.bf16.gmra.mrb[0].mxu0 %v459
      %v595 = vpop.f32.mrb[0].mxu0
      %v596 = vadd.f32 %v416, %v595
      %v597 = vpop.f32.mrb[0].mxu0
      %v598 = vpop.f32.mrb[0].mxu0
      %v599 = vadd.f32 %v416, %v598
      %v600 = vpop.f32.mrb[0].mxu0
      %601 = vmatprep.mubr.bf16.mxu0 0
      %602 = vmatmul.mubr.bf16.gmra.mrb[0].mxu0 %v462
      %v603 = vpop.f32.mrb[0].mxu0
      %v604 = vadd.f32 %v416, %v603
      %v605 = vpop.f32.mrb[0].mxu0
      %v606 = vpop.f32.mrb[0].mxu0
      %v607 = vadd.f32 %v416, %v606
      %v608 = vpop.f32.mrb[0].mxu0
      %609 = vmatprep.mubr.bf16.mxu0 0
      %610 = vmatmul.mubr.bf16.gmra.mrb[0].mxu0 %v465
      %v611 = vpop.f32.mrb[0].mxu0
      %v612 = vadd.f32 %v416, %v611
      %v613 = vpop.f32.mrb[0].mxu0
      %v614 = vpop.f32.mrb[0].mxu0
      %v615 = vadd.f32 %v416, %v614
      %v616 = vpop.f32.mrb[0].mxu0
      %617 = vmatprep.mubr.bf16.mxu0 0
      %618 = vmatmul.mubr.bf16.gmra.mrb[0].mxu0 %v468
      %v619 = vpop.f32.mrb[0].mxu0
      %v620 = vadd.f32 %v416, %v619
      %v621 = vpop.f32.mrb[0].mxu0
      %v622 = vpop.f32.mrb[0].mxu0
      %v623 = vadd.f32 %v416, %v622
      %v624 = vpop.f32.mrb[0].mxu0
      %625 = vmatprep.mubr.bf16.mxu0 0
      %626 = vmatmul.mubr.bf16.gmra.mrb[0].mxu0 %v471
      %v627 = vpop.f32.mrb[0].mxu0
      %v628 = vadd.f32 %v416, %v627
      %v629 = vpop.f32.mrb[0].mxu0
      %v630 = vpop.f32.mrb[0].mxu0
      %v631 = vadd.f32 %v416, %v630
      %v632 = vpop.f32.mrb[0].mxu0
      %633 = vdwg.mxu0
      %v634 = vld [vmem:[%s3] sm:$0xff]
      %v635 = vld [vmem:[%s3 + $0x8] sm:$0xff]
      %v636 = vld [vmem:[%s3 + $0x10] sm:$0xff]
      %v637 = vld [vmem:[%s3 + $0x18] sm:$0xff]
      %v638 = vld [vmem:[%s3 + $0x20] sm:$0xff]
      %v639 = vld [vmem:[%s3 + $0x28] sm:$0xff]
      %v640 = vld [vmem:[%s3 + $0x30] sm:$0xff]
      %v641 = vld [vmem:[%s3 + $0x38] sm:$0xff]
      %v642 = vadd.f32 %v508, %v634
      %v643 = vadd.f32 %v511, %v635
      %v644 = vadd.f32 %v516, %v636
      %v645 = vadd.f32 %v519, %v637
      %v646 = vadd.f32 %v524, %v638
      %v647 = vadd.f32 %v527, %v639
      %v648 = vadd.f32 %v532, %v640
      %v649 = vadd.f32 %v535, %v641
      %v650 = vadd.f32 %v540, %v634
      %v651 = vadd.f32 %v543, %v635
      %v652 = vadd.f32 %v548, %v636
      %v653 = vadd.f32 %v551, %v637
      %v654 = vadd.f32 %v556, %v638
      %v655 = vadd.f32 %v559, %v639
      %v656 = vadd.f32 %v564, %v640
      %v657 = vadd.f32 %v567, %v641
      %v658 = vadd.f32 %v572, %v634
      %v659 = vadd.f32 %v575, %v635
      %v660 = vadd.f32 %v580, %v636
      %v661 = vadd.f32 %v583, %v637
      %v662 = vadd.f32 %v588, %v638
      %v663 = vadd.f32 %v591, %v639
      %v664 = vadd.f32 %v596, %v640
      %v665 = vadd.f32 %v599, %v641
      %v666 = vadd.f32 %v604, %v634
      %v667 = vadd.f32 %v607, %v635
      %v668 = vadd.f32 %v612, %v636
      %v669 = vadd.f32 %v615, %v637
      %v670 = vadd.f32 %v620, %v638
      %v671 = vadd.f32 %v623, %v639
      %v672 = vadd.f32 %v628, %v640
      %v673 = vadd.f32 %v631, %v641
      %v674 = vld [vmem:[%s4] sm:$0xff]
      %v675 = vld [vmem:[%s4 + $0x8] sm:$0xff]
      %v676 = vld [vmem:[%s4 + $0x10] sm:$0xff]
      %v677 = vld [vmem:[%s4 + $0x18] sm:$0xff]
      %v678 = vld [vmem:[%s4 + $0x20] sm:$0xff]
      %v679 = vld [vmem:[%s4 + $0x28] sm:$0xff]
      %v680 = vld [vmem:[%s4 + $0x30] sm:$0xff]
      %v681 = vld [vmem:[%s4 + $0x38] sm:$0xff]
      %690 = vrot.lane.b32.xlu0 %v674, 16
      %v691 = vpop.permute.xlu0 %690
      %692 = vrot.lane.b32.xlu0 %v675, 16
      %v693 = vpop.permute.xlu0 %692
      %694 = vrot.lane.b32.xlu0 %v676, 16
      %v695 = vpop.permute.xlu0 %694
      %696 = vrot.lane.b32.xlu0 %v677, 16
      %v697 = vpop.permute.xlu0 %696
      %698 = vrot.lane.b32.xlu0 %v678, 16
      %v699 = vpop.permute.xlu0 %698
      %700 = vrot.lane.b32.xlu0 %v679, 16
      %v701 = vpop.permute.xlu0 %700
      %702 = vrot.lane.b32.xlu0 %v680, 16
      %v703 = vpop.permute.xlu0 %702
      %704 = vrot.lane.b32.xlu0 %v681, 16
      %v705 = vpop.permute.xlu0 %704
      %v714 = vadd.f32 %v508, %v691
      %v715 = vadd.f32 %v511, %v693
      %v716 = vadd.f32 %v516, %v695
      %v717 = vadd.f32 %v519, %v697
      %v718 = vadd.f32 %v524, %v699
      %v719 = vadd.f32 %v527, %v701
      %v720 = vadd.f32 %v532, %v703
      %v721 = vadd.f32 %v535, %v705
      %v722 = vadd.f32 %v540, %v691
      %v723 = vadd.f32 %v543, %v693
      %v724 = vadd.f32 %v548, %v695
      %v725 = vadd.f32 %v551, %v697
      %v726 = vadd.f32 %v556, %v699
      %v727 = vadd.f32 %v559, %v701
      %v728 = vadd.f32 %v564, %v703
      %v729 = vadd.f32 %v567, %v705
      %v730 = vadd.f32 %v572, %v691
      %v731 = vadd.f32 %v575, %v693
      %v732 = vadd.f32 %v580, %v695
      %v733 = vadd.f32 %v583, %v697
      %v734 = vadd.f32 %v588, %v699
      %v735 = vadd.f32 %v591, %v701
      %v736 = vadd.f32 %v596, %v703
      %v737 = vadd.f32 %v599, %v705
      %v738 = vadd.f32 %v604, %v691
      %v739 = vadd.f32 %v607, %v693
      %v740 = vadd.f32 %v612, %v695
      %v741 = vadd.f32 %v615, %v697
      %v742 = vadd.f32 %v620, %v699
      %v743 = vadd.f32 %v623, %v701
      %v744 = vadd.f32 %v628, %v703
      %v745 = vadd.f32 %v631, %v705
      %v746 = vld [vmem:[%s5] sm:$0xff]
      %v747 = vld [vmem:[%s5 + $0x8] sm:$0xff]
      %v748 = vld [vmem:[%s5 + $0x10] sm:$0xff]
      %v749 = vld [vmem:[%s5 + $0x18] sm:$0xff]
      %v750 = vld [vmem:[%s5 + $0x20] sm:$0xff]
      %v751 = vld [vmem:[%s5 + $0x28] sm:$0xff]
      %v752 = vld [vmem:[%s5 + $0x30] sm:$0xff]
      %v753 = vld [vmem:[%s5 + $0x38] sm:$0xff]
      %v754 = vld [vmem:[%s5 + $0x40] sm:$0xff]
      %v755 = vld [vmem:[%s5 + $0x48] sm:$0xff]
      %v756 = vld [vmem:[%s5 + $0x50] sm:$0xff]
      %v757 = vld [vmem:[%s5 + $0x58] sm:$0xff]
      %v758 = vld [vmem:[%s5 + $0x60] sm:$0xff]
      %v759 = vld [vmem:[%s5 + $0x68] sm:$0xff]
      %v760 = vld [vmem:[%s5 + $0x70] sm:$0xff]
      %v761 = vld [vmem:[%s5 + $0x78] sm:$0xff]
      %v762 = vmul.f32 %v642, %v746
      %v763 = vmul.f32 %v643, %v747
      %v764 = vmul.f32 %v644, %v748
      %v765 = vmul.f32 %v645, %v749
      %v766 = vmul.f32 %v646, %v750
      %v767 = vmul.f32 %v647, %v751
      %v768 = vmul.f32 %v648, %v752
      %v769 = vmul.f32 %v649, %v753
      %v770 = vmul.f32 %v642, %v754
      %v771 = vmul.f32 %v643, %v755
      %v772 = vmul.f32 %v644, %v756
      %v773 = vmul.f32 %v645, %v757
      %v774 = vmul.f32 %v646, %v758
      %v775 = vmul.f32 %v647, %v759
      %v776 = vmul.f32 %v648, %v760
      %v777 = vmul.f32 %v649, %v761
      %v778 = vmul.f32 %v650, %v746
      %v779 = vmul.f32 %v651, %v747
      %v780 = vmul.f32 %v652, %v748
      %v781 = vmul.f32 %v653, %v749
      %v782 = vmul.f32 %v654, %v750
      %v783 = vmul.f32 %v655, %v751
      %v784 = vmul.f32 %v656, %v752
      %v785 = vmul.f32 %v657, %v753
      %v786 = vmul.f32 %v650, %v754
      %v787 = vmul.f32 %v651, %v755
      %v788 = vmul.f32 %v652, %v756
      %v789 = vmul.f32 %v653, %v757
      %v790 = vmul.f32 %v654, %v758
      %v791 = vmul.f32 %v655, %v759
      %v792 = vmul.f32 %v656, %v760
      %v793 = vmul.f32 %v657, %v761
      %v794 = vmul.f32 %v658, %v746
      %v795 = vmul.f32 %v659, %v747
      %v796 = vmul.f32 %v660, %v748
      %v797 = vmul.f32 %v661, %v749
      %v798 = vmul.f32 %v662, %v750
      %v799 = vmul.f32 %v663, %v751
      %v800 = vmul.f32 %v664, %v752
      %v801 = vmul.f32 %v665, %v753
      %v802 = vmul.f32 %v658, %v754
      %v803 = vmul.f32 %v659, %v755
      %v804 = vmul.f32 %v660, %v756
      %v805 = vmul.f32 %v661, %v757
      %v806 = vmul.f32 %v662, %v758
      %v807 = vmul.f32 %v663, %v759
      %v808 = vmul.f32 %v664, %v760
      %v809 = vmul.f32 %v665, %v761
      %v810 = vmul.f32 %v666, %v746
      %v811 = vmul.f32 %v667, %v747
      %v812 = vmul.f32 %v668, %v748
      %v813 = vmul.f32 %v669, %v749
      %v814 = vmul.f32 %v670, %v750
      %v815 = vmul.f32 %v671, %v751
      %v816 = vmul.f32 %v672, %v752
      %v817 = vmul.f32 %v673, %v753
      %v818 = vmul.f32 %v666, %v754
      %v819 = vmul.f32 %v667, %v755
      %v820 = vmul.f32 %v668, %v756
      %v821 = vmul.f32 %v669, %v757
      %v822 = vmul.f32 %v670, %v758
      %v823 = vmul.f32 %v671, %v759
      %v824 = vmul.f32 %v672, %v760
      %v825 = vmul.f32 %v673, %v761
      %v826 = vpack.c.bf16 %v763, %v762
      %v827 = vpack.c.bf16 %v765, %v764
      %v828 = vpack.c.bf16 %v767, %v766
      %v829 = vpack.c.bf16 %v769, %v768
      %v830 = vpack.c.bf16 %v771, %v770
      %v831 = vpack.c.bf16 %v773, %v772
      %v832 = vpack.c.bf16 %v775, %v774
      %v833 = vpack.c.bf16 %v777, %v776
      %v834 = vpack.c.bf16 %v779, %v778
      %v835 = vpack.c.bf16 %v781, %v780
      %v836 = vpack.c.bf16 %v783, %v782
      %v837 = vpack.c.bf16 %v785, %v784
      %v838 = vpack.c.bf16 %v787, %v786
      %v839 = vpack.c.bf16 %v789, %v788
      %v840 = vpack.c.bf16 %v791, %v790
      %v841 = vpack.c.bf16 %v793, %v792
      %v842 = vpack.c.bf16 %v795, %v794
      %v843 = vpack.c.bf16 %v797, %v796
      %v844 = vpack.c.bf16 %v799, %v798
      %v845 = vpack.c.bf16 %v801, %v800
      %v846 = vpack.c.bf16 %v803, %v802
      %v847 = vpack.c.bf16 %v805, %v804
      %v848 = vpack.c.bf16 %v807, %v806
      %v849 = vpack.c.bf16 %v809, %v808
      %v850 = vpack.c.bf16 %v811, %v810
      %v851 = vpack.c.bf16 %v813, %v812
      %v852 = vpack.c.bf16 %v815, %v814
      %v853 = vpack.c.bf16 %v817, %v816
      %v854 = vpack.c.bf16 %v819, %v818
      %v855 = vpack.c.bf16 %v821, %v820
      %v856 = vpack.c.bf16 %v823, %v822
      %v857 = vpack.c.bf16 %v825, %v824
      %v858 = vpack.c.bf16 %v715, %v714
      %v859 = vpack.c.bf16 %v717, %v716
      %v860 = vpack.c.bf16 %v719, %v718
      %v861 = vpack.c.bf16 %v721, %v720
      %v862 = vpack.c.bf16 %v723, %v722
      %v863 = vpack.c.bf16 %v725, %v724
      %v864 = vpack.c.bf16 %v727, %v726
      %v865 = vpack.c.bf16 %v729, %v728
      %v866 = vpack.c.bf16 %v731, %v730
      %v867 = vpack.c.bf16 %v733, %v732
      %v868 = vpack.c.bf16 %v735, %v734
      %v869 = vpack.c.bf16 %v737, %v736
      %v870 = vpack.c.bf16 %v739, %v738
      %v871 = vpack.c.bf16 %v741, %v740
      %v872 = vpack.c.bf16 %v743, %v742
      %v873 = vpack.c.bf16 %v745, %v744
      %v874 = vpack.c.bf16 %v511, %v508
      %v875 = vpack.c.bf16 %v519, %v516
      %v876 = vpack.c.bf16 %v527, %v524
      %v877 = vpack.c.bf16 %v535, %v532
      %v878 = vpack.c.bf16 %v543, %v540
      %v879 = vpack.c.bf16 %v551, %v548
      %v880 = vpack.c.bf16 %v559, %v556
      %v881 = vpack.c.bf16 %v567, %v564
      %v882 = vpack.c.bf16 %v575, %v572
      %v883 = vpack.c.bf16 %v583, %v580
      %v884 = vpack.c.bf16 %v591, %v588
      %v885 = vpack.c.bf16 %v599, %v596
      %v886 = vpack.c.bf16 %v607, %v604
      %v887 = vpack.c.bf16 %v615, %v612
      %v888 = vpack.c.bf16 %v623, %v620
      %v889 = vpack.c.bf16 %v631, %v628
      %894 = vrot.lane.b32.xlu0 %v858, 112
      %v895 = vpop.permute.xlu0 %894
      %896 = vrot.lane.b32.xlu0 %v859, 112
      %v897 = vpop.permute.xlu0 %896
      %898 = vrot.lane.b32.xlu0 %v860, 112
      %v899 = vpop.permute.xlu0 %898
      %900 = vrot.lane.b32.xlu0 %v861, 112
      %v901 = vpop.permute.xlu0 %900
      %v903 = vsel %vm424, %v826, 0
      %v906 = vsel %vm424, %v827, 0
      %v909 = vsel %vm424, %v828, 0
      %v912 = vsel %vm424, %v829, 0
      %v915 = vsel %vm424, %v830, 0
      %v918 = vsel %vm424, %v831, 0
      %v921 = vsel %vm424, %v832, 0
      %v924 = vsel %vm424, %v833, 0
      %v927 = vsel %vm424, %v895, 0
      %v930 = vsel %vm424, %v897, 0
      %v933 = vsel %vm424, %v899, 0
      %v936 = vsel %vm424, %v901, 0
      %938 = vmatprep.subr.bf16.mxu0 0
      %939 = vmatpush1.bf16.xpose.msra.mxu0 %v927
      %940 = vmatprep.subr.bf16.mxu0 0
      %941 = vmatpush1.bf16.xpose.msra.mxu0 %v930
      %942 = vmatprep.subr.bf16.mxu0 0
      %943 = vmatpush1.bf16.xpose.msra.mxu0 %v933
      %944 = vmatprep.subr.bf16.mxu0 0
      %945 = vmatpush1.bf16.xpose.msra.mxu0 %v936
      %946 = vmatprep.subr.bf16.mxu0 0
      %947 = vmatpush1.bf16.xpose.msra.mxu0 0
      %948 = vmatprep.subr.bf16.mxu0 0
      %949 = vmatpush1.bf16.xpose.msra.mxu0 0
      %950 = vmatprep.subr.bf16.mxu0 0
      %951 = vmatpush1.bf16.xpose.msra.mxu0 0
      %952 = vmatprep.subr.bf16.mxu0 0
      %953 = vmatpush1.bf16.xpose.msra.mxu0 0
      %954 = vmatprep.subr.bf16.mxu0 0
      %955 = vmatpush1.bf16.xpose.msra.mxu0 0
      %956 = vmatprep.subr.bf16.mxu0 0
      %957 = vmatpush1.bf16.xpose.msra.mxu0 0
      %958 = vmatprep.subr.bf16.mxu0 0
      %959 = vmatpush1.bf16.xpose.msra.mxu0 0
      %960 = vmatprep.subr.bf16.mxu0 0
      %961 = vmatpush1.bf16.xpose.msra.mxu0 0
      %962 = vmatprep.subr.bf16.mxu0 0
      %963 = vmatpush1.bf16.xpose.msra.mxu0 0
      %964 = vmatprep.subr.bf16.mxu0 0
      %965 = vmatpush1.bf16.xpose.msra.mxu0 0
      %966 = vmatprep.subr.bf16.mxu0 0
      %967 = vmatpush1.bf16.xpose.msra.mxu0 0
      %968 = vmatprep.subr.bf16.mxu0 0
      %969 = vmatpush1.bf16.xpose.msra.mxu0 0
      %970 = vmatprep.mubr.bf16.mxu0 0
      %971 = vmatmul.mubr.bf16.gmra.mrb[0].mxu0 %v903
      %v972 = vpop.f32.mrb[0].mxu0
      %v973 = vadd.f32 0.0, %v972
      %v974 = vpop.f32.mrb[0].mxu0
      %v975 = vpop.f32.mrb[0].mxu0
      %v976 = vadd.f32 0.0, %v975
      %v977 = vpop.f32.mrb[0].mxu0
      %978 = vmatprep.mubr.bf16.mxu0 0
      %979 = vmatmul.mubr.bf16.gmra.mrb[0].mxu0 %v906
      %v980 = vpop.f32.mrb[0].mxu0
      %v981 = vadd.f32 0.0, %v980
      %v982 = vpop.f32.mrb[0].mxu0
      %v983 = vpop.f32.mrb[0].mxu0
      %v984 = vadd.f32 0.0, %v983
      %v985 = vpop.f32.mrb[0].mxu0
      %986 = vmatprep.mubr.bf16.mxu0 0
      %987 = vmatmul.mubr.bf16.gmra.mrb[0].mxu0 %v909
      %v988 = vpop.f32.mrb[0].mxu0
      %v989 = vadd.f32 0.0, %v988
      %v990 = vpop.f32.mrb[0].mxu0
      %v991 = vpop.f32.mrb[0].mxu0
      %v992 = vadd.f32 0.0, %v991
      %v993 = vpop.f32.mrb[0].mxu0
      %994 = vmatprep.mubr.bf16.mxu0 0
      %995 = vmatmul.mubr.bf16.gmra.mrb[0].mxu0 %v912
      %v996 = vpop.f32.mrb[0].mxu0
      %v997 = vadd.f32 0.0, %v996
      %v998 = vpop.f32.mrb[0].mxu0
      %v999 = vpop.f32.mrb[0].mxu0
      %v1000 = vadd.f32 0.0, %v999
      %v1001 = vpop.f32.mrb[0].mxu0
      %1002 = vmatprep.mubr.bf16.mxu0 0
      %1003 = vmatmul.mubr.bf16.gmra.mrb[0].mxu0 %v915
      %v1004 = vpop.f32.mrb[0].mxu0
      %v1005 = vadd.f32 0.0, %v1004
      %v1006 = vpop.f32.mrb[0].mxu0
      %v1007 = vpop.f32.mrb[0].mxu0
      %v1008 = vadd.f32 0.0, %v1007
      %v1009 = vpop.f32.mrb[0].mxu0
      %1010 = vmatprep.mubr.bf16.mxu0 0
      %1011 = vmatmul.mubr.bf16.gmra.mrb[0].mxu0 %v918
      %v1012 = vpop.f32.mrb[0].mxu0
      %v1013 = vadd.f32 0.0, %v1012
      %v1014 = vpop.f32.mrb[0].mxu0
      %v1015 = vpop.f32.mrb[0].mxu0
      %v1016 = vadd.f32 0.0, %v1015
      %v1017 = vpop.f32.mrb[0].mxu0
      %1018 = vmatprep.mubr.bf16.mxu0 0
      %1019 = vmatmul.mubr.bf16.gmra.mrb[0].mxu0 %v921
      %v1020 = vpop.f32.mrb[0].mxu0
      %v1021 = vadd.f32 0.0, %v1020
      %v1022 = vpop.f32.mrb[0].mxu0
      %v1023 = vpop.f32.mrb[0].mxu0
      %v1024 = vadd.f32 0.0, %v1023
      %v1025 = vpop.f32.mrb[0].mxu0
      %1026 = vmatprep.mubr.bf16.mxu0 0
      %1027 = vmatmul.mubr.bf16.gmra.mrb[0].mxu0 %v924
      %v1028 = vpop.f32.mrb[0].mxu0
      %v1029 = vadd.f32 0.0, %v1028
      %v1030 = vpop.f32.mrb[0].mxu0
      %v1031 = vpop.f32.mrb[0].mxu0
      %v1032 = vadd.f32 0.0, %v1031
      %v1033 = vpop.f32.mrb[0].mxu0
      %1034 = vdwg.mxu0
      %1039 = vrot.lane.b32.xlu0 %v862, 112
      %v1040 = vpop.permute.xlu0 %1039
      %1041 = vrot.lane.b32.xlu0 %v863, 112
      %v1042 = vpop.permute.xlu0 %1041
      %1043 = vrot.lane.b32.xlu0 %v864, 112
      %v1044 = vpop.permute.xlu0 %1043
      %1045 = vrot.lane.b32.xlu0 %v865, 112
      %v1046 = vpop.permute.xlu0 %1045
      %v1048 = vsel %vm424, %v834, 0
      %v1051 = vsel %vm424, %v835, 0
      %v1054 = vsel %vm424, %v836, 0
      %v1057 = vsel %vm424, %v837, 0
      %v1060 = vsel %vm424, %v838, 0
      %v1063 = vsel %vm424, %v839, 0
      %v1066 = vsel %vm424, %v840, 0
      %v1069 = vsel %vm424, %v841, 0
      %v1072 = vsel %vm424, %v1040, 0
      %v1075 = vsel %vm424, %v1042, 0
      %v1078 = vsel %vm424, %v1044, 0
      %v1081 = vsel %vm424, %v1046, 0
      %1083 = vmatprep.subr.bf16.mxu0 0
      %1084 = vmatpush1.bf16.xpose.msra.mxu0 %v1072
      %1085 = vmatprep.subr.bf16.mxu0 0
      %1086 = vmatpush1.bf16.xpose.msra.mxu0 %v1075
      %1087 = vmatprep.subr.bf16.mxu0 0
      %1088 = vmatpush1.bf16.xpose.msra.mxu0 %v1078
      %1089 = vmatprep.subr.bf16.mxu0 0
      %1090 = vmatpush1.bf16.xpose.msra.mxu0 %v1081
      %1091 = vmatprep.subr.bf16.mxu0 0
      %1092 = vmatpush1.bf16.xpose.msra.mxu0 0
      %1093 = vmatprep.subr.bf16.mxu0 0
      %1094 = vmatpush1.bf16.xpose.msra.mxu0 0
      %1095 = vmatprep.subr.bf16.mxu0 0
      %1096 = vmatpush1.bf16.xpose.msra.mxu0 0
      %1097 = vmatprep.subr.bf16.mxu0 0
      %1098 = vmatpush1.bf16.xpose.msra.mxu0 0
      %1099 = vmatprep.subr.bf16.mxu0 0
      %1100 = vmatpush1.bf16.xpose.msra.mxu0 0
      %1101 = vmatprep.subr.bf16.mxu0 0
      %1102 = vmatpush1.bf16.xpose.msra.mxu0 0
      %1103 = vmatprep.subr.bf16.mxu0 0
      %1104 = vmatpush1.bf16.xpose.msra.mxu0 0
      %1105 = vmatprep.subr.bf16.mxu0 0
      %1106 = vmatpush1.bf16.xpose.msra.mxu0 0
      %1107 = vmatprep.subr.bf16.mxu0 0
      %1108 = vmatpush1.bf16.xpose.msra.mxu0 0
      %1109 = vmatprep.subr.bf16.mxu0 0
      %1110 = vmatpush1.bf16.xpose.msra.mxu0 0
      %1111 = vmatprep.subr.bf16.mxu0 0
      %1112 = vmatpush1.bf16.xpose.msra.mxu0 0
      %1113 = vmatprep.subr.bf16.mxu0 0
      %1114 = vmatpush1.bf16.xpose.msra.mxu0 0
      %1115 = vmatprep.mubr.bf16.mxu0 0
      %1116 = vmatmul.mubr.bf16.gmra.mrb[0].mxu0 %v1048
      %v1117 = vpop.f32.mrb[0].mxu0
      %v1118 = vadd.f32 0.0, %v1117
      %v1119 = vpop.f32.mrb[0].mxu0
      %v1120 = vpop.f32.mrb[0].mxu0
      %v1121 = vadd.f32 0.0, %v1120
      %v1122 = vpop.f32.mrb[0].mxu0
      %1123 = vmatprep.mubr.bf16.mxu0 0
      %1124 = vmatmul.mubr.bf16.gmra.mrb[0].mxu0 %v1051
      %v1125 = vpop.f32.mrb[0].mxu0
      %v1126 = vadd.f32 0.0, %v1125
      %v1127 = vpop.f32.mrb[0].mxu0
      %v1128 = vpop.f32.mrb[0].mxu0
      %v1129 = vadd.f32 0.0, %v1128
      %v1130 = vpop.f32.mrb[0].mxu0
      %1131 = vmatprep.mubr.bf16.mxu0 0
      %1132 = vmatmul.mubr.bf16.gmra.mrb[0].mxu0 %v1054
      %v1133 = vpop.f32.mrb[0].mxu0
      %v1134 = vadd.f32 0.0, %v1133
      %v1135 = vpop.f32.mrb[0].mxu0
      %v1136 = vpop.f32.mrb[0].mxu0
      %v1137 = vadd.f32 0.0, %v1136
      %v1138 = vpop.f32.mrb[0].mxu0
      %1139 = vmatprep.mubr.bf16.mxu0 0
      %1140 = vmatmul.mubr.bf16.gmra.mrb[0].mxu0 %v1057
      %v1141 = vpop.f32.mrb[0].mxu0
      %v1142 = vadd.f32 0.0, %v1141
      %v1143 = vpop.f32.mrb[0].mxu0
      %v1144 = vpop.f32.mrb[0].mxu0
      %v1145 = vadd.f32 0.0, %v1144
      %v1146 = vpop.f32.mrb[0].mxu0
      %1147 = vmatprep.mubr.bf16.mxu0 0
      %1148 = vmatmul.mubr.bf16.gmra.mrb[0].mxu0 %v1060
      %v1149 = vpop.f32.mrb[0].mxu0
      %v1150 = vadd.f32 0.0, %v1149
      %v1151 = vpop.f32.mrb[0].mxu0
      %v1152 = vpop.f32.mrb[0].mxu0
      %v1153 = vadd.f32 0.0, %v1152
      %v1154 = vpop.f32.mrb[0].mxu0
      %1155 = vmatprep.mubr.bf16.mxu0 0
      %1156 = vmatmul.mubr.bf16.gmra.mrb[0].mxu0 %v1063
      %v1157 = vpop.f32.mrb[0].mxu0
      %v1158 = vadd.f32 0.0, %v1157
      %v1159 = vpop.f32.mrb[0].mxu0
      %v1160 = vpop.f32.mrb[0].mxu0
      %v1161 = vadd.f32 0.0, %v1160
      %v1162 = vpop.f32.mrb[0].mxu0
      %1163 = vmatprep.mubr.bf16.mxu0 0
      %1164 = vmatmul.mubr.bf16.gmra.mrb[0].mxu0 %v1066
      %v1165 = vpop.f32.mrb[0].mxu0
      %v1166 = vadd.f32 0.0, %v1165
      %v1167 = vpop.f32.mrb[0].mxu0
      %v1168 = vpop.f32.mrb[0].mxu0
      %v1169 = vadd.f32 0.0, %v1168
      %v1170 = vpop.f32.mrb[0].mxu0
      %1171 = vmatprep.mubr.bf16.mxu0 0
      %1172 = vmatmul.mubr.bf16.gmra.mrb[0].mxu0 %v1069
      %v1173 = vpop.f32.mrb[0].mxu0
      %v1174 = vadd.f32 0.0, %v1173
      %v1175 = vpop.f32.mrb[0].mxu0
      %v1176 = vpop.f32.mrb[0].mxu0
      %v1177 = vadd.f32 0.0, %v1176
      %v1178 = vpop.f32.mrb[0].mxu0
      %1179 = vdwg.mxu0
      %1184 = vrot.lane.b32.xlu0 %v866, 112
      %v1185 = vpop.permute.xlu0 %1184
      %1186 = vrot.lane.b32.xlu0 %v867, 112
      %v1187 = vpop.permute.xlu0 %1186
      %1188 = vrot.lane.b32.xlu0 %v868, 112
      %v1189 = vpop.permute.xlu0 %1188
      %1190 = vrot.lane.b32.xlu0 %v869, 112
      %v1191 = vpop.permute.xlu0 %1190
      %v1193 = vsel %vm424, %v842, 0
      %v1196 = vsel %vm424, %v843, 0
      %v1199 = vsel %vm424, %v844, 0
      %v1202 = vsel %vm424, %v845, 0
      %v1205 = vsel %vm424, %v846, 0
      %v1208 = vsel %vm424, %v847, 0
      %v1211 = vsel %vm424, %v848, 0
      %v1214 = vsel %vm424, %v849, 0
      %v1217 = vsel %vm424, %v1185, 0
      %v1220 = vsel %vm424, %v1187, 0
      %v1223 = vsel %vm424, %v1189, 0
      %v1226 = vsel %vm424, %v1191, 0
      %1228 = vmatprep.subr.bf16.mxu0 0
      %1229 = vmatpush1.bf16.xpose.msra.mxu0 %v1217
      %1230 = vmatprep.subr.bf16.mxu0 0
      %1231 = vmatpush1.bf16.xpose.msra.mxu0 %v1220
      %1232 = vmatprep.subr.bf16.mxu0 0
      %1233 = vmatpush1.bf16.xpose.msra.mxu0 %v1223
      %1234 = vmatprep.subr.bf16.mxu0 0
      %1235 = vmatpush1.bf16.xpose.msra.mxu0 %v1226
      %1236 = vmatprep.subr.bf16.mxu0 0
      %1237 = vmatpush1.bf16.xpose.msra.mxu0 0
      %1238 = vmatprep.subr.bf16.mxu0 0
      %1239 = vmatpush1.bf16.xpose.msra.mxu0 0
      %1240 = vmatprep.subr.bf16.mxu0 0
      %1241 = vmatpush1.bf16.xpose.msra.mxu0 0
      %1242 = vmatprep.subr.bf16.mxu0 0
      %1243 = vmatpush1.bf16.xpose.msra.mxu0 0
      %1244 = vmatprep.subr.bf16.mxu0 0
      %1245 = vmatpush1.bf16.xpose.msra.mxu0 0
      %1246 = vmatprep.subr.bf16.mxu0 0
      %1247 = vmatpush1.bf16.xpose.msra.mxu0 0
      %1248 = vmatprep.subr.bf16.mxu0 0
      %1249 = vmatpush1.bf16.xpose.msra.mxu0 0
      %1250 = vmatprep.subr.bf16.mxu0 0
      %1251 = vmatpush1.bf16.xpose.msra.mxu0 0
      %1252 = vmatprep.subr.bf16.mxu0 0
      %1253 = vmatpush1.bf16.xpose.msra.mxu0 0
      %1254 = vmatprep.subr.bf16.mxu0 0
      %1255 = vmatpush1.bf16.xpose.msra.mxu0 0
      %1256 = vmatprep.subr.bf16.mxu0 0
      %1257 = vmatpush1.bf16.xpose.msra.mxu0 0
      %1258 = vmatprep.subr.bf16.mxu0 0
      %1259 = vmatpush1.bf16.xpose.msra.mxu0 0
      %1260 = vmatprep.mubr.bf16.mxu0 0
      %1261 = vmatmul.mubr.bf16.gmra.mrb[0].mxu0 %v1193
      %v1262 = vpop.f32.mrb[0].mxu0
      %v1263 = vadd.f32 0.0, %v1262
      %v1264 = vpop.f32.mrb[0].mxu0
      %v1265 = vpop.f32.mrb[0].mxu0
      %v1266 = vadd.f32 0.0, %v1265
      %v1267 = vpop.f32.mrb[0].mxu0
      %1268 = vmatprep.mubr.bf16.mxu0 0
      %1269 = vmatmul.mubr.bf16.gmra.mrb[0].mxu0 %v1196
      %v1270 = vpop.f32.mrb[0].mxu0
      %v1271 = vadd.f32 0.0, %v1270
      %v1272 = vpop.f32.mrb[0].mxu0
      %v1273 = vpop.f32.mrb[0].mxu0
      %v1274 = vadd.f32 0.0, %v1273
      %v1275 = vpop.f32.mrb[0].mxu0
      %1276 = vmatprep.mubr.bf16.mxu0 0
      %1277 = vmatmul.mubr.bf16.gmra.mrb[0].mxu0 %v1199
      %v1278 = vpop.f32.mrb[0].mxu0
      %v1279 = vadd.f32 0.0, %v1278
      %v1280 = vpop.f32.mrb[0].mxu0
      %v1281 = vpop.f32.mrb[0].mxu0
      %v1282 = vadd.f32 0.0, %v1281
      %v1283 = vpop.f32.mrb[0].mxu0
      %1284 = vmatprep.mubr.bf16.mxu0 0
      %1285 = vmatmul.mubr.bf16.gmra.mrb[0].mxu0 %v1202
      %v1286 = vpop.f32.mrb[0].mxu0
      %v1287 = vadd.f32 0.0, %v1286
      %v1288 = vpop.f32.mrb[0].mxu0
      %v1289 = vpop.f32.mrb[0].mxu0
      %v1290 = vadd.f32 0.0, %v1289
      %v1291 = vpop.f32.mrb[0].mxu0
      %1292 = vmatprep.mubr.bf16.mxu0 0
      %1293 = vmatmul.mubr.bf16.gmra.mrb[0].mxu0 %v1205
      %v1294 = vpop.f32.mrb[0].mxu0
      %v1295 = vadd.f32 0.0, %v1294
      %v1296 = vpop.f32.mrb[0].mxu0
      %v1297 = vpop.f32.mrb[0].mxu0
      %v1298 = vadd.f32 0.0, %v1297
      %v1299 = vpop.f32.mrb[0].mxu0
      %1300 = vmatprep.mubr.bf16.mxu0 0
      %1301 = vmatmul.mubr.bf16.gmra.mrb[0].mxu0 %v1208
      %v1302 = vpop.f32.mrb[0].mxu0
      %v1303 = vadd.f32 0.0, %v1302
      %v1304 = vpop.f32.mrb[0].mxu0
      %v1305 = vpop.f32.mrb[0].mxu0
      %v1306 = vadd.f32 0.0, %v1305
      %v1307 = vpop.f32.mrb[0].mxu0
      %1308 = vmatprep.mubr.bf16.mxu0 0
      %1309 = vmatmul.mubr.bf16.gmra.mrb[0].mxu0 %v1211
      %v1310 = vpop.f32.mrb[0].mxu0
      %v1311 = vadd.f32 0.0, %v1310
      %v1312 = vpop.f32.mrb[0].mxu0
      %v1313 = vpop.f32.mrb[0].mxu0
      %v1314 = vadd.f32 0.0, %v1313
      %v1315 = vpop.f32.mrb[0].mxu0
      %1316 = vmatprep.mubr.bf16.mxu0 0
      %1317 = vmatmul.mubr.bf16.gmra.mrb[0].mxu0 %v1214
      %v1318 = vpop.f32.mrb[0].mxu0
      %v1319 = vadd.f32 0.0, %v1318
      %v1320 = vpop.f32.mrb[0].mxu0
      %v1321 = vpop.f32.mrb[0].mxu0
      %v1322 = vadd.f32 0.0, %v1321
      %v1323 = vpop.f32.mrb[0].mxu0
      %1324 = vdwg.mxu0
      %1329 = vrot.lane.b32.xlu0 %v870, 112
      %v1330 = vpop.permute.xlu0 %1329
      %1331 = vrot.lane.b32.xlu0 %v871, 112
      %v1332 = vpop.permute.xlu0 %1331
      %1333 = vrot.lane.b32.xlu0 %v872, 112
      %v1334 = vpop.permute.xlu0 %1333
      %1335 = vrot.lane.b32.xlu0 %v873, 112
      %v1336 = vpop.permute.xlu0 %1335
      %v1338 = vsel %vm424, %v850, 0
      %v1341 = vsel %vm424, %v851, 0
      %v1344 = vsel %vm424, %v852, 0
      %v1347 = vsel %vm424, %v853, 0
      %v1350 = vsel %vm424, %v854, 0
      %v1353 = vsel %vm424, %v855, 0
      %v1356 = vsel %vm424, %v856, 0
      %v1359 = vsel %vm424, %v857, 0
      %v1362 = vsel %vm424, %v1330, 0
      %v1365 = vsel %vm424, %v1332, 0
      %v1368 = vsel %vm424, %v1334, 0
      %v1371 = vsel %vm424, %v1336, 0
      %1373 = vmatprep.subr.bf16.mxu0 0
      %1374 = vmatpush1.bf16.xpose.msra.mxu0 %v1362
      %1375 = vmatprep.subr.bf16.mxu0 0
      %1376 = vmatpush1.bf16.xpose.msra.mxu0 %v1365
      %1377 = vmatprep.subr.bf16.mxu0 0
      %1378 = vmatpush1.bf16.xpose.msra.mxu0 %v1368
      %1379 = vmatprep.subr.bf16.mxu0 0
      %1380 = vmatpush1.bf16.xpose.msra.mxu0 %v1371
      %1381 = vmatprep.subr.bf16.mxu0 0
      %1382 = vmatpush1.bf16.xpose.msra.mxu0 0
      %1383 = vmatprep.subr.bf16.mxu0 0
      %1384 = vmatpush1.bf16.xpose.msra.mxu0 0
      %1385 = vmatprep.subr.bf16.mxu0 0
      %1386 = vmatpush1.bf16.xpose.msra.mxu0 0
      %1387 = vmatprep.subr.bf16.mxu0 0
      %1388 = vmatpush1.bf16.xpose.msra.mxu0 0
      %1389 = vmatprep.subr.bf16.mxu0 0
      %1390 = vmatpush1.bf16.xpose.msra.mxu0 0
      %1391 = vmatprep.subr.bf16.mxu0 0
      %1392 = vmatpush1.bf16.xpose.msra.mxu0 0
      %1393 = vmatprep.subr.bf16.mxu0 0
      %1394 = vmatpush1.bf16.xpose.msra.mxu0 0
      %1395 = vmatprep.subr.bf16.mxu0 0
      %1396 = vmatpush1.bf16.xpose.msra.mxu0 0
      %1397 = vmatprep.subr.bf16.mxu0 0
      %1398 = vmatpush1.bf16.xpose.msra.mxu0 0
      %1399 = vmatprep.subr.bf16.mxu0 0
      %1400 = vmatpush1.bf16.xpose.msra.mxu0 0
      %1401 = vmatprep.subr.bf16.mxu0 0
      %1402 = vmatpush1.bf16.xpose.msra.mxu0 0
      %1403 = vmatprep.subr.bf16.mxu0 0
      %1404 = vmatpush1.bf16.xpose.msra.mxu0 0
      %1405 = vmatprep.mubr.bf16.mxu0 0
      %1406 = vmatmul.mubr.bf16.gmra.mrb[0].mxu0 %v1338
      %v1407 = vpop.f32.mrb[0].mxu0
      %v1408 = vadd.f32 0.0, %v1407
      %v1409 = vpop.f32.mrb[0].mxu0
      %v1410 = vpop.f32.mrb[0].mxu0
      %v1411 = vadd.f32 0.0, %v1410
      %v1412 = vpop.f32.mrb[0].mxu0
      %1413 = vmatprep.mubr.bf16.mxu0 0
      %1414 = vmatmul.mubr.bf16.gmra.mrb[0].mxu0 %v1341
      %v1415 = vpop.f32.mrb[0].mxu0
      %v1416 = vadd.f32 0.0, %v1415
      %v1417 = vpop.f32.mrb[0].mxu0
      %v1418 = vpop.f32.mrb[0].mxu0
      %v1419 = vadd.f32 0.0, %v1418
      %v1420 = vpop.f32.mrb[0].mxu0
      %1421 = vmatprep.mubr.bf16.mxu0 0
      %1422 = vmatmul.mubr.bf16.gmra.mrb[0].mxu0 %v1344
      %v1423 = vpop.f32.mrb[0].mxu0
      %v1424 = vadd.f32 0.0, %v1423
      %v1425 = vpop.f32.mrb[0].mxu0
      %v1426 = vpop.f32.mrb[0].mxu0
      %v1427 = vadd.f32 0.0, %v1426
      %v1428 = vpop.f32.mrb[0].mxu0
      %1429 = vmatprep.mubr.bf16.mxu0 0
      %1430 = vmatmul.mubr.bf16.gmra.mrb[0].mxu0 %v1347
      %v1431 = vpop.f32.mrb[0].mxu0
      %v1432 = vadd.f32 0.0, %v1431
      %v1433 = vpop.f32.mrb[0].mxu0
      %v1434 = vpop.f32.mrb[0].mxu0
      %v1435 = vadd.f32 0.0, %v1434
      %v1436 = vpop.f32.mrb[0].mxu0
      %1437 = vmatprep.mubr.bf16.mxu0 0
      %1438 = vmatmul.mubr.bf16.gmra.mrb[0].mxu0 %v1350
      %v1439 = vpop.f32.mrb[0].mxu0
      %v1440 = vadd.f32 0.0, %v1439
      %v1441 = vpop.f32.mrb[0].mxu0
      %v1442 = vpop.f32.mrb[0].mxu0
      %v1443 = vadd.f32 0.0, %v1442
      %v1444 = vpop.f32.mrb[0].mxu0
      %1445 = vmatprep.mubr.bf16.mxu0 0
      %1446 = vmatmul.mubr.bf16.gmra.mrb[0].mxu0 %v1353
      %v1447 = vpop.f32.mrb[0].mxu0
      %v1448 = vadd.f32 0.0, %v1447
      %v1449 = vpop.f32.mrb[0].mxu0
      %v1450 = vpop.f32.mrb[0].mxu0
      %v1451 = vadd.f32 0.0, %v1450
      %v1452 = vpop.f32.mrb[0].mxu0
      %1453 = vmatprep.mubr.bf16.mxu0 0
      %1454 = vmatmul.mubr.bf16.gmra.mrb[0].mxu0 %v1356
      %v1455 = vpop.f32.mrb[0].mxu0
      %v1456 = vadd.f32 0.0, %v1455
      %v1457 = vpop.f32.mrb[0].mxu0
      %v1458 = vpop.f32.mrb[0].mxu0
      %v1459 = vadd.f32 0.0, %v1458
      %v1460 = vpop.f32.mrb[0].mxu0
      %1461 = vmatprep.mubr.bf16.mxu0 0
      %1462 = vmatmul.mubr.bf16.gmra.mrb[0].mxu0 %v1359
      %v1463 = vpop.f32.mrb[0].mxu0
      %v1464 = vadd.f32 0.0, %v1463
      %v1465 = vpop.f32.mrb[0].mxu0
      %v1466 = vpop.f32.mrb[0].mxu0
      %v1467 = vadd.f32 0.0, %v1466
      %v1468 = vpop.f32.mrb[0].mxu0
      %1469 = vdwg.mxu0
      %vm1470 = vcmask 523264
      %v1471 = vsel %vm1470, %v973, -inf
      %v1472 = vsel %vm1470, %v976, -inf
      %v1473 = vmax.f32 %v1471, %v1472
      %v1474 = vsel %vm1470, %v981, -inf
      %v1475 = vmax.f32 %v1473, %v1474
      %v1476 = vsel %vm1470, %v984, -inf
      %v1477 = vmax.f32 %v1475, %v1476
      %v1478 = vsel %vm1470, %v989, -inf
      %v1479 = vmax.f32 %v1477, %v1478
      %v1480 = vsel %vm1470, %v992, -inf
      %v1481 = vmax.f32 %v1479, %v1480
      %v1482 = vsel %vm1470, %v997, -inf
      %v1483 = vmax.f32 %v1481, %v1482
      %v1484 = vsel %vm1470, %v1000, -inf
      %v1485 = vmax.f32 %v1483, %v1484
      %v1486 = vrot.slane %v1485, 4
      %v1487 = vmax.f32 %v1485, %v1486
      %v1488 = vrot.slane %v1487, 2
      %v1489 = vmax.f32 %v1487, %v1488
      %v1490 = vrot.slane %v1489, 1
      %v1491 = vmax.f32 %v1489, %v1490
      %v1492 = vsel %vm1470, %v1005, -inf
      %v1493 = vsel %vm1470, %v1008, -inf
      %v1494 = vmax.f32 %v1492, %v1493
      %v1495 = vsel %vm1470, %v1013, -inf
      %v1496 = vmax.f32 %v1494, %v1495
      %v1497 = vsel %vm1470, %v1016, -inf
      %v1498 = vmax.f32 %v1496, %v1497
      %v1499 = vsel %vm1470, %v1021, -inf
      %v1500 = vmax.f32 %v1498, %v1499
      %v1501 = vsel %vm1470, %v1024, -inf
      %v1502 = vmax.f32 %v1500, %v1501
      %v1503 = vsel %vm1470, %v1029, -inf
      %v1504 = vmax.f32 %v1502, %v1503
      %v1505 = vsel %vm1470, %v1032, -inf
      %v1506 = vmax.f32 %v1504, %v1505
      %v1507 = vrot.slane %v1506, 4
      %v1508 = vmax.f32 %v1506, %v1507
      %v1509 = vrot.slane %v1508, 2
      %v1510 = vmax.f32 %v1508, %v1509
      %v1511 = vrot.slane %v1510, 1
      %v1512 = vmax.f32 %v1510, %v1511
      %v1513 = vsel %vm1470, %v1118, -inf
      %v1514 = vsel %vm1470, %v1121, -inf
      %v1515 = vmax.f32 %v1513, %v1514
      %v1516 = vsel %vm1470, %v1126, -inf
      %v1517 = vmax.f32 %v1515, %v1516
      %v1518 = vsel %vm1470, %v1129, -inf
      %v1519 = vmax.f32 %v1517, %v1518
      %v1520 = vsel %vm1470, %v1134, -inf
      %v1521 = vmax.f32 %v1519, %v1520
      %v1522 = vsel %vm1470, %v1137, -inf
      %v1523 = vmax.f32 %v1521, %v1522
      %v1524 = vsel %vm1470, %v1142, -inf
      %v1525 = vmax.f32 %v1523, %v1524
      %v1526 = vsel %vm1470, %v1145, -inf
      %v1527 = vmax.f32 %v1525, %v1526
      %v1528 = vrot.slane %v1527, 4
      %v1529 = vmax.f32 %v1527, %v1528
      %v1530 = vrot.slane %v1529, 2
      %v1531 = vmax.f32 %v1529, %v1530
      %v1532 = vrot.slane %v1531, 1
      %v1533 = vmax.f32 %v1531, %v1532
      %v1534 = vsel %vm1470, %v1150, -inf
      %v1535 = vsel %vm1470, %v1153, -inf
      %v1536 = vmax.f32 %v1534, %v1535
      %v1537 = vsel %vm1470, %v1158, -inf
      %v1538 = vmax.f32 %v1536, %v1537
      %v1539 = vsel %vm1470, %v1161, -inf
      %v1540 = vmax.f32 %v1538, %v1539
      %v1541 = vsel %vm1470, %v1166, -inf
      %v1542 = vmax.f32 %v1540, %v1541
      %v1543 = vsel %vm1470, %v1169, -inf
      %v1544 = vmax.f32 %v1542, %v1543
      %v1545 = vsel %vm1470, %v1174, -inf
      %v1546 = vmax.f32 %v1544, %v1545
      %v1547 = vsel %vm1470, %v1177, -inf
      %v1548 = vmax.f32 %v1546, %v1547
      %v1549 = vrot.slane %v1548, 4
      %v1550 = vmax.f32 %v1548, %v1549
      %v1551 = vrot.slane %v1550, 2
      %v1552 = vmax.f32 %v1550, %v1551
      %v1553 = vrot.slane %v1552, 1
      %v1554 = vmax.f32 %v1552, %v1553
      %v1555 = vsel %vm1470, %v1263, -inf
      %v1556 = vsel %vm1470, %v1266, -inf
      %v1557 = vmax.f32 %v1555, %v1556
      %v1558 = vsel %vm1470, %v1271, -inf
      %v1559 = vmax.f32 %v1557, %v1558
      %v1560 = vsel %vm1470, %v1274, -inf
      %v1561 = vmax.f32 %v1559, %v1560
      %v1562 = vsel %vm1470, %v1279, -inf
      %v1563 = vmax.f32 %v1561, %v1562
      %v1564 = vsel %vm1470, %v1282, -inf
      %v1565 = vmax.f32 %v1563, %v1564
      %v1566 = vsel %vm1470, %v1287, -inf
      %v1567 = vmax.f32 %v1565, %v1566
      %v1568 = vsel %vm1470, %v1290, -inf
      %v1569 = vmax.f32 %v1567, %v1568
      %v1570 = vrot.slane %v1569, 4
      %v1571 = vmax.f32 %v1569, %v1570
      %v1572 = vrot.slane %v1571, 2
      %v1573 = vmax.f32 %v1571, %v1572
      %v1574 = vrot.slane %v1573, 1
      %v1575 = vmax.f32 %v1573, %v1574
      %v1576 = vsel %vm1470, %v1295, -inf
      %v1577 = vsel %vm1470, %v1298, -inf
      %v1578 = vmax.f32 %v1576, %v1577
      %v1579 = vsel %vm1470, %v1303, -inf
      %v1580 = vmax.f32 %v1578, %v1579
      %v1581 = vsel %vm1470, %v1306, -inf
      %v1582 = vmax.f32 %v1580, %v1581
      %v1583 = vsel %vm1470, %v1311, -inf
      %v1584 = vmax.f32 %v1582, %v1583
      %v1585 = vsel %vm1470, %v1314, -inf
      %v1586 = vmax.f32 %v1584, %v1585
      %v1587 = vsel %vm1470, %v1319, -inf
      %v1588 = vmax.f32 %v1586, %v1587
      %v1589 = vsel %vm1470, %v1322, -inf
      %v1590 = vmax.f32 %v1588, %v1589
      %v1591 = vrot.slane %v1590, 4
      %v1592 = vmax.f32 %v1590, %v1591
      %v1593 = vrot.slane %v1592, 2
      %v1594 = vmax.f32 %v1592, %v1593
      %v1595 = vrot.slane %v1594, 1
      %v1596 = vmax.f32 %v1594, %v1595
      %v1597 = vsel %vm1470, %v1408, -inf
      %v1598 = vsel %vm1470, %v1411, -inf
      %v1599 = vmax.f32 %v1597, %v1598
      %v1600 = vsel %vm1470, %v1416, -inf
      %v1601 = vmax.f32 %v1599, %v1600
      %v1602 = vsel %vm1470, %v1419, -inf
      %v1603 = vmax.f32 %v1601, %v1602
      %v1604 = vsel %vm1470, %v1424, -inf
      %v1605 = vmax.f32 %v1603, %v1604
      %v1606 = vsel %vm1470, %v1427, -inf
      %v1607 = vmax.f32 %v1605, %v1606
      %v1608 = vsel %vm1470, %v1432, -inf
      %v1609 = vmax.f32 %v1607, %v1608
      %v1610 = vsel %vm1470, %v1435, -inf
      %v1611 = vmax.f32 %v1609, %v1610
      %v1612 = vrot.slane %v1611, 4
      %v1613 = vmax.f32 %v1611, %v1612
      %v1614 = vrot.slane %v1613, 2
      %v1615 = vmax.f32 %v1613, %v1614
      %v1616 = vrot.slane %v1615, 1
      %v1617 = vmax.f32 %v1615, %v1616
      %v1618 = vsel %vm1470, %v1440, -inf
      %v1619 = vsel %vm1470, %v1443, -inf
      %v1620 = vmax.f32 %v1618, %v1619
      %v1621 = vsel %vm1470, %v1448, -inf
      %v1622 = vmax.f32 %v1620, %v1621
      %v1623 = vsel %vm1470, %v1451, -inf
      %v1624 = vmax.f32 %v1622, %v1623
      %v1625 = vsel %vm1470, %v1456, -inf
      %v1626 = vmax.f32 %v1624, %v1625
      %v1627 = vsel %vm1470, %v1459, -inf
      %v1628 = vmax.f32 %v1626, %v1627
      %v1629 = vsel %vm1470, %v1464, -inf
      %v1630 = vmax.f32 %v1628, %v1629
      %v1631 = vsel %vm1470, %v1467, -inf
      %v1632 = vmax.f32 %v1630, %v1631
      %v1633 = vrot.slane %v1632, 4
      %v1634 = vmax.f32 %v1632, %v1633
      %v1635 = vrot.slane %v1634, 2
      %v1636 = vmax.f32 %v1634, %v1635
      %v1637 = vrot.slane %v1636, 1
      %v1638 = vmax.f32 %v1636, %v1637
      %v1639 = vsub.f32 %v973, %v1491
      %v1640 = vsub.f32 %v976, %v1491
      %v1641 = vsub.f32 %v981, %v1491
      %v1642 = vsub.f32 %v984, %v1491
      %v1643 = vsub.f32 %v989, %v1491
      %v1644 = vsub.f32 %v992, %v1491
      %v1645 = vsub.f32 %v997, %v1491
      %v1646 = vsub.f32 %v1000, %v1491
      %v1647 = vsub.f32 %v1005, %v1512
      %v1648 = vsub.f32 %v1008, %v1512
      %v1649 = vsub.f32 %v1013, %v1512
      %v1650 = vsub.f32 %v1016, %v1512
      %v1651 = vsub.f32 %v1021, %v1512
      %v1652 = vsub.f32 %v1024, %v1512
      %v1653 = vsub.f32 %v1029, %v1512
      %v1654 = vsub.f32 %v1032, %v1512
      %v1655 = vsub.f32 %v1118, %v1533
      %v1656 = vsub.f32 %v1121, %v1533
      %v1657 = vsub.f32 %v1126, %v1533
      %v1658 = vsub.f32 %v1129, %v1533
      %v1659 = vsub.f32 %v1134, %v1533
      %v1660 = vsub.f32 %v1137, %v1533
      %v1661 = vsub.f32 %v1142, %v1533
      %v1662 = vsub.f32 %v1145, %v1533
      %v1663 = vsub.f32 %v1150, %v1554
      %v1664 = vsub.f32 %v1153, %v1554
      %v1665 = vsub.f32 %v1158, %v1554
      %v1666 = vsub.f32 %v1161, %v1554
      %v1667 = vsub.f32 %v1166, %v1554
      %v1668 = vsub.f32 %v1169, %v1554
      %v1669 = vsub.f32 %v1174, %v1554
      %v1670 = vsub.f32 %v1177, %v1554
      %v1671 = vsub.f32 %v1263, %v1575
      %v1672 = vsub.f32 %v1266, %v1575
      %v1673 = vsub.f32 %v1271, %v1575
      %v1674 = vsub.f32 %v1274, %v1575
      %v1675 = vsub.f32 %v1279, %v1575
      %v1676 = vsub.f32 %v1282, %v1575
      %v1677 = vsub.f32 %v1287, %v1575
      %v1678 = vsub.f32 %v1290, %v1575
      %v1679 = vsub.f32 %v1295, %v1596
      %v1680 = vsub.f32 %v1298, %v1596
      %v1681 = vsub.f32 %v1303, %v1596
      %v1682 = vsub.f32 %v1306, %v1596
      %v1683 = vsub.f32 %v1311, %v1596
      %v1684 = vsub.f32 %v1314, %v1596
      %v1685 = vsub.f32 %v1319, %v1596
      %v1686 = vsub.f32 %v1322, %v1596
      %v1687 = vsub.f32 %v1408, %v1617
      %v1688 = vsub.f32 %v1411, %v1617
      %v1689 = vsub.f32 %v1416, %v1617
      %v1690 = vsub.f32 %v1419, %v1617
      %v1691 = vsub.f32 %v1424, %v1617
      %v1692 = vsub.f32 %v1427, %v1617
      %v1693 = vsub.f32 %v1432, %v1617
      %v1694 = vsub.f32 %v1435, %v1617
      %v1695 = vsub.f32 %v1440, %v1638
      %v1696 = vsub.f32 %v1443, %v1638
      %v1697 = vsub.f32 %v1448, %v1638
      %v1698 = vsub.f32 %v1451, %v1638
      %v1699 = vsub.f32 %v1456, %v1638
      %v1700 = vsub.f32 %v1459, %v1638
      %v1701 = vsub.f32 %v1464, %v1638
      %v1702 = vsub.f32 %v1467, %v1638
      %v1703 = vmul.f32 %v1639, 1.442695
      %v1704 = vpow.pop %v1703
      %v1705 = vmul.f32 %v1640, 1.442695
      %v1706 = vpow.pop %v1705
      %v1707 = vmul.f32 %v1641, 1.442695
      %v1708 = vpow.pop %v1707
      %v1709 = vmul.f32 %v1642, 1.442695
      %v1710 = vpow.pop %v1709
      %v1711 = vmul.f32 %v1643, 1.442695
      %v1712 = vpow.pop %v1711
      %v1713 = vmul.f32 %v1644, 1.442695
      %v1714 = vpow.pop %v1713
      %v1715 = vmul.f32 %v1645, 1.442695
      %v1716 = vpow.pop %v1715
      %v1717 = vmul.f32 %v1646, 1.442695
      %v1718 = vpow.pop %v1717
      %v1719 = vmul.f32 %v1647, 1.442695
      %v1720 = vpow.pop %v1719
      %v1721 = vmul.f32 %v1648, 1.442695
      %v1722 = vpow.pop %v1721
      %v1723 = vmul.f32 %v1649, 1.442695
      %v1724 = vpow.pop %v1723
      %v1725 = vmul.f32 %v1650, 1.442695
      %v1726 = vpow.pop %v1725
      %v1727 = vmul.f32 %v1651, 1.442695
      %v1728 = vpow.pop %v1727
      %v1729 = vmul.f32 %v1652, 1.442695
      %v1730 = vpow.pop %v1729
      %v1731 = vmul.f32 %v1653, 1.442695
      %v1732 = vpow.pop %v1731
      %v1733 = vmul.f32 %v1654, 1.442695
      %v1734 = vpow.pop %v1733
      %v1735 = vmul.f32 %v1655, 1.442695
      %v1736 = vpow.pop %v1735
      %v1737 = vmul.f32 %v1656, 1.442695
      %v1738 = vpow.pop %v1737
      %v1739 = vmul.f32 %v1657, 1.442695
      %v1740 = vpow.pop %v1739
      %v1741 = vmul.f32 %v1658, 1.442695
      %v1742 = vpow.pop %v1741
      %v1743 = vmul.f32 %v1659, 1.442695
      %v1744 = vpow.pop %v1743
      %v1745 = vmul.f32 %v1660, 1.442695
      %v1746 = vpow.pop %v1745
      %v1747 = vmul.f32 %v1661, 1.442695
      %v1748 = vpow.pop %v1747
      %v1749 = vmul.f32 %v1662, 1.442695
      %v1750 = vpow.pop %v1749
      %v1751 = vmul.f32 %v1663, 1.442695
      %v1752 = vpow.pop %v1751
      %v1753 = vmul.f32 %v1664, 1.442695
      %v1754 = vpow.pop %v1753
      %v1755 = vmul.f32 %v1665, 1.442695
      %v1756 = vpow.pop %v1755
      %v1757 = vmul.f32 %v1666, 1.442695
      %v1758 = vpow.pop %v1757
      %v1759 = vmul.f32 %v1667, 1.442695
      %v1760 = vpow.pop %v1759
      %v1761 = vmul.f32 %v1668, 1.442695
      %v1762 = vpow.pop %v1761
      %v1763 = vmul.f32 %v1669, 1.442695
      %v1764 = vpow.pop %v1763
      %v1765 = vmul.f32 %v1670, 1.442695
      %v1766 = vpow.pop %v1765
      %v1767 = vmul.f32 %v1671, 1.442695
      %v1768 = vpow.pop %v1767
      %v1769 = vmul.f32 %v1672, 1.442695
      %v1770 = vpow.pop %v1769
      %v1771 = vmul.f32 %v1673, 1.442695
      %v1772 = vpow.pop %v1771
      %v1773 = vmul.f32 %v1674, 1.442695
      %v1774 = vpow.pop %v1773
      %v1775 = vmul.f32 %v1675, 1.442695
      %v1776 = vpow.pop %v1775
      %v1777 = vmul.f32 %v1676, 1.442695
      %v1778 = vpow.pop %v1777
      %v1779 = vmul.f32 %v1677, 1.442695
      %v1780 = vpow.pop %v1779
      %v1781 = vmul.f32 %v1678, 1.442695
      %v1782 = vpow.pop %v1781
      %v1783 = vmul.f32 %v1679, 1.442695
      %v1784 = vpow.pop %v1783
      %v1785 = vmul.f32 %v1680, 1.442695
      %v1786 = vpow.pop %v1785
      %v1787 = vmul.f32 %v1681, 1.442695
      %v1788 = vpow.pop %v1787
      %v1789 = vmul.f32 %v1682, 1.442695
      %v1790 = vpow.pop %v1789
      %v1791 = vmul.f32 %v1683, 1.442695
      %v1792 = vpow.pop %v1791
      %v1793 = vmul.f32 %v1684, 1.442695
      %v1794 = vpow.pop %v1793
      %v1795 = vmul.f32 %v1685, 1.442695
      %v1796 = vpow.pop %v1795
      %v1797 = vmul.f32 %v1686, 1.442695
      %v1798 = vpow.pop %v1797
      %v1799 = vmul.f32 %v1687, 1.442695
      %v1800 = vpow.pop %v1799
      %v1801 = vmul.f32 %v1688, 1.442695
      %v1802 = vpow.pop %v1801
      %v1803 = vmul.f32 %v1689, 1.442695
      %v1804 = vpow.pop %v1803
      %v1805 = vmul.f32 %v1690, 1.442695
      %v1806 = vpow.pop %v1805
      %v1807 = vmul.f32 %v1691, 1.442695
      %v1808 = vpow.pop %v1807
      %v1809 = vmul.f32 %v1692, 1.442695
      %v1810 = vpow.pop %v1809
      %v1811 = vmul.f32 %v1693, 1.442695
      %v1812 = vpow.pop %v1811
      %v1813 = vmul.f32 %v1694, 1.442695
      %v1814 = vpow.pop %v1813
      %v1815 = vmul.f32 %v1695, 1.442695
      %v1816 = vpow.pop %v1815
      %v1817 = vmul.f32 %v1696, 1.442695
      %v1818 = vpow.pop %v1817
      %v1819 = vmul.f32 %v1697, 1.442695
      %v1820 = vpow.pop %v1819
      %v1821 = vmul.f32 %v1698, 1.442695
      %v1822 = vpow.pop %v1821
      %v1823 = vmul.f32 %v1699, 1.442695
      %v1824 = vpow.pop %v1823
      %v1825 = vmul.f32 %v1700, 1.442695
      %v1826 = vpow.pop %v1825
      %v1827 = vmul.f32 %v1701, 1.442695
      %v1828 = vpow.pop %v1827
      %v1829 = vmul.f32 %v1702, 1.442695
      %v1830 = vpow.pop %v1829
      %v1831 = vsel %vm1470, %v1704, 0.0
      %v1832 = vsel %vm1470, %v1706, 0.0
      %v1833 = vadd.f32 %v1831, %v1832
      %v1834 = vsel %vm1470, %v1708, 0.0
      %v1835 = vadd.f32 %v1833, %v1834
      %v1836 = vsel %vm1470, %v1710, 0.0
      %v1837 = vadd.f32 %v1835, %v1836
      %v1838 = vsel %vm1470, %v1712, 0.0
      %v1839 = vadd.f32 %v1837, %v1838
      %v1840 = vsel %vm1470, %v1714, 0.0
      %v1841 = vadd.f32 %v1839, %v1840
      %v1842 = vsel %vm1470, %v1716, 0.0
      %v1843 = vadd.f32 %v1841, %v1842
      %v1844 = vsel %vm1470, %v1718, 0.0
      %v1845 = vadd.f32 %v1843, %v1844
      %v1846 = vrot.slane %v1845, 4
      %v1847 = vadd.f32 %v1845, %v1846
      %v1848 = vrot.slane %v1847, 2
      %v1849 = vadd.f32 %v1847, %v1848
      %v1850 = vrot.slane %v1849, 1
      %v1851 = vadd.f32 %v1849, %v1850
      %v1852 = vsel %vm1470, %v1720, 0.0
      %v1853 = vsel %vm1470, %v1722, 0.0
      %v1854 = vadd.f32 %v1852, %v1853
      %v1855 = vsel %vm1470, %v1724, 0.0
      %v1856 = vadd.f32 %v1854, %v1855
      %v1857 = vsel %vm1470, %v1726, 0.0
      %v1858 = vadd.f32 %v1856, %v1857
      %v1859 = vsel %vm1470, %v1728, 0.0
      %v1860 = vadd.f32 %v1858, %v1859
      %v1861 = vsel %vm1470, %v1730, 0.0
      %v1862 = vadd.f32 %v1860, %v1861
      %v1863 = vsel %vm1470, %v1732, 0.0
      %v1864 = vadd.f32 %v1862, %v1863
      %v1865 = vsel %vm1470, %v1734, 0.0
      %v1866 = vadd.f32 %v1864, %v1865
      %v1867 = vrot.slane %v1866, 4
      %v1868 = vadd.f32 %v1866, %v1867
      %v1869 = vrot.slane %v1868, 2
      %v1870 = vadd.f32 %v1868, %v1869
      %v1871 = vrot.slane %v1870, 1
      %v1872 = vadd.f32 %v1870, %v1871
      %v1873 = vsel %vm1470, %v1736, 0.0
      %v1874 = vsel %vm1470, %v1738, 0.0
      %v1875 = vadd.f32 %v1873, %v1874
      %v1876 = vsel %vm1470, %v1740, 0.0
      %v1877 = vadd.f32 %v1875, %v1876
      %v1878 = vsel %vm1470, %v1742, 0.0
      %v1879 = vadd.f32 %v1877, %v1878
      %v1880 = vsel %vm1470, %v1744, 0.0
      %v1881 = vadd.f32 %v1879, %v1880
      %v1882 = vsel %vm1470, %v1746, 0.0
      %v1883 = vadd.f32 %v1881, %v1882
      %v1884 = vsel %vm1470, %v1748, 0.0
      %v1885 = vadd.f32 %v1883, %v1884
      %v1886 = vsel %vm1470, %v1750, 0.0
      %v1887 = vadd.f32 %v1885, %v1886
      %v1888 = vrot.slane %v1887, 4
      %v1889 = vadd.f32 %v1887, %v1888
      %v1890 = vrot.slane %v1889, 2
      %v1891 = vadd.f32 %v1889, %v1890
      %v1892 = vrot.slane %v1891, 1
      %v1893 = vadd.f32 %v1891, %v1892
      %v1894 = vsel %vm1470, %v1752, 0.0
      %v1895 = vsel %vm1470, %v1754, 0.0
      %v1896 = vadd.f32 %v1894, %v1895
      %v1897 = vsel %vm1470, %v1756, 0.0
      %v1898 = vadd.f32 %v1896, %v1897
      %v1899 = vsel %vm1470, %v1758, 0.0
      %v1900 = vadd.f32 %v1898, %v1899
      %v1901 = vsel %vm1470, %v1760, 0.0
      %v1902 = vadd.f32 %v1900, %v1901
      %v1903 = vsel %vm1470, %v1762, 0.0
      %v1904 = vadd.f32 %v1902, %v1903
      %v1905 = vsel %vm1470, %v1764, 0.0
      %v1906 = vadd.f32 %v1904, %v1905
      %v1907 = vsel %vm1470, %v1766, 0.0
      %v1908 = vadd.f32 %v1906, %v1907
      %v1909 = vrot.slane %v1908, 4
      %v1910 = vadd.f32 %v1908, %v1909
      %v1911 = vrot.slane %v1910, 2
      %v1912 = vadd.f32 %v1910, %v1911
      %v1913 = vrot.slane %v1912, 1
      %v1914 = vadd.f32 %v1912, %v1913
      %v1915 = vsel %vm1470, %v1768, 0.0
      %v1916 = vsel %vm1470, %v1770, 0.0
      %v1917 = vadd.f32 %v1915, %v1916
      %v1918 = vsel %vm1470, %v1772, 0.0
      %v1919 = vadd.f32 %v1917, %v1918
      %v1920 = vsel %vm1470, %v1774, 0.0
      %v1921 = vadd.f32 %v1919, %v1920
      %v1922 = vsel %vm1470, %v1776, 0.0
      %v1923 = vadd.f32 %v1921, %v1922
      %v1924 = vsel %vm1470, %v1778, 0.0
      %v1925 = vadd.f32 %v1923, %v1924
      %v1926 = vsel %vm1470, %v1780, 0.0
      %v1927 = vadd.f32 %v1925, %v1926
      %v1928 = vsel %vm1470, %v1782, 0.0
      %v1929 = vadd.f32 %v1927, %v1928
      %v1930 = vrot.slane %v1929, 4
      %v1931 = vadd.f32 %v1929, %v1930
      %v1932 = vrot.slane %v1931, 2
      %v1933 = vadd.f32 %v1931, %v1932
      %v1934 = vrot.slane %v1933, 1
      %v1935 = vadd.f32 %v1933, %v1934
      %v1936 = vsel %vm1470, %v1784, 0.0
      %v1937 = vsel %vm1470, %v1786, 0.0
      %v1938 = vadd.f32 %v1936, %v1937
      %v1939 = vsel %vm1470, %v1788, 0.0
      %v1940 = vadd.f32 %v1938, %v1939
      %v1941 = vsel %vm1470, %v1790, 0.0
      %v1942 = vadd.f32 %v1940, %v1941
      %v1943 = vsel %vm1470, %v1792, 0.0
      %v1944 = vadd.f32 %v1942, %v1943
      %v1945 = vsel %vm1470, %v1794, 0.0
      %v1946 = vadd.f32 %v1944, %v1945
      %v1947 = vsel %vm1470, %v1796, 0.0
      %v1948 = vadd.f32 %v1946, %v1947
      %v1949 = vsel %vm1470, %v1798, 0.0
      %v1950 = vadd.f32 %v1948, %v1949
      %v1951 = vrot.slane %v1950, 4
      %v1952 = vadd.f32 %v1950, %v1951
      %v1953 = vrot.slane %v1952, 2
      %v1954 = vadd.f32 %v1952, %v1953
      %v1955 = vrot.slane %v1954, 1
      %v1956 = vadd.f32 %v1954, %v1955
      %v1957 = vsel %vm1470, %v1800, 0.0
      %v1958 = vsel %vm1470, %v1802, 0.0
      %v1959 = vadd.f32 %v1957, %v1958
      %v1960 = vsel %vm1470, %v1804, 0.0
      %v1961 = vadd.f32 %v1959, %v1960
      %v1962 = vsel %vm1470, %v1806, 0.0
      %v1963 = vadd.f32 %v1961, %v1962
      %v1964 = vsel %vm1470, %v1808, 0.0
      %v1965 = vadd.f32 %v1963, %v1964
      %v1966 = vsel %vm1470, %v1810, 0.0
      %v1967 = vadd.f32 %v1965, %v1966
      %v1968 = vsel %vm1470, %v1812, 0.0
      %v1969 = vadd.f32 %v1967, %v1968
      %v1970 = vsel %vm1470, %v1814, 0.0
      %v1971 = vadd.f32 %v1969, %v1970
      %v1972 = vrot.slane %v1971, 4
      %v1973 = vadd.f32 %v1971, %v1972
      %v1974 = vrot.slane %v1973, 2
      %v1975 = vadd.f32 %v1973, %v1974
      %v1976 = vrot.slane %v1975, 1
      %v1977 = vadd.f32 %v1975, %v1976
      %v1978 = vsel %vm1470, %v1816, 0.0
      %v1979 = vsel %vm1470, %v1818, 0.0
      %v1980 = vadd.f32 %v1978, %v1979
      %v1981 = vsel %vm1470, %v1820, 0.0
      %v1982 = vadd.f32 %v1980, %v1981
      %v1983 = vsel %vm1470, %v1822, 0.0
      %v1984 = vadd.f32 %v1982, %v1983
      %v1985 = vsel %vm1470, %v1824, 0.0
      %v1986 = vadd.f32 %v1984, %v1985
      %v1987 = vsel %vm1470, %v1826, 0.0
      %v1988 = vadd.f32 %v1986, %v1987
      %v1989 = vsel %vm1470, %v1828, 0.0
      %v1990 = vadd.f32 %v1988, %v1989
      %v1991 = vsel %vm1470, %v1830, 0.0
      %v1992 = vadd.f32 %v1990, %v1991
      %v1993 = vrot.slane %v1992, 4
      %v1994 = vadd.f32 %v1992, %v1993
      %v1995 = vrot.slane %v1994, 2
      %v1996 = vadd.f32 %v1994, %v1995
      %v1997 = vrot.slane %v1996, 1
      %v1998 = vadd.f32 %v1996, %v1997
      %v1999 = vrcp.pop %v1851
      %v2000 = vrcp.pop %v1872
      %v2001 = vrcp.pop %v1893
      %v2002 = vrcp.pop %v1914
      %v2003 = vrcp.pop %v1935
      %v2004 = vrcp.pop %v1956
      %v2005 = vrcp.pop %v1977
      %v2006 = vrcp.pop %v1998
      %v2007 = vmul.f32 %v1704, %v1999
      %v2008 = vmul.f32 %v1706, %v1999
      %v2009 = vmul.f32 %v1708, %v1999
      %v2010 = vmul.f32 %v1710, %v1999
      %v2011 = vmul.f32 %v1712, %v1999
      %v2012 = vmul.f32 %v1714, %v1999
      %v2013 = vmul.f32 %v1716, %v1999
      %v2014 = vmul.f32 %v1718, %v1999
      %v2015 = vmul.f32 %v1720, %v2000
      %v2016 = vmul.f32 %v1722, %v2000
      %v2017 = vmul.f32 %v1724, %v2000
      %v2018 = vmul.f32 %v1726, %v2000
      %v2019 = vmul.f32 %v1728, %v2000
      %v2020 = vmul.f32 %v1730, %v2000
      %v2021 = vmul.f32 %v1732, %v2000
      %v2022 = vmul.f32 %v1734, %v2000
      %v2023 = vmul.f32 %v1736, %v2001
      %v2024 = vmul.f32 %v1738, %v2001
      %v2025 = vmul.f32 %v1740, %v2001
      %v2026 = vmul.f32 %v1742, %v2001
      %v2027 = vmul.f32 %v1744, %v2001
      %v2028 = vmul.f32 %v1746, %v2001
      %v2029 = vmul.f32 %v1748, %v2001
      %v2030 = vmul.f32 %v1750, %v2001
      %v2031 = vmul.f32 %v1752, %v2002
      %v2032 = vmul.f32 %v1754, %v2002
      %v2033 = vmul.f32 %v1756, %v2002
      %v2034 = vmul.f32 %v1758, %v2002
      %v2035 = vmul.f32 %v1760, %v2002
      %v2036 = vmul.f32 %v1762, %v2002
      %v2037 = vmul.f32 %v1764, %v2002
      %v2038 = vmul.f32 %v1766, %v2002
      %v2039 = vmul.f32 %v1768, %v2003
      %v2040 = vmul.f32 %v1770, %v2003
      %v2041 = vmul.f32 %v1772, %v2003
      %v2042 = vmul.f32 %v1774, %v2003
      %v2043 = vmul.f32 %v1776, %v2003
      %v2044 = vmul.f32 %v1778, %v2003
      %v2045 = vmul.f32 %v1780, %v2003
      %v2046 = vmul.f32 %v1782, %v2003
      %v2047 = vmul.f32 %v1784, %v2004
      %v2048 = vmul.f32 %v1786, %v2004
      %v2049 = vmul.f32 %v1788, %v2004
      %v2050 = vmul.f32 %v1790, %v2004
      %v2051 = vmul.f32 %v1792, %v2004
      %v2052 = vmul.f32 %v1794, %v2004
      %v2053 = vmul.f32 %v1796, %v2004
      %v2054 = vmul.f32 %v1798, %v2004
      %v2055 = vmul.f32 %v1800, %v2005
      %v2056 = vmul.f32 %v1802, %v2005
      %v2057 = vmul.f32 %v1804, %v2005
      %v2058 = vmul.f32 %v1806, %v2005
      %v2059 = vmul.f32 %v1808, %v2005
      %v2060 = vmul.f32 %v1810, %v2005
      %v2061 = vmul.f32 %v1812, %v2005
      %v2062 = vmul.f32 %v1814, %v2005
      %v2063 = vmul.f32 %v1816, %v2006
      %v2064 = vmul.f32 %v1818, %v2006
      %v2065 = vmul.f32 %v1820, %v2006
      %v2066 = vmul.f32 %v1822, %v2006
      %v2067 = vmul.f32 %v1824, %v2006
      %v2068 = vmul.f32 %v1826, %v2006
      %v2069 = vmul.f32 %v1828, %v2006
      %v2070 = vmul.f32 %v1830, %v2006
      %v2071 = vpack.c.bf16 %v2008, %v2007
      %v2072 = vpack.c.bf16 %v2010, %v2009
      %v2073 = vpack.c.bf16 %v2012, %v2011
      %v2074 = vpack.c.bf16 %v2014, %v2013
      %v2075 = vpack.c.bf16 %v2016, %v2015
      %v2076 = vpack.c.bf16 %v2018, %v2017
      %v2077 = vpack.c.bf16 %v2020, %v2019
      %v2078 = vpack.c.bf16 %v2022, %v2021
      %v2079 = vpack.c.bf16 %v2024, %v2023
      %v2080 = vpack.c.bf16 %v2026, %v2025
      %v2081 = vpack.c.bf16 %v2028, %v2027
      %v2082 = vpack.c.bf16 %v2030, %v2029
      %v2083 = vpack.c.bf16 %v2032, %v2031
      %v2084 = vpack.c.bf16 %v2034, %v2033
      %v2085 = vpack.c.bf16 %v2036, %v2035
      %v2086 = vpack.c.bf16 %v2038, %v2037
      %v2087 = vpack.c.bf16 %v2040, %v2039
      %v2088 = vpack.c.bf16 %v2042, %v2041
      %v2089 = vpack.c.bf16 %v2044, %v2043
      %v2090 = vpack.c.bf16 %v2046, %v2045
      %v2091 = vpack.c.bf16 %v2048, %v2047
      %v2092 = vpack.c.bf16 %v2050, %v2049
      %v2093 = vpack.c.bf16 %v2052, %v2051
      %v2094 = vpack.c.bf16 %v2054, %v2053
      %v2095 = vpack.c.bf16 %v2056, %v2055
      %v2096 = vpack.c.bf16 %v2058, %v2057
      %v2097 = vpack.c.bf16 %v2060, %v2059
      %v2098 = vpack.c.bf16 %v2062, %v2061
      %v2099 = vpack.c.bf16 %v2064, %v2063
      %v2100 = vpack.c.bf16 %v2066, %v2065
      %v2101 = vpack.c.bf16 %v2068, %v2067
      %v2102 = vpack.c.bf16 %v2070, %v2069
      %2107 = vrot.lane.b32.xlu0 %v874, 96
      %v2108 = vpop.permute.xlu0 %2107
      %2109 = vrot.lane.b32.xlu0 %v875, 96
      %v2110 = vpop.permute.xlu0 %2109
      %2111 = vrot.lane.b32.xlu0 %v876, 96
      %v2112 = vpop.permute.xlu0 %2111
      %2113 = vrot.lane.b32.xlu0 %v877, 96
      %v2114 = vpop.permute.xlu0 %2113
      %v2120 = vsel %vm1470, %v2071, 0
      %v2123 = vsel %vm1470, %v2072, 0
      %v2126 = vsel %vm1470, %v2073, 0
      %v2129 = vsel %vm1470, %v2074, 0
      %v2132 = vsel %vm1470, %v2075, 0
      %v2135 = vsel %vm1470, %v2076, 0
      %v2138 = vsel %vm1470, %v2077, 0
      %v2141 = vsel %vm1470, %v2078, 0
      %2143 = vmatprep.subr.bf16.mxu0 0
      %2144 = vmatpush1.bf16.msra.mxu0 %v2108
      %2145 = vmatprep.subr.bf16.mxu0 0
      %2146 = vmatpush1.bf16.msra.mxu0 %v2110
      %2147 = vmatprep.subr.bf16.mxu0 0
      %2148 = vmatpush1.bf16.msra.mxu0 %v2112
      %2149 = vmatprep.subr.bf16.mxu0 0
      %2150 = vmatpush1.bf16.msra.mxu0 %v2114
      %2151 = vmatprep.subr.bf16.mxu0 0
      %2152 = vmatpush1.bf16.msra.mxu0 0
      %2153 = vmatprep.subr.bf16.mxu0 0
      %2154 = vmatpush1.bf16.msra.mxu0 0
      %2155 = vmatprep.subr.bf16.mxu0 0
      %2156 = vmatpush1.bf16.msra.mxu0 0
      %2157 = vmatprep.subr.bf16.mxu0 0
      %2158 = vmatpush1.bf16.msra.mxu0 0
      %2159 = vmatprep.subr.bf16.mxu0 0
      %2160 = vmatpush1.bf16.msra.mxu0 0
      %2161 = vmatprep.subr.bf16.mxu0 0
      %2162 = vmatpush1.bf16.msra.mxu0 0
      %2163 = vmatprep.subr.bf16.mxu0 0
      %2164 = vmatpush1.bf16.msra.mxu0 0
      %2165 = vmatprep.subr.bf16.mxu0 0
      %2166 = vmatpush1.bf16.msra.mxu0 0
      %2167 = vmatprep.subr.bf16.mxu0 0
      %2168 = vmatpush1.bf16.msra.mxu0 0
      %2169 = vmatprep.subr.bf16.mxu0 0
      %2170 = vmatpush1.bf16.msra.mxu0 0
      %2171 = vmatprep.subr.bf16.mxu0 0
      %2172 = vmatpush1.bf16.msra.mxu0 0
      %2173 = vmatprep.subr.bf16.mxu0 0
      %2174 = vmatpush1.bf16.msra.mxu0 0
      %2175 = vmatprep.mubr.bf16.mxu0 0
      %2176 = vmatmul.mubr.bf16.gmra.mrb[0].mxu0 %v2120
      %v2177 = vpop.f32.mrb[0].mxu0
      %v2178 = vadd.f32 0.0, %v2177
      %v2179 = vpop.f32.mrb[0].mxu0
      %v2180 = vpop.f32.mrb[0].mxu0
      %v2181 = vadd.f32 0.0, %v2180
      %v2182 = vpop.f32.mrb[0].mxu0
      %2183 = vmatprep.mubr.bf16.mxu0 0
      %2184 = vmatmul.mubr.bf16.gmra.mrb[0].mxu0 %v2123
      %v2185 = vpop.f32.mrb[0].mxu0
      %v2186 = vadd.f32 0.0, %v2185
      %v2187 = vpop.f32.mrb[0].mxu0
      %v2188 = vpop.f32.mrb[0].mxu0
      %v2189 = vadd.f32 0.0, %v2188
      %v2190 = vpop.f32.mrb[0].mxu0
      %2191 = vmatprep.mubr.bf16.mxu0 0
      %2192 = vmatmul.mubr.bf16.gmra.mrb[0].mxu0 %v2126
      %v2193 = vpop.f32.mrb[0].mxu0
      %v2194 = vadd.f32 0.0, %v2193
      %v2195 = vpop.f32.mrb[0].mxu0
      %v2196 = vpop.f32.mrb[0].mxu0
      %v2197 = vadd.f32 0.0, %v2196
      %v2198 = vpop.f32.mrb[0].mxu0
      %2199 = vmatprep.mubr.bf16.mxu0 0
      %2200 = vmatmul.mubr.bf16.gmra.mrb[0].mxu0 %v2129
      %v2201 = vpop.f32.mrb[0].mxu0
      %v2202 = vadd.f32 0.0, %v2201
      %v2203 = vpop.f32.mrb[0].mxu0
      %v2204 = vpop.f32.mrb[0].mxu0
      %v2205 = vadd.f32 0.0, %v2204
      %v2206 = vpop.f32.mrb[0].mxu0
      %2207 = vmatprep.mubr.bf16.mxu0 0
      %2208 = vmatmul.mubr.bf16.gmra.mrb[0].mxu0 %v2132
      %v2209 = vpop.f32.mrb[0].mxu0
      %v2210 = vadd.f32 0.0, %v2209
      %v2211 = vpop.f32.mrb[0].mxu0
      %v2212 = vpop.f32.mrb[0].mxu0
      %v2213 = vadd.f32 0.0, %v2212
      %v2214 = vpop.f32.mrb[0].mxu0
      %2215 = vmatprep.mubr.bf16.mxu0 0
      %2216 = vmatmul.mubr.bf16.gmra.mrb[0].mxu0 %v2135
      %v2217 = vpop.f32.mrb[0].mxu0
      %v2218 = vadd.f32 0.0, %v2217
      %v2219 = vpop.f32.mrb[0].mxu0
      %v2220 = vpop.f32.mrb[0].mxu0
      %v2221 = vadd.f32 0.0, %v2220
      %v2222 = vpop.f32.mrb[0].mxu0
      %2223 = vmatprep.mubr.bf16.mxu0 0
      %2224 = vmatmul.mubr.bf16.gmra.mrb[0].mxu0 %v2138
      %v2225 = vpop.f32.mrb[0].mxu0
      %v2226 = vadd.f32 0.0, %v2225
      %v2227 = vpop.f32.mrb[0].mxu0
      %v2228 = vpop.f32.mrb[0].mxu0
      %v2229 = vadd.f32 0.0, %v2228
      %v2230 = vpop.f32.mrb[0].mxu0
      %2231 = vmatprep.mubr.bf16.mxu0 0
      %2232 = vmatmul.mubr.bf16.gmra.mrb[0].mxu0 %v2141
      %v2233 = vpop.f32.mrb[0].mxu0
      %v2234 = vadd.f32 0.0, %v2233
      %v2235 = vpop.f32.mrb[0].mxu0
      %v2236 = vpop.f32.mrb[0].mxu0
      %v2237 = vadd.f32 0.0, %v2236
      %v2238 = vpop.f32.mrb[0].mxu0
      %2239 = vdwg.mxu0
      %2244 = vrot.lane.b32.xlu0 %v878, 96
      %v2245 = vpop.permute.xlu0 %2244
      %2246 = vrot.lane.b32.xlu0 %v879, 96
      %v2247 = vpop.permute.xlu0 %2246
      %2248 = vrot.lane.b32.xlu0 %v880, 96
      %v2249 = vpop.permute.xlu0 %2248
      %2250 = vrot.lane.b32.xlu0 %v881, 96
      %v2251 = vpop.permute.xlu0 %2250
      %v2257 = vsel %vm1470, %v2079, 0
      %v2260 = vsel %vm1470, %v2080, 0
      %v2263 = vsel %vm1470, %v2081, 0
      %v2266 = vsel %vm1470, %v2082, 0
      %v2269 = vsel %vm1470, %v2083, 0
      %v2272 = vsel %vm1470, %v2084, 0
      %v2275 = vsel %vm1470, %v2085, 0
      %v2278 = vsel %vm1470, %v2086, 0
      %2280 = vmatprep.subr.bf16.mxu0 0
      %2281 = vmatpush1.bf16.msra.mxu0 %v2245
      %2282 = vmatprep.subr.bf16.mxu0 0
      %2283 = vmatpush1.bf16.msra.mxu0 %v2247
      %2284 = vmatprep.subr.bf16.mxu0 0
      %2285 = vmatpush1.bf16.msra.mxu0 %v2249
      %2286 = vmatprep.subr.bf16.mxu0 0
      %2287 = vmatpush1.bf16.msra.mxu0 %v2251
      %2288 = vmatprep.subr.bf16.mxu0 0
      %2289 = vmatpush1.bf16.msra.mxu0 0
      %2290 = vmatprep.subr.bf16.mxu0 0
      %2291 = vmatpush1.bf16.msra.mxu0 0
      %2292 = vmatprep.subr.bf16.mxu0 0
      %2293 = vmatpush1.bf16.msra.mxu0 0
      %2294 = vmatprep.subr.bf16.mxu0 0
      %2295 = vmatpush1.bf16.msra.mxu0 0
      %2296 = vmatprep.subr.bf16.mxu0 0
      %2297 = vmatpush1.bf16.msra.mxu0 0
      %2298 = vmatprep.subr.bf16.mxu0 0
      %2299 = vmatpush1.bf16.msra.mxu0 0
      %2300 = vmatprep.subr.bf16.mxu0 0
      %2301 = vmatpush1.bf16.msra.mxu0 0
      %2302 = vmatprep.subr.bf16.mxu0 0
      %2303 = vmatpush1.bf16.msra.mxu0 0
      %2304 = vmatprep.subr.bf16.mxu0 0
      %2305 = vmatpush1.bf16.msra.mxu0 0
      %2306 = vmatprep.subr.bf16.mxu0 0
      %2307 = vmatpush1.bf16.msra.mxu0 0
      %2308 = vmatprep.subr.bf16.mxu0 0
      %2309 = vmatpush1.bf16.msra.mxu0 0
      %2310 = vmatprep.subr.bf16.mxu0 0
      %2311 = vmatpush1.bf16.msra.mxu0 0
      %2312 = vmatprep.mubr.bf16.mxu0 0
      %2313 = vmatmul.mubr.bf16.gmra.mrb[0].mxu0 %v2257
      %v2314 = vpop.f32.mrb[0].mxu0
      %v2315 = vadd.f32 0.0, %v2314
      %v2316 = vpop.f32.mrb[0].mxu0
      %v2317 = vpop.f32.mrb[0].mxu0
      %v2318 = vadd.f32 0.0, %v2317
      %v2319 = vpop.f32.mrb[0].mxu0
      %2320 = vmatprep.mubr.bf16.mxu0 0
      %2321 = vmatmul.mubr.bf16.gmra.mrb[0].mxu0 %v2260
      %v2322 = vpop.f32.mrb[0].mxu0
      %v2323 = vadd.f32 0.0, %v2322
      %v2324 = vpop.f32.mrb[0].mxu0
      %v2325 = vpop.f32.mrb[0].mxu0
      %v2326 = vadd.f32 0.0, %v2325
      %v2327 = vpop.f32.mrb[0].mxu0
      %2328 = vmatprep.mubr.bf16.mxu0 0
      %2329 = vmatmul.mubr.bf16.gmra.mrb[0].mxu0 %v2263
      %v2330 = vpop.f32.mrb[0].mxu0
      %v2331 = vadd.f32 0.0, %v2330
      %v2332 = vpop.f32.mrb[0].mxu0
      %v2333 = vpop.f32.mrb[0].mxu0
      %v2334 = vadd.f32 0.0, %v2333
      %v2335 = vpop.f32.mrb[0].mxu0
      %2336 = vmatprep.mubr.bf16.mxu0 0
      %2337 = vmatmul.mubr.bf16.gmra.mrb[0].mxu0 %v2266
      %v2338 = vpop.f32.mrb[0].mxu0
      %v2339 = vadd.f32 0.0, %v2338
      %v2340 = vpop.f32.mrb[0].mxu0
      %v2341 = vpop.f32.mrb[0].mxu0
      %v2342 = vadd.f32 0.0, %v2341
      %v2343 = vpop.f32.mrb[0].mxu0
      %2344 = vmatprep.mubr.bf16.mxu0 0
      %2345 = vmatmul.mubr.bf16.gmra.mrb[0].mxu0 %v2269
      %v2346 = vpop.f32.mrb[0].mxu0
      %v2347 = vadd.f32 0.0, %v2346
      %v2348 = vpop.f32.mrb[0].mxu0
      %v2349 = vpop.f32.mrb[0].mxu0
      %v2350 = vadd.f32 0.0, %v2349
      %v2351 = vpop.f32.mrb[0].mxu0
      %2352 = vmatprep.mubr.bf16.mxu0 0
      %2353 = vmatmul.mubr.bf16.gmra.mrb[0].mxu0 %v2272
      %v2354 = vpop.f32.mrb[0].mxu0
      %v2355 = vadd.f32 0.0, %v2354
      %v2356 = vpop.f32.mrb[0].mxu0
      %v2357 = vpop.f32.mrb[0].mxu0
      %v2358 = vadd.f32 0.0, %v2357
      %v2359 = vpop.f32.mrb[0].mxu0
      %2360 = vmatprep.mubr.bf16.mxu0 0
      %2361 = vmatmul.mubr.bf16.gmra.mrb[0].mxu0 %v2275
      %v2362 = vpop.f32.mrb[0].mxu0
      %v2363 = vadd.f32 0.0, %v2362
      %v2364 = vpop.f32.mrb[0].mxu0
      %v2365 = vpop.f32.mrb[0].mxu0
      %v2366 = vadd.f32 0.0, %v2365
      %v2367 = vpop.f32.mrb[0].mxu0
      %2368 = vmatprep.mubr.bf16.mxu0 0
      %2369 = vmatmul.mubr.bf16.gmra.mrb[0].mxu0 %v2278
      %v2370 = vpop.f32.mrb[0].mxu0
      %v2371 = vadd.f32 0.0, %v2370
      %v2372 = vpop.f32.mrb[0].mxu0
      %v2373 = vpop.f32.mrb[0].mxu0
      %v2374 = vadd.f32 0.0, %v2373
      %v2375 = vpop.f32.mrb[0].mxu0
      %2376 = vdwg.mxu0
      %2381 = vrot.lane.b32.xlu0 %v882, 96
      %v2382 = vpop.permute.xlu0 %2381
      %2383 = vrot.lane.b32.xlu0 %v883, 96
      %v2384 = vpop.permute.xlu0 %2383
      %2385 = vrot.lane.b32.xlu0 %v884, 96
      %v2386 = vpop.permute.xlu0 %2385
      %2387 = vrot.lane.b32.xlu0 %v885, 96
      %v2388 = vpop.permute.xlu0 %2387
      %v2394 = vsel %vm1470, %v2087, 0
      %v2397 = vsel %vm1470, %v2088, 0
      %v2400 = vsel %vm1470, %v2089, 0
      %v2403 = vsel %vm1470, %v2090, 0
      %v2406 = vsel %vm1470, %v2091, 0
      %v2409 = vsel %vm1470, %v2092, 0
      %v2412 = vsel %vm1470, %v2093, 0
      %v2415 = vsel %vm1470, %v2094, 0
      %2417 = vmatprep.subr.bf16.mxu0 0
      %2418 = vmatpush1.bf16.msra.mxu0 %v2382
      %2419 = vmatprep.subr.bf16.mxu0 0
      %2420 = vmatpush1.bf16.msra.mxu0 %v2384
      %2421 = vmatprep.subr.bf16.mxu0 0
      %2422 = vmatpush1.bf16.msra.mxu0 %v2386
      %2423 = vmatprep.subr.bf16.mxu0 0
      %2424 = vmatpush1.bf16.msra.mxu0 %v2388
      %2425 = vmatprep.subr.bf16.mxu0 0
      %2426 = vmatpush1.bf16.msra.mxu0 0
      %2427 = vmatprep.subr.bf16.mxu0 0
      %2428 = vmatpush1.bf16.msra.mxu0 0
      %2429 = vmatprep.subr.bf16.mxu0 0
      %2430 = vmatpush1.bf16.msra.mxu0 0
      %2431 = vmatprep.subr.bf16.mxu0 0
      %2432 = vmatpush1.bf16.msra.mxu0 0
      %2433 = vmatprep.subr.bf16.mxu0 0
      %2434 = vmatpush1.bf16.msra.mxu0 0
      %2435 = vmatprep.subr.bf16.mxu0 0
      %2436 = vmatpush1.bf16.msra.mxu0 0
      %2437 = vmatprep.subr.bf16.mxu0 0
      %2438 = vmatpush1.bf16.msra.mxu0 0
      %2439 = vmatprep.subr.bf16.mxu0 0
      %2440 = vmatpush1.bf16.msra.mxu0 0
      %2441 = vmatprep.subr.bf16.mxu0 0
      %2442 = vmatpush1.bf16.msra.mxu0 0
      %2443 = vmatprep.subr.bf16.mxu0 0
      %2444 = vmatpush1.bf16.msra.mxu0 0
      %2445 = vmatprep.subr.bf16.mxu0 0
      %2446 = vmatpush1.bf16.msra.mxu0 0
      %2447 = vmatprep.subr.bf16.mxu0 0
      %2448 = vmatpush1.bf16.msra.mxu0 0
      %2449 = vmatprep.mubr.bf16.mxu0 0
      %2450 = vmatmul.mubr.bf16.gmra.mrb[0].mxu0 %v2394
      %v2451 = vpop.f32.mrb[0].mxu0
      %v2452 = vadd.f32 0.0, %v2451
      %v2453 = vpop.f32.mrb[0].mxu0
      %v2454 = vpop.f32.mrb[0].mxu0
      %v2455 = vadd.f32 0.0, %v2454
      %v2456 = vpop.f32.mrb[0].mxu0
      %2457 = vmatprep.mubr.bf16.mxu0 0
      %2458 = vmatmul.mubr.bf16.gmra.mrb[0].mxu0 %v2397
      %v2459 = vpop.f32.mrb[0].mxu0
      %v2460 = vadd.f32 0.0, %v2459
      %v2461 = vpop.f32.mrb[0].mxu0
      %v2462 = vpop.f32.mrb[0].mxu0
      %v2463 = vadd.f32 0.0, %v2462
      %v2464 = vpop.f32.mrb[0].mxu0
      %2465 = vmatprep.mubr.bf16.mxu0 0
      %2466 = vmatmul.mubr.bf16.gmra.mrb[0].mxu0 %v2400
      %v2467 = vpop.f32.mrb[0].mxu0
      %v2468 = vadd.f32 0.0, %v2467
      %v2469 = vpop.f32.mrb[0].mxu0
      %v2470 = vpop.f32.mrb[0].mxu0
      %v2471 = vadd.f32 0.0, %v2470
      %v2472 = vpop.f32.mrb[0].mxu0
      %2473 = vmatprep.mubr.bf16.mxu0 0
      %2474 = vmatmul.mubr.bf16.gmra.mrb[0].mxu0 %v2403
      %v2475 = vpop.f32.mrb[0].mxu0
      %v2476 = vadd.f32 0.0, %v2475
      %v2477 = vpop.f32.mrb[0].mxu0
      %v2478 = vpop.f32.mrb[0].mxu0
      %v2479 = vadd.f32 0.0, %v2478
      %v2480 = vpop.f32.mrb[0].mxu0
      %2481 = vmatprep.mubr.bf16.mxu0 0
      %2482 = vmatmul.mubr.bf16.gmra.mrb[0].mxu0 %v2406
      %v2483 = vpop.f32.mrb[0].mxu0
      %v2484 = vadd.f32 0.0, %v2483
      %v2485 = vpop.f32.mrb[0].mxu0
      %v2486 = vpop.f32.mrb[0].mxu0
      %v2487 = vadd.f32 0.0, %v2486
      %v2488 = vpop.f32.mrb[0].mxu0
      %2489 = vmatprep.mubr.bf16.mxu0 0
      %2490 = vmatmul.mubr.bf16.gmra.mrb[0].mxu0 %v2409
      %v2491 = vpop.f32.mrb[0].mxu0
      %v2492 = vadd.f32 0.0, %v2491
      %v2493 = vpop.f32.mrb[0].mxu0
      %v2494 = vpop.f32.mrb[0].mxu0
      %v2495 = vadd.f32 0.0, %v2494
      %v2496 = vpop.f32.mrb[0].mxu0
      %2497 = vmatprep.mubr.bf16.mxu0 0
      %2498 = vmatmul.mubr.bf16.gmra.mrb[0].mxu0 %v2412
      %v2499 = vpop.f32.mrb[0].mxu0
      %v2500 = vadd.f32 0.0, %v2499
      %v2501 = vpop.f32.mrb[0].mxu0
      %v2502 = vpop.f32.mrb[0].mxu0
      %v2503 = vadd.f32 0.0, %v2502
      %v2504 = vpop.f32.mrb[0].mxu0
      %2505 = vmatprep.mubr.bf16.mxu0 0
      %2506 = vmatmul.mubr.bf16.gmra.mrb[0].mxu0 %v2415
      %v2507 = vpop.f32.mrb[0].mxu0
      %v2508 = vadd.f32 0.0, %v2507
      %v2509 = vpop.f32.mrb[0].mxu0
      %v2510 = vpop.f32.mrb[0].mxu0
      %v2511 = vadd.f32 0.0, %v2510
      %v2512 = vpop.f32.mrb[0].mxu0
      %2513 = vdwg.mxu0
      %2518 = vrot.lane.b32.xlu0 %v886, 96
      %v2519 = vpop.permute.xlu0 %2518
      %2520 = vrot.lane.b32.xlu0 %v887, 96
      %v2521 = vpop.permute.xlu0 %2520
      %2522 = vrot.lane.b32.xlu0 %v888, 96
      %v2523 = vpop.permute.xlu0 %2522
      %2524 = vrot.lane.b32.xlu0 %v889, 96
      %v2525 = vpop.permute.xlu0 %2524
      %v2531 = vsel %vm1470, %v2095, 0
      %v2534 = vsel %vm1470, %v2096, 0
      %v2537 = vsel %vm1470, %v2097, 0
      %v2540 = vsel %vm1470, %v2098, 0
      %v2543 = vsel %vm1470, %v2099, 0
      %v2546 = vsel %vm1470, %v2100, 0
      %v2549 = vsel %vm1470, %v2101, 0
      %v2552 = vsel %vm1470, %v2102, 0
      %2554 = vmatprep.subr.bf16.mxu0 0
      %2555 = vmatpush1.bf16.msra.mxu0 %v2519
      %2556 = vmatprep.subr.bf16.mxu0 0
      %2557 = vmatpush1.bf16.msra.mxu0 %v2521
      %2558 = vmatprep.subr.bf16.mxu0 0
      %2559 = vmatpush1.bf16.msra.mxu0 %v2523
      %2560 = vmatprep.subr.bf16.mxu0 0
      %2561 = vmatpush1.bf16.msra.mxu0 %v2525
      %2562 = vmatprep.subr.bf16.mxu0 0
      %2563 = vmatpush1.bf16.msra.mxu0 0
      %2564 = vmatprep.subr.bf16.mxu0 0
      %2565 = vmatpush1.bf16.msra.mxu0 0
      %2566 = vmatprep.subr.bf16.mxu0 0
      %2567 = vmatpush1.bf16.msra.mxu0 0
      %2568 = vmatprep.subr.bf16.mxu0 0
      %2569 = vmatpush1.bf16.msra.mxu0 0
      %2570 = vmatprep.subr.bf16.mxu0 0
      %2571 = vmatpush1.bf16.msra.mxu0 0
      %2572 = vmatprep.subr.bf16.mxu0 0
      %2573 = vmatpush1.bf16.msra.mxu0 0
      %2574 = vmatprep.subr.bf16.mxu0 0
      %2575 = vmatpush1.bf16.msra.mxu0 0
      %2576 = vmatprep.subr.bf16.mxu0 0
      %2577 = vmatpush1.bf16.msra.mxu0 0
      %2578 = vmatprep.subr.bf16.mxu0 0
      %2579 = vmatpush1.bf16.msra.mxu0 0
      %2580 = vmatprep.subr.bf16.mxu0 0
      %2581 = vmatpush1.bf16.msra.mxu0 0
      %2582 = vmatprep.subr.bf16.mxu0 0
      %2583 = vmatpush1.bf16.msra.mxu0 0
      %2584 = vmatprep.subr.bf16.mxu0 0
      %2585 = vmatpush1.bf16.msra.mxu0 0
      %2586 = vmatprep.mubr.bf16.mxu0 0
      %2587 = vmatmul.mubr.bf16.gmra.mrb[0].mxu0 %v2531
      %v2588 = vpop.f32.mrb[0].mxu0
      %v2589 = vadd.f32 0.0, %v2588
      %v2590 = vpop.f32.mrb[0].mxu0
      %v2591 = vpop.f32.mrb[0].mxu0
      %v2592 = vadd.f32 0.0, %v2591
      %v2593 = vpop.f32.mrb[0].mxu0
      %2594 = vmatprep.mubr.bf16.mxu0 0
      %2595 = vmatmul.mubr.bf16.gmra.mrb[0].mxu0 %v2534
      %v2596 = vpop.f32.mrb[0].mxu0
      %v2597 = vadd.f32 0.0, %v2596
      %v2598 = vpop.f32.mrb[0].mxu0
      %v2599 = vpop.f32.mrb[0].mxu0
      %v2600 = vadd.f32 0.0, %v2599
      %v2601 = vpop.f32.mrb[0].mxu0
      %2602 = vmatprep.mubr.bf16.mxu0 0
      %2603 = vmatmul.mubr.bf16.gmra.mrb[0].mxu0 %v2537
      %v2604 = vpop.f32.mrb[0].mxu0
      %v2605 = vadd.f32 0.0, %v2604
      %v2606 = vpop.f32.mrb[0].mxu0
      %v2607 = vpop.f32.mrb[0].mxu0
      %v2608 = vadd.f32 0.0, %v2607
      %v2609 = vpop.f32.mrb[0].mxu0
      %2610 = vmatprep.mubr.bf16.mxu0 0
      %2611 = vmatmul.mubr.bf16.gmra.mrb[0].mxu0 %v2540
      %v2612 = vpop.f32.mrb[0].mxu0
      %v2613 = vadd.f32 0.0, %v2612
      %v2614 = vpop.f32.mrb[0].mxu0
      %v2615 = vpop.f32.mrb[0].mxu0
      %v2616 = vadd.f32 0.0, %v2615
      %v2617 = vpop.f32.mrb[0].mxu0
      %2618 = vmatprep.mubr.bf16.mxu0 0
      %2619 = vmatmul.mubr.bf16.gmra.mrb[0].mxu0 %v2543
      %v2620 = vpop.f32.mrb[0].mxu0
      %v2621 = vadd.f32 0.0, %v2620
      %v2622 = vpop.f32.mrb[0].mxu0
      %v2623 = vpop.f32.mrb[0].mxu0
      %v2624 = vadd.f32 0.0, %v2623
      %v2625 = vpop.f32.mrb[0].mxu0
      %2626 = vmatprep.mubr.bf16.mxu0 0
      %2627 = vmatmul.mubr.bf16.gmra.mrb[0].mxu0 %v2546
      %v2628 = vpop.f32.mrb[0].mxu0
      %v2629 = vadd.f32 0.0, %v2628
      %v2630 = vpop.f32.mrb[0].mxu0
      %v2631 = vpop.f32.mrb[0].mxu0
      %v2632 = vadd.f32 0.0, %v2631
      %v2633 = vpop.f32.mrb[0].mxu0
      %2634 = vmatprep.mubr.bf16.mxu0 0
      %2635 = vmatmul.mubr.bf16.gmra.mrb[0].mxu0 %v2549
      %v2636 = vpop.f32.mrb[0].mxu0
      %v2637 = vadd.f32 0.0, %v2636
      %v2638 = vpop.f32.mrb[0].mxu0
      %v2639 = vpop.f32.mrb[0].mxu0
      %v2640 = vadd.f32 0.0, %v2639
      %v2641 = vpop.f32.mrb[0].mxu0
      %2642 = vmatprep.mubr.bf16.mxu0 0
      %2643 = vmatmul.mubr.bf16.gmra.mrb[0].mxu0 %v2552
      %v2644 = vpop.f32.mrb[0].mxu0
      %v2645 = vadd.f32 0.0, %v2644
      %v2646 = vpop.f32.mrb[0].mxu0
      %v2647 = vpop.f32.mrb[0].mxu0
      %v2648 = vadd.f32 0.0, %v2647
      %v2649 = vpop.f32.mrb[0].mxu0
      %2650 = vdwg.mxu0
      %v2651 = vmul.f32 %v2178, %v746
      %v2652 = vmul.f32 %v2181, %v747
      %v2653 = vmul.f32 %v2186, %v748
      %v2654 = vmul.f32 %v2189, %v749
      %v2655 = vmul.f32 %v2194, %v750
      %v2656 = vmul.f32 %v2197, %v751
      %v2657 = vmul.f32 %v2202, %v752
      %v2658 = vmul.f32 %v2205, %v753
      %v2659 = vmul.f32 %v2210, %v754
      %v2660 = vmul.f32 %v2213, %v755
      %v2661 = vmul.f32 %v2218, %v756
      %v2662 = vmul.f32 %v2221, %v757
      %v2663 = vmul.f32 %v2226, %v758
      %v2664 = vmul.f32 %v2229, %v759
      %v2665 = vmul.f32 %v2234, %v760
      %v2666 = vmul.f32 %v2237, %v761
      %v2667 = vmul.f32 %v2315, %v746
      %v2668 = vmul.f32 %v2318, %v747
      %v2669 = vmul.f32 %v2323, %v748
      %v2670 = vmul.f32 %v2326, %v749
      %v2671 = vmul.f32 %v2331, %v750
      %v2672 = vmul.f32 %v2334, %v751
      %v2673 = vmul.f32 %v2339, %v752
      %v2674 = vmul.f32 %v2342, %v753
      %v2675 = vmul.f32 %v2347, %v754
      %v2676 = vmul.f32 %v2350, %v755
      %v2677 = vmul.f32 %v2355, %v756
      %v2678 = vmul.f32 %v2358, %v757
      %v2679 = vmul.f32 %v2363, %v758
      %v2680 = vmul.f32 %v2366, %v759
      %v2681 = vmul.f32 %v2371, %v760
      %v2682 = vmul.f32 %v2374, %v761
      %v2683 = vmul.f32 %v2452, %v746
      %v2684 = vmul.f32 %v2455, %v747
      %v2685 = vmul.f32 %v2460, %v748
      %v2686 = vmul.f32 %v2463, %v749
      %v2687 = vmul.f32 %v2468, %v750
      %v2688 = vmul.f32 %v2471, %v751
      %v2689 = vmul.f32 %v2476, %v752
      %v2690 = vmul.f32 %v2479, %v753
      %v2691 = vmul.f32 %v2484, %v754
      %v2692 = vmul.f32 %v2487, %v755
      %v2693 = vmul.f32 %v2492, %v756
      %v2694 = vmul.f32 %v2495, %v757
      %v2695 = vmul.f32 %v2500, %v758
      %v2696 = vmul.f32 %v2503, %v759
      %v2697 = vmul.f32 %v2508, %v760
      %v2698 = vmul.f32 %v2511, %v761
      %v2699 = vmul.f32 %v2589, %v746
      %v2700 = vmul.f32 %v2592, %v747
      %v2701 = vmul.f32 %v2597, %v748
      %v2702 = vmul.f32 %v2600, %v749
      %v2703 = vmul.f32 %v2605, %v750
      %v2704 = vmul.f32 %v2608, %v751
      %v2705 = vmul.f32 %v2613, %v752
      %v2706 = vmul.f32 %v2616, %v753
      %v2707 = vmul.f32 %v2621, %v754
      %v2708 = vmul.f32 %v2624, %v755
      %v2709 = vmul.f32 %v2629, %v756
      %v2710 = vmul.f32 %v2632, %v757
      %v2711 = vmul.f32 %v2637, %v758
      %v2712 = vmul.f32 %v2640, %v759
      %v2713 = vmul.f32 %v2645, %v760
      %v2714 = vmul.f32 %v2648, %v761
      %v2715 = vsel %vm424, %v2651, 0.0
      %v2716 = vsel %vm424, %v2659, 0.0
      %v2717 = vadd.f32 %v2715, %v2716
      %v2718 = vsel %vm424, %v2652, 0.0
      %v2719 = vsel %vm424, %v2660, 0.0
      %v2720 = vadd.f32 %v2718, %v2719
      %v2721 = vsel %vm424, %v2653, 0.0
      %v2722 = vsel %vm424, %v2661, 0.0
      %v2723 = vadd.f32 %v2721, %v2722
      %v2724 = vsel %vm424, %v2654, 0.0
      %v2725 = vsel %vm424, %v2662, 0.0
      %v2726 = vadd.f32 %v2724, %v2725
      %v2727 = vsel %vm424, %v2655, 0.0
      %v2728 = vsel %vm424, %v2663, 0.0
      %v2729 = vadd.f32 %v2727, %v2728
      %v2730 = vsel %vm424, %v2656, 0.0
      %v2731 = vsel %vm424, %v2664, 0.0
      %v2732 = vadd.f32 %v2730, %v2731
      %v2733 = vsel %vm424, %v2657, 0.0
      %v2734 = vsel %vm424, %v2665, 0.0
      %v2735 = vadd.f32 %v2733, %v2734
      %v2736 = vsel %vm424, %v2658, 0.0
      %v2737 = vsel %vm424, %v2666, 0.0
      %v2738 = vadd.f32 %v2736, %v2737
      %v2739 = vsel %vm424, %v2667, 0.0
      %v2740 = vsel %vm424, %v2675, 0.0
      %v2741 = vadd.f32 %v2739, %v2740
      %v2742 = vsel %vm424, %v2668, 0.0
      %v2743 = vsel %vm424, %v2676, 0.0
      %v2744 = vadd.f32 %v2742, %v2743
      %v2745 = vsel %vm424, %v2669, 0.0
      %v2746 = vsel %vm424, %v2677, 0.0
      %v2747 = vadd.f32 %v2745, %v2746
      %v2748 = vsel %vm424, %v2670, 0.0
      %v2749 = vsel %vm424, %v2678, 0.0
      %v2750 = vadd.f32 %v2748, %v2749
      %v2751 = vsel %vm424, %v2671, 0.0
      %v2752 = vsel %vm424, %v2679, 0.0
      %v2753 = vadd.f32 %v2751, %v2752
      %v2754 = vsel %vm424, %v2672, 0.0
      %v2755 = vsel %vm424, %v2680, 0.0
      %v2756 = vadd.f32 %v2754, %v2755
      %v2757 = vsel %vm424, %v2673, 0.0
      %v2758 = vsel %vm424, %v2681, 0.0
      %v2759 = vadd.f32 %v2757, %v2758
      %v2760 = vsel %vm424, %v2674, 0.0
      %v2761 = vsel %vm424, %v2682, 0.0
      %v2762 = vadd.f32 %v2760, %v2761
      %v2763 = vsel %vm424, %v2683, 0.0
      %v2764 = vsel %vm424, %v2691, 0.0
      %v2765 = vadd.f32 %v2763, %v2764
      %v2766 = vsel %vm424, %v2684, 0.0
      %v2767 = vsel %vm424, %v2692, 0.0
      %v2768 = vadd.f32 %v2766, %v2767
      %v2769 = vsel %vm424, %v2685, 0.0
      %v2770 = vsel %vm424, %v2693, 0.0
      %v2771 = vadd.f32 %v2769, %v2770
      %v2772 = vsel %vm424, %v2686, 0.0
      %v2773 = vsel %vm424, %v2694, 0.0
      %v2774 = vadd.f32 %v2772, %v2773
      %v2775 = vsel %vm424, %v2687, 0.0
      %v2776 = vsel %vm424, %v2695, 0.0
      %v2777 = vadd.f32 %v2775, %v2776
      %v2778 = vsel %vm424, %v2688, 0.0
      %v2779 = vsel %vm424, %v2696, 0.0
      %v2780 = vadd.f32 %v2778, %v2779
      %v2781 = vsel %vm424, %v2689, 0.0
      %v2782 = vsel %vm424, %v2697, 0.0
      %v2783 = vadd.f32 %v2781, %v2782
      %v2784 = vsel %vm424, %v2690, 0.0
      %v2785 = vsel %vm424, %v2698, 0.0
      %v2786 = vadd.f32 %v2784, %v2785
      %v2787 = vsel %vm424, %v2699, 0.0
      %v2788 = vsel %vm424, %v2707, 0.0
      %v2789 = vadd.f32 %v2787, %v2788
      %v2790 = vsel %vm424, %v2700, 0.0
      %v2791 = vsel %vm424, %v2708, 0.0
      %v2792 = vadd.f32 %v2790, %v2791
      %v2793 = vsel %vm424, %v2701, 0.0
      %v2794 = vsel %vm424, %v2709, 0.0
      %v2795 = vadd.f32 %v2793, %v2794
      %v2796 = vsel %vm424, %v2702, 0.0
      %v2797 = vsel %vm424, %v2710, 0.0
      %v2798 = vadd.f32 %v2796, %v2797
      %v2799 = vsel %vm424, %v2703, 0.0
      %v2800 = vsel %vm424, %v2711, 0.0
      %v2801 = vadd.f32 %v2799, %v2800
      %v2802 = vsel %vm424, %v2704, 0.0
      %v2803 = vsel %vm424, %v2712, 0.0
      %v2804 = vadd.f32 %v2802, %v2803
      %v2805 = vsel %vm424, %v2705, 0.0
      %v2806 = vsel %vm424, %v2713, 0.0
      %v2807 = vadd.f32 %v2805, %v2806
      %v2808 = vsel %vm424, %v2706, 0.0
      %v2809 = vsel %vm424, %v2714, 0.0
      %v2810 = vadd.f32 %v2808, %v2809
      %v2811 = vpack.c.bf16 %v2720, %v2717
      %v2812 = vpack.c.bf16 %v2726, %v2723
      %v2813 = vpack.c.bf16 %v2732, %v2729
      %v2814 = vpack.c.bf16 %v2738, %v2735
      %v2815 = vpack.c.bf16 %v2744, %v2741
      %v2816 = vpack.c.bf16 %v2750, %v2747
      %v2817 = vpack.c.bf16 %v2756, %v2753
      %v2818 = vpack.c.bf16 %v2762, %v2759
      %v2819 = vpack.c.bf16 %v2768, %v2765
      %v2820 = vpack.c.bf16 %v2774, %v2771
      %v2821 = vpack.c.bf16 %v2780, %v2777
      %v2822 = vpack.c.bf16 %v2786, %v2783
      %v2823 = vpack.c.bf16 %v2792, %v2789
      %v2824 = vpack.c.bf16 %v2798, %v2795
      %v2825 = vpack.c.bf16 %v2804, %v2801
      %v2826 = vpack.c.bf16 %v2810, %v2807
      %v2827 = vld [vmem:[%s6] sm:$0xf]
      %v2828 = vld [vmem:[%s6 + $0x4] sm:$0xf]
      %v2829 = vld [vmem:[%s7] sm:$0x1]
      %v2831 = vlaneseq
      %v2832 = vshrl.u32 %v2831, 7
      %v2833 = vsub.s32 0, %v2832
      %v2834 = vrot.slane %v2829, %v2833
      %v2838 = vunpack.c.l.b16 %v2827
      %v2839 = vunpack.c.l.b16 %v2828
      %v2840 = vpack.c.b16 %v2839, %v2838
      %v2843 = vsel %vm424, %v2811, 0
      %v2846 = vsel %vm424, %v2812, 0
      %v2849 = vsel %vm424, %v2813, 0
      %v2852 = vsel %vm424, %v2814, 0
      %v2855 = vsel %vm424, %v2815, 0
      %v2858 = vsel %vm424, %v2816, 0
      %v2861 = vsel %vm424, %v2817, 0
      %v2864 = vsel %vm424, %v2818, 0
      %v2867 = vsel %vm424, %v2819, 0
      %v2870 = vsel %vm424, %v2820, 0
      %v2873 = vsel %vm424, %v2821, 0
      %v2876 = vsel %vm424, %v2822, 0
      %v2879 = vsel %vm424, %v2823, 0
      %v2882 = vsel %vm424, %v2824, 0
      %v2885 = vsel %vm424, %v2825, 0
      %v2888 = vsel %vm424, %v2826, 0
      %2890 = vmatprep.subr.bf16.mxu0 0
      %2891 = vmatpush1.bf16.msra.mxu0 %v2840
      %2892 = vmatprep.subr.bf16.mxu0 0
      %2893 = vmatpush1.bf16.msra.mxu0 0
      %2894 = vmatprep.subr.bf16.mxu0 0
      %2895 = vmatpush1.bf16.msra.mxu0 0
      %2896 = vmatprep.subr.bf16.mxu0 0
      %2897 = vmatpush1.bf16.msra.mxu0 0
      %2898 = vmatprep.subr.bf16.mxu0 0
      %2899 = vmatpush1.bf16.msra.mxu0 0
      %2900 = vmatprep.subr.bf16.mxu0 0
      %2901 = vmatpush1.bf16.msra.mxu0 0
      %2902 = vmatprep.subr.bf16.mxu0 0
      %2903 = vmatpush1.bf16.msra.mxu0 0
      %2904 = vmatprep.subr.bf16.mxu0 0
      %2905 = vmatpush1.bf16.msra.mxu0 0
      %2906 = vmatprep.subr.bf16.mxu0 0
      %2907 = vmatpush1.bf16.msra.mxu0 0
      %2908 = vmatprep.subr.bf16.mxu0 0
      %2909 = vmatpush1.bf16.msra.mxu0 0
      %2910 = vmatprep.subr.bf16.mxu0 0
      %2911 = vmatpush1.bf16.msra.mxu0 0
      %2912 = vmatprep.subr.bf16.mxu0 0
      %2913 = vmatpush1.bf16.msra.mxu0 0
      %2914 = vmatprep.subr.bf16.mxu0 0
      %2915 = vmatpush1.bf16.msra.mxu0 0
      %2916 = vmatprep.subr.bf16.mxu0 0
      %2917 = vmatpush1.bf16.msra.mxu0 0
      %2918 = vmatprep.subr.bf16.mxu0 0
      %2919 = vmatpush1.bf16.msra.mxu0 0
      %2920 = vmatprep.subr.bf16.mxu0 0
      %2921 = vmatpush1.bf16.msra.mxu0 0
      %2922 = vmatprep.mubr.bf16.mxu0 0
      %2923 = vmatmul.mubr.bf16.gmra.mrb[0].mxu0 %v2843
      %v2924 = vpop.f32.mrb[0].mxu0
      %v2925 = vadd.f32 %v2834, %v2924
      %v2926 = vpop.f32.mrb[0].mxu0
      %v2927 = vpop.f32.mrb[0].mxu0
      %v2928 = vadd.f32 %v2834, %v2927
      %v2929 = vpop.f32.mrb[0].mxu0
      %2930 = vmatprep.mubr.bf16.mxu0 0
      %2931 = vmatmul.mubr.bf16.gmra.mrb[0].mxu0 %v2846
      %v2932 = vpop.f32.mrb[0].mxu0
      %v2933 = vadd.f32 %v2834, %v2932
      %v2934 = vpop.f32.mrb[0].mxu0
      %v2935 = vpop.f32.mrb[0].mxu0
      %v2936 = vadd.f32 %v2834, %v2935
      %v2937 = vpop.f32.mrb[0].mxu0
      %2938 = vmatprep.mubr.bf16.mxu0 0
      %2939 = vmatmul.mubr.bf16.gmra.mrb[0].mxu0 %v2849
      %v2940 = vpop.f32.mrb[0].mxu0
      %v2941 = vadd.f32 %v2834, %v2940
      %v2942 = vpop.f32.mrb[0].mxu0
      %v2943 = vpop.f32.mrb[0].mxu0
      %v2944 = vadd.f32 %v2834, %v2943
      %v2945 = vpop.f32.mrb[0].mxu0
      %2946 = vmatprep.mubr.bf16.mxu0 0
      %2947 = vmatmul.mubr.bf16.gmra.mrb[0].mxu0 %v2852
      %v2948 = vpop.f32.mrb[0].mxu0
      %v2949 = vadd.f32 %v2834, %v2948
      %v2950 = vpop.f32.mrb[0].mxu0
      %v2951 = vpop.f32.mrb[0].mxu0
      %v2952 = vadd.f32 %v2834, %v2951
      %v2953 = vpop.f32.mrb[0].mxu0
      %2954 = vmatprep.mubr.bf16.mxu0 0
      %2955 = vmatmul.mubr.bf16.gmra.mrb[0].mxu0 %v2855
      %v2956 = vpop.f32.mrb[0].mxu0
      %v2957 = vadd.f32 %v2834, %v2956
      %v2958 = vpop.f32.mrb[0].mxu0
      %v2959 = vpop.f32.mrb[0].mxu0
      %v2960 = vadd.f32 %v2834, %v2959
      %v2961 = vpop.f32.mrb[0].mxu0
      %2962 = vmatprep.mubr.bf16.mxu0 0
      %2963 = vmatmul.mubr.bf16.gmra.mrb[0].mxu0 %v2858
      %v2964 = vpop.f32.mrb[0].mxu0
      %v2965 = vadd.f32 %v2834, %v2964
      %v2966 = vpop.f32.mrb[0].mxu0
      %v2967 = vpop.f32.mrb[0].mxu0
      %v2968 = vadd.f32 %v2834, %v2967
      %v2969 = vpop.f32.mrb[0].mxu0
      %2970 = vmatprep.mubr.bf16.mxu0 0
      %2971 = vmatmul.mubr.bf16.gmra.mrb[0].mxu0 %v2861
      %v2972 = vpop.f32.mrb[0].mxu0
      %v2973 = vadd.f32 %v2834, %v2972
      %v2974 = vpop.f32.mrb[0].mxu0
      %v2975 = vpop.f32.mrb[0].mxu0
      %v2976 = vadd.f32 %v2834, %v2975
      %v2977 = vpop.f32.mrb[0].mxu0
      %2978 = vmatprep.mubr.bf16.mxu0 0
      %2979 = vmatmul.mubr.bf16.gmra.mrb[0].mxu0 %v2864
      %v2980 = vpop.f32.mrb[0].mxu0
      %v2981 = vadd.f32 %v2834, %v2980
      %v2982 = vpop.f32.mrb[0].mxu0
      %v2983 = vpop.f32.mrb[0].mxu0
      %v2984 = vadd.f32 %v2834, %v2983
      %v2985 = vpop.f32.mrb[0].mxu0
      %2986 = vmatprep.mubr.bf16.mxu0 0
      %2987 = vmatmul.mubr.bf16.gmra.mrb[0].mxu0 %v2867
      %v2988 = vpop.f32.mrb[0].mxu0
      %v2989 = vadd.f32 %v2834, %v2988
      %v2990 = vpop.f32.mrb[0].mxu0
      %v2991 = vpop.f32.mrb[0].mxu0
      %v2992 = vadd.f32 %v2834, %v2991
      %v2993 = vpop.f32.mrb[0].mxu0
      %2994 = vmatprep.mubr.bf16.mxu0 0
      %2995 = vmatmul.mubr.bf16.gmra.mrb[0].mxu0 %v2870
      %v2996 = vpop.f32.mrb[0].mxu0
      %v2997 = vadd.f32 %v2834, %v2996
      %v2998 = vpop.f32.mrb[0].mxu0
      %v2999 = vpop.f32.mrb[0].mxu0
      %v3000 = vadd.f32 %v2834, %v2999
      %v3001 = vpop.f32.mrb[0].mxu0
      %3002 = vmatprep.mubr.bf16.mxu0 0
      %3003 = vmatmul.mubr.bf16.gmra.mrb[0].mxu0 %v2873
      %v3004 = vpop.f32.mrb[0].mxu0
      %v3005 = vadd.f32 %v2834, %v3004
      %v3006 = vpop.f32.mrb[0].mxu0
      %v3007 = vpop.f32.mrb[0].mxu0
      %v3008 = vadd.f32 %v2834, %v3007
      %v3009 = vpop.f32.mrb[0].mxu0
      %3010 = vmatprep.mubr.bf16.mxu0 0
      %3011 = vmatmul.mubr.bf16.gmra.mrb[0].mxu0 %v2876
      %v3012 = vpop.f32.mrb[0].mxu0
      %v3013 = vadd.f32 %v2834, %v3012
      %v3014 = vpop.f32.mrb[0].mxu0
      %v3015 = vpop.f32.mrb[0].mxu0
      %v3016 = vadd.f32 %v2834, %v3015
      %v3017 = vpop.f32.mrb[0].mxu0
      %3018 = vmatprep.mubr.bf16.mxu0 0
      %3019 = vmatmul.mubr.bf16.gmra.mrb[0].mxu0 %v2879
      %v3020 = vpop.f32.mrb[0].mxu0
      %v3021 = vadd.f32 %v2834, %v3020
      %v3022 = vpop.f32.mrb[0].mxu0
      %v3023 = vpop.f32.mrb[0].mxu0
      %v3024 = vadd.f32 %v2834, %v3023
      %v3025 = vpop.f32.mrb[0].mxu0
      %3026 = vmatprep.mubr.bf16.mxu0 0
      %3027 = vmatmul.mubr.bf16.gmra.mrb[0].mxu0 %v2882
      %v3028 = vpop.f32.mrb[0].mxu0
      %v3029 = vadd.f32 %v2834, %v3028
      %v3030 = vpop.f32.mrb[0].mxu0
      %v3031 = vpop.f32.mrb[0].mxu0
      %v3032 = vadd.f32 %v2834, %v3031
      %v3033 = vpop.f32.mrb[0].mxu0
      %3034 = vmatprep.mubr.bf16.mxu0 0
      %3035 = vmatmul.mubr.bf16.gmra.mrb[0].mxu0 %v2885
      %v3036 = vpop.f32.mrb[0].mxu0
      %v3037 = vadd.f32 %v2834, %v3036
      %v3038 = vpop.f32.mrb[0].mxu0
      %v3039 = vpop.f32.mrb[0].mxu0
      %v3040 = vadd.f32 %v2834, %v3039
      %v3041 = vpop.f32.mrb[0].mxu0
      %3042 = vmatprep.mubr.bf16.mxu0 0
      %3043 = vmatmul.mubr.bf16.gmra.mrb[0].mxu0 %v2888
      %v3044 = vpop.f32.mrb[0].mxu0
      %v3045 = vadd.f32 %v2834, %v3044
      %v3046 = vpop.f32.mrb[0].mxu0
      %v3047 = vpop.f32.mrb[0].mxu0
      %v3048 = vadd.f32 %v2834, %v3047
      %v3049 = vpop.f32.mrb[0].mxu0
      %3050 = vdwg.mxu0
      %v3051 = vand.u32 2147483647, %v2925
      %v3052 = vand.u32 2147483647, %v2928
      %v3053 = vand.u32 2147483647, %v2933
      %v3054 = vand.u32 2147483647, %v2936
      %v3055 = vand.u32 2147483647, %v2941
      %v3056 = vand.u32 2147483647, %v2944
      %v3057 = vand.u32 2147483647, %v2949
      %v3058 = vand.u32 2147483647, %v2952
      %v3059 = vand.u32 2147483647, %v2957
      %v3060 = vand.u32 2147483647, %v2960
      %v3061 = vand.u32 2147483647, %v2965
      %v3062 = vand.u32 2147483647, %v2968
      %v3063 = vand.u32 2147483647, %v2973
      %v3064 = vand.u32 2147483647, %v2976
      %v3065 = vand.u32 2147483647, %v2981
      %v3066 = vand.u32 2147483647, %v2984
      %v3067 = vand.u32 2147483647, %v2989
      %v3068 = vand.u32 2147483647, %v2992
      %v3069 = vand.u32 2147483647, %v2997
      %v3070 = vand.u32 2147483647, %v3000
      %v3071 = vand.u32 2147483647, %v3005
      %v3072 = vand.u32 2147483647, %v3008
      %v3073 = vand.u32 2147483647, %v3013
      %v3074 = vand.u32 2147483647, %v3016
      %v3075 = vand.u32 2147483647, %v3021
      %v3076 = vand.u32 2147483647, %v3024
      %v3077 = vand.u32 2147483647, %v3029
      %v3078 = vand.u32 2147483647, %v3032
      %v3079 = vand.u32 2147483647, %v3037
      %v3080 = vand.u32 2147483647, %v3040
      %v3081 = vand.u32 2147483647, %v3045
      %v3082 = vand.u32 2147483647, %v3048
      %v3083 = vsub.f32 0.0, %v3051
      %v3084 = vsub.f32 0.0, %v3052
      %v3085 = vsub.f32 0.0, %v3053
      %v3086 = vsub.f32 0.0, %v3054
      %v3087 = vsub.f32 0.0, %v3055
      %v3088 = vsub.f32 0.0, %v3056
      %v3089 = vsub.f32 0.0, %v3057
      %v3090 = vsub.f32 0.0, %v3058
      %v3091 = vsub.f32 0.0, %v3059
      %v3092 = vsub.f32 0.0, %v3060
      %v3093 = vsub.f32 0.0, %v3061
      %v3094 = vsub.f32 0.0, %v3062
      %v3095 = vsub.f32 0.0, %v3063
      %v3096 = vsub.f32 0.0, %v3064
      %v3097 = vsub.f32 0.0, %v3065
      %v3098 = vsub.f32 0.0, %v3066
      %v3099 = vsub.f32 0.0, %v3067
      %v3100 = vsub.f32 0.0, %v3068
      %v3101 = vsub.f32 0.0, %v3069
      %v3102 = vsub.f32 0.0, %v3070
      %v3103 = vsub.f32 0.0, %v3071
      %v3104 = vsub.f32 0.0, %v3072
      %v3105 = vsub.f32 0.0, %v3073
      %v3106 = vsub.f32 0.0, %v3074
      %v3107 = vsub.f32 0.0, %v3075
      %v3108 = vsub.f32 0.0, %v3076
      %v3109 = vsub.f32 0.0, %v3077
      %v3110 = vsub.f32 0.0, %v3078
      %v3111 = vsub.f32 0.0, %v3079
      %v3112 = vsub.f32 0.0, %v3080
      %v3113 = vsub.f32 0.0, %v3081
      %v3114 = vsub.f32 0.0, %v3082
      %v3115 = vmul.f32 %v3083, 1.442695
      %v3116 = vpow.pop %v3115
      %v3117 = vmul.f32 %v3084, 1.442695
      %v3118 = vpow.pop %v3117
      %v3119 = vmul.f32 %v3085, 1.442695
      %v3120 = vpow.pop %v3119
      %v3121 = vmul.f32 %v3086, 1.442695
      %v3122 = vpow.pop %v3121
      %v3123 = vmul.f32 %v3087, 1.442695
      %v3124 = vpow.pop %v3123
      %v3125 = vmul.f32 %v3088, 1.442695
      %v3126 = vpow.pop %v3125
      %v3127 = vmul.f32 %v3089, 1.442695
      %v3128 = vpow.pop %v3127
      %v3129 = vmul.f32 %v3090, 1.442695
      %v3130 = vpow.pop %v3129
      %v3131 = vmul.f32 %v3091, 1.442695
      %v3132 = vpow.pop %v3131
      %v3133 = vmul.f32 %v3092, 1.442695
      %v3134 = vpow.pop %v3133
      %v3135 = vmul.f32 %v3093, 1.442695
      %v3136 = vpow.pop %v3135
      %v3137 = vmul.f32 %v3094, 1.442695
      %v3138 = vpow.pop %v3137
      %v3139 = vmul.f32 %v3095, 1.442695
      %v3140 = vpow.pop %v3139
      %v3141 = vmul.f32 %v3096, 1.442695
      %v3142 = vpow.pop %v3141
      %v3143 = vmul.f32 %v3097, 1.442695
      %v3144 = vpow.pop %v3143
      %v3145 = vmul.f32 %v3098, 1.442695
      %v3146 = vpow.pop %v3145
      %v3147 = vmul.f32 %v3099, 1.442695
      %v3148 = vpow.pop %v3147
      %v3149 = vmul.f32 %v3100, 1.442695
      %v3150 = vpow.pop %v3149
      %v3151 = vmul.f32 %v3101, 1.442695
      %v3152 = vpow.pop %v3151
      %v3153 = vmul.f32 %v3102, 1.442695
      %v3154 = vpow.pop %v3153
      %v3155 = vmul.f32 %v3103, 1.442695
      %v3156 = vpow.pop %v3155
      %v3157 = vmul.f32 %v3104, 1.442695
      %v3158 = vpow.pop %v3157
      %v3159 = vmul.f32 %v3105, 1.442695
      %v3160 = vpow.pop %v3159
      %v3161 = vmul.f32 %v3106, 1.442695
      %v3162 = vpow.pop %v3161
      %v3163 = vmul.f32 %v3107, 1.442695
      %v3164 = vpow.pop %v3163
      %v3165 = vmul.f32 %v3108, 1.442695
      %v3166 = vpow.pop %v3165
      %v3167 = vmul.f32 %v3109, 1.442695
      %v3168 = vpow.pop %v3167
      %v3169 = vmul.f32 %v3110, 1.442695
      %v3170 = vpow.pop %v3169
      %v3171 = vmul.f32 %v3111, 1.442695
      %v3172 = vpow.pop %v3171
      %v3173 = vmul.f32 %v3112, 1.442695
      %v3174 = vpow.pop %v3173
      %v3175 = vmul.f32 %v3113, 1.442695
      %v3176 = vpow.pop %v3175
      %v3177 = vmul.f32 %v3114, 1.442695
      %v3178 = vpow.pop %v3177
      %vm3179 = vcmp.ge.f32.partialorder %v2925, 0.0
      %vm3180 = vcmp.ge.f32.partialorder %v2928, 0.0
      %vm3181 = vcmp.ge.f32.partialorder %v2933, 0.0
      %vm3182 = vcmp.ge.f32.partialorder %v2936, 0.0
      %vm3183 = vcmp.ge.f32.partialorder %v2941, 0.0
      %vm3184 = vcmp.ge.f32.partialorder %v2944, 0.0
      %vm3185 = vcmp.ge.f32.partialorder %v2949, 0.0
      %vm3186 = vcmp.ge.f32.partialorder %v2952, 0.0
      %vm3187 = vcmp.ge.f32.partialorder %v2957, 0.0
      %vm3188 = vcmp.ge.f32.partialorder %v2960, 0.0
      %vm3189 = vcmp.ge.f32.partialorder %v2965, 0.0
      %vm3190 = vcmp.ge.f32.partialorder %v2968, 0.0
      %vm3191 = vcmp.ge.f32.partialorder %v2973, 0.0
      %vm3192 = vcmp.ge.f32.partialorder %v2976, 0.0
      %vm3193 = vcmp.ge.f32.partialorder %v2981, 0.0
      %vm3194 = vcmp.ge.f32.partialorder %v2984, 0.0
      %vm3195 = vcmp.ge.f32.partialorder %v2989, 0.0
      %vm3196 = vcmp.ge.f32.partialorder %v2992, 0.0
      %vm3197 = vcmp.ge.f32.partialorder %v2997, 0.0
      %vm3198 = vcmp.ge.f32.partialorder %v3000, 0.0
      %vm3199 = vcmp.ge.f32.partialorder %v3005, 0.0
      %vm3200 = vcmp.ge.f32.partialorder %v3008, 0.0
      %vm3201 = vcmp.ge.f32.partialorder %v3013, 0.0
      %vm3202 = vcmp.ge.f32.partialorder %v3016, 0.0
      %vm3203 = vcmp.ge.f32.partialorder %v3021, 0.0
      %vm3204 = vcmp.ge.f32.partialorder %v3024, 0.0
      %vm3205 = vcmp.ge.f32.partialorder %v3029, 0.0
      %vm3206 = vcmp.ge.f32.partialorder %v3032, 0.0
      %vm3207 = vcmp.ge.f32.partialorder %v3037, 0.0
      %vm3208 = vcmp.ge.f32.partialorder %v3040, 0.0
      %vm3209 = vcmp.ge.f32.partialorder %v3045, 0.0
      %vm3210 = vcmp.ge.f32.partialorder %v3048, 0.0
      %v3211 = vmul.f32 %v3116, 2.0
      %v3212 = vmul.f32 %v3118, 2.0
      %v3213 = vmul.f32 %v3120, 2.0
      %v3214 = vmul.f32 %v3122, 2.0
      %v3215 = vmul.f32 %v3124, 2.0
      %v3216 = vmul.f32 %v3126, 2.0
      %v3217 = vmul.f32 %v3128, 2.0
      %v3218 = vmul.f32 %v3130, 2.0
      %v3219 = vmul.f32 %v3132, 2.0
      %v3220 = vmul.f32 %v3134, 2.0
      %v3221 = vmul.f32 %v3136, 2.0
      %v3222 = vmul.f32 %v3138, 2.0
      %v3223 = vmul.f32 %v3140, 2.0
      %v3224 = vmul.f32 %v3142, 2.0
      %v3225 = vmul.f32 %v3144, 2.0
      %v3226 = vmul.f32 %v3146, 2.0
      %v3227 = vmul.f32 %v3148, 2.0
      %v3228 = vmul.f32 %v3150, 2.0
      %v3229 = vmul.f32 %v3152, 2.0
      %v3230 = vmul.f32 %v3154, 2.0
      %v3231 = vmul.f32 %v3156, 2.0
      %v3232 = vmul.f32 %v3158, 2.0
      %v3233 = vmul.f32 %v3160, 2.0
      %v3234 = vmul.f32 %v3162, 2.0
      %v3235 = vmul.f32 %v3164, 2.0
      %v3236 = vmul.f32 %v3166, 2.0
      %v3237 = vmul.f32 %v3168, 2.0
      %v3238 = vmul.f32 %v3170, 2.0
      %v3239 = vmul.f32 %v3172, 2.0
      %v3240 = vmul.f32 %v3174, 2.0
      %v3241 = vmul.f32 %v3176, 2.0
      %v3242 = vmul.f32 %v3178, 2.0
      %v3243 = vadd.f32 %v3211, 1.0
      %v3244 = vadd.f32 %v3212, 1.0
      %v3245 = vadd.f32 %v3213, 1.0
      %v3246 = vadd.f32 %v3214, 1.0
      %v3247 = vadd.f32 %v3215, 1.0
      %v3248 = vadd.f32 %v3216, 1.0
      %v3249 = vadd.f32 %v3217, 1.0
      %v3250 = vadd.f32 %v3218, 1.0
      %v3251 = vadd.f32 %v3219, 1.0
      %v3252 = vadd.f32 %v3220, 1.0
      %v3253 = vadd.f32 %v3221, 1.0
      %v3254 = vadd.f32 %v3222, 1.0
      %v3255 = vadd.f32 %v3223, 1.0
      %v3256 = vadd.f32 %v3224, 1.0
      %v3257 = vadd.f32 %v3225, 1.0
      %v3258 = vadd.f32 %v3226, 1.0
      %v3259 = vadd.f32 %v3227, 1.0
      %v3260 = vadd.f32 %v3228, 1.0
      %v3261 = vadd.f32 %v3229, 1.0
      %v3262 = vadd.f32 %v3230, 1.0
      %v3263 = vadd.f32 %v3231, 1.0
      %v3264 = vadd.f32 %v3232, 1.0
      %v3265 = vadd.f32 %v3233, 1.0
      %v3266 = vadd.f32 %v3234, 1.0
      %v3267 = vadd.f32 %v3235, 1.0
      %v3268 = vadd.f32 %v3236, 1.0
      %v3269 = vadd.f32 %v3237, 1.0
      %v3270 = vadd.f32 %v3238, 1.0
      %v3271 = vadd.f32 %v3239, 1.0
      %v3272 = vadd.f32 %v3240, 1.0
      %v3273 = vadd.f32 %v3241, 1.0
      %v3274 = vadd.f32 %v3242, 1.0
      %v3275 = vmul.f32 %v3116, %v3116
      %v3276 = vmul.f32 %v3118, %v3118
      %v3277 = vmul.f32 %v3120, %v3120
      %v3278 = vmul.f32 %v3122, %v3122
      %v3279 = vmul.f32 %v3124, %v3124
      %v3280 = vmul.f32 %v3126, %v3126
      %v3281 = vmul.f32 %v3128, %v3128
      %v3282 = vmul.f32 %v3130, %v3130
      %v3283 = vmul.f32 %v3132, %v3132
      %v3284 = vmul.f32 %v3134, %v3134
      %v3285 = vmul.f32 %v3136, %v3136
      %v3286 = vmul.f32 %v3138, %v3138
      %v3287 = vmul.f32 %v3140, %v3140
      %v3288 = vmul.f32 %v3142, %v3142
      %v3289 = vmul.f32 %v3144, %v3144
      %v3290 = vmul.f32 %v3146, %v3146
      %v3291 = vmul.f32 %v3148, %v3148
      %v3292 = vmul.f32 %v3150, %v3150
      %v3293 = vmul.f32 %v3152, %v3152
      %v3294 = vmul.f32 %v3154, %v3154
      %v3295 = vmul.f32 %v3156, %v3156
      %v3296 = vmul.f32 %v3158, %v3158
      %v3297 = vmul.f32 %v3160, %v3160
      %v3298 = vmul.f32 %v3162, %v3162
      %v3299 = vmul.f32 %v3164, %v3164
      %v3300 = vmul.f32 %v3166, %v3166
      %v3301 = vmul.f32 %v3168, %v3168
      %v3302 = vmul.f32 %v3170, %v3170
      %v3303 = vmul.f32 %v3172, %v3172
      %v3304 = vmul.f32 %v3174, %v3174
      %v3305 = vmul.f32 %v3176, %v3176
      %v3306 = vmul.f32 %v3178, %v3178
      %v3307 = vadd.f32 %v3275, %v3211
      %v3308 = vadd.f32 %v3276, %v3212
      %v3309 = vadd.f32 %v3277, %v3213
      %v3310 = vadd.f32 %v3278, %v3214
      %v3311 = vadd.f32 %v3279, %v3215
      %v3312 = vadd.f32 %v3280, %v3216
      %v3313 = vadd.f32 %v3281, %v3217
      %v3314 = vadd.f32 %v3282, %v3218
      %v3315 = vadd.f32 %v3283, %v3219
      %v3316 = vadd.f32 %v3284, %v3220
      %v3317 = vadd.f32 %v3285, %v3221
      %v3318 = vadd.f32 %v3286, %v3222
      %v3319 = vadd.f32 %v3287, %v3223
      %v3320 = vadd.f32 %v3288, %v3224
      %v3321 = vadd.f32 %v3289, %v3225
      %v3322 = vadd.f32 %v3290, %v3226
      %v3323 = vadd.f32 %v3291, %v3227
      %v3324 = vadd.f32 %v3292, %v3228
      %v3325 = vadd.f32 %v3293, %v3229
      %v3326 = vadd.f32 %v3294, %v3230
      %v3327 = vadd.f32 %v3295, %v3231
      %v3328 = vadd.f32 %v3296, %v3232
      %v3329 = vadd.f32 %v3297, %v3233
      %v3330 = vadd.f32 %v3298, %v3234
      %v3331 = vadd.f32 %v3299, %v3235
      %v3332 = vadd.f32 %v3300, %v3236
      %v3333 = vadd.f32 %v3301, %v3237
      %v3334 = vadd.f32 %v3302, %v3238
      %v3335 = vadd.f32 %v3303, %v3239
      %v3336 = vadd.f32 %v3304, %v3240
      %v3337 = vadd.f32 %v3305, %v3241
      %v3338 = vadd.f32 %v3306, %v3242
      %v3339 = vsel %vm3179, %v3243, %v3307
      %v3340 = vsel %vm3180, %v3244, %v3308
      %v3341 = vsel %vm3181, %v3245, %v3309
      %v3342 = vsel %vm3182, %v3246, %v3310
      %v3343 = vsel %vm3183, %v3247, %v3311
      %v3344 = vsel %vm3184, %v3248, %v3312
      %v3345 = vsel %vm3185, %v3249, %v3313
      %v3346 = vsel %vm3186, %v3250, %v3314
      %v3347 = vsel %vm3187, %v3251, %v3315
      %v3348 = vsel %vm3188, %v3252, %v3316
      %v3349 = vsel %vm3189, %v3253, %v3317
      %v3350 = vsel %vm3190, %v3254, %v3318
      %v3351 = vsel %vm3191, %v3255, %v3319
      %v3352 = vsel %vm3192, %v3256, %v3320
      %v3353 = vsel %vm3193, %v3257, %v3321
      %v3354 = vsel %vm3194, %v3258, %v3322
      %v3355 = vsel %vm3195, %v3259, %v3323
      %v3356 = vsel %vm3196, %v3260, %v3324
      %v3357 = vsel %vm3197, %v3261, %v3325
      %v3358 = vsel %vm3198, %v3262, %v3326
      %v3359 = vsel %vm3199, %v3263, %v3327
      %v3360 = vsel %vm3200, %v3264, %v3328
      %v3361 = vsel %vm3201, %v3265, %v3329
      %v3362 = vsel %vm3202, %v3266, %v3330
      %v3363 = vsel %vm3203, %v3267, %v3331
      %v3364 = vsel %vm3204, %v3268, %v3332
      %v3365 = vsel %vm3205, %v3269, %v3333
      %v3366 = vsel %vm3206, %v3270, %v3334
      %v3367 = vsel %vm3207, %v3271, %v3335
      %v3368 = vsel %vm3208, %v3272, %v3336
      %v3369 = vsel %vm3209, %v3273, %v3337
      %v3370 = vsel %vm3210, %v3274, %v3338
      %v3371 = vmul.f32 %v3211, %v3116
      %v3372 = vmul.f32 %v3212, %v3118
      %v3373 = vmul.f32 %v3213, %v3120
      %v3374 = vmul.f32 %v3214, %v3122
      %v3375 = vmul.f32 %v3215, %v3124
      %v3376 = vmul.f32 %v3216, %v3126
      %v3377 = vmul.f32 %v3217, %v3128
      %v3378 = vmul.f32 %v3218, %v3130
      %v3379 = vmul.f32 %v3219, %v3132
      %v3380 = vmul.f32 %v3220, %v3134
      %v3381 = vmul.f32 %v3221, %v3136
      %v3382 = vmul.f32 %v3222, %v3138
      %v3383 = vmul.f32 %v3223, %v3140
      %v3384 = vmul.f32 %v3224, %v3142
      %v3385 = vmul.f32 %v3225, %v3144
      %v3386 = vmul.f32 %v3226, %v3146
      %v3387 = vmul.f32 %v3227, %v3148
      %v3388 = vmul.f32 %v3228, %v3150
      %v3389 = vmul.f32 %v3229, %v3152
      %v3390 = vmul.f32 %v3230, %v3154
      %v3391 = vmul.f32 %v3231, %v3156
      %v3392 = vmul.f32 %v3232, %v3158
      %v3393 = vmul.f32 %v3233, %v3160
      %v3394 = vmul.f32 %v3234, %v3162
      %v3395 = vmul.f32 %v3235, %v3164
      %v3396 = vmul.f32 %v3236, %v3166
      %v3397 = vmul.f32 %v3237, %v3168
      %v3398 = vmul.f32 %v3238, %v3170
      %v3399 = vmul.f32 %v3239, %v3172
      %v3400 = vmul.f32 %v3240, %v3174
      %v3401 = vmul.f32 %v3241, %v3176
      %v3402 = vmul.f32 %v3242, %v3178
      %v3403 = vadd.f32 %v3243, %v3371
      %v3404 = vadd.f32 %v3244, %v3372
      %v3405 = vadd.f32 %v3245, %v3373
      %v3406 = vadd.f32 %v3246, %v3374
      %v3407 = vadd.f32 %v3247, %v3375
      %v3408 = vadd.f32 %v3248, %v3376
      %v3409 = vadd.f32 %v3249, %v3377
      %v3410 = vadd.f32 %v3250, %v3378
      %v3411 = vadd.f32 %v3251, %v3379
      %v3412 = vadd.f32 %v3252, %v3380
      %v3413 = vadd.f32 %v3253, %v3381
      %v3414 = vadd.f32 %v3254, %v3382
      %v3415 = vadd.f32 %v3255, %v3383
      %v3416 = vadd.f32 %v3256, %v3384
      %v3417 = vadd.f32 %v3257, %v3385
      %v3418 = vadd.f32 %v3258, %v3386
      %v3419 = vadd.f32 %v3259, %v3387
      %v3420 = vadd.f32 %v3260, %v3388
      %v3421 = vadd.f32 %v3261, %v3389
      %v3422 = vadd.f32 %v3262, %v3390
      %v3423 = vadd.f32 %v3263, %v3391
      %v3424 = vadd.f32 %v3264, %v3392
      %v3425 = vadd.f32 %v3265, %v3393
      %v3426 = vadd.f32 %v3266, %v3394
      %v3427 = vadd.f32 %v3267, %v3395
      %v3428 = vadd.f32 %v3268, %v3396
      %v3429 = vadd.f32 %v3269, %v3397
      %v3430 = vadd.f32 %v3270, %v3398
      %v3431 = vadd.f32 %v3271, %v3399
      %v3432 = vadd.f32 %v3272, %v3400
      %v3433 = vadd.f32 %v3273, %v3401
      %v3434 = vadd.f32 %v3274, %v3402
      %v3435 = vadd.f32 %v3307, 2.0
      %v3436 = vadd.f32 %v3308, 2.0
      %v3437 = vadd.f32 %v3309, 2.0
      %v3438 = vadd.f32 %v3310, 2.0
      %v3439 = vadd.f32 %v3311, 2.0
      %v3440 = vadd.f32 %v3312, 2.0
      %v3441 = vadd.f32 %v3313, 2.0
      %v3442 = vadd.f32 %v3314, 2.0
      %v3443 = vadd.f32 %v3315, 2.0
      %v3444 = vadd.f32 %v3316, 2.0
      %v3445 = vadd.f32 %v3317, 2.0
      %v3446 = vadd.f32 %v3318, 2.0
      %v3447 = vadd.f32 %v3319, 2.0
      %v3448 = vadd.f32 %v3320, 2.0
      %v3449 = vadd.f32 %v3321, 2.0
      %v3450 = vadd.f32 %v3322, 2.0
      %v3451 = vadd.f32 %v3323, 2.0
      %v3452 = vadd.f32 %v3324, 2.0
      %v3453 = vadd.f32 %v3325, 2.0
      %v3454 = vadd.f32 %v3326, 2.0
      %v3455 = vadd.f32 %v3327, 2.0
      %v3456 = vadd.f32 %v3328, 2.0
      %v3457 = vadd.f32 %v3329, 2.0
      %v3458 = vadd.f32 %v3330, 2.0
      %v3459 = vadd.f32 %v3331, 2.0
      %v3460 = vadd.f32 %v3332, 2.0
      %v3461 = vadd.f32 %v3333, 2.0
      %v3462 = vadd.f32 %v3334, 2.0
      %v3463 = vadd.f32 %v3335, 2.0
      %v3464 = vadd.f32 %v3336, 2.0
      %v3465 = vadd.f32 %v3337, 2.0
      %v3466 = vadd.f32 %v3338, 2.0
      %v3467 = vsel %vm3179, %v3403, %v3435
      %v3468 = vsel %vm3180, %v3404, %v3436
      %v3469 = vsel %vm3181, %v3405, %v3437
      %v3470 = vsel %vm3182, %v3406, %v3438
      %v3471 = vsel %vm3183, %v3407, %v3439
      %v3472 = vsel %vm3184, %v3408, %v3440
      %v3473 = vsel %vm3185, %v3409, %v3441
      %v3474 = vsel %vm3186, %v3410, %v3442
      %v3475 = vsel %vm3187, %v3411, %v3443
      %v3476 = vsel %vm3188, %v3412, %v3444
      %v3477 = vsel %vm3189, %v3413, %v3445
      %v3478 = vsel %vm3190, %v3414, %v3446
      %v3479 = vsel %vm3191, %v3415, %v3447
      %v3480 = vsel %vm3192, %v3416, %v3448
      %v3481 = vsel %vm3193, %v3417, %v3449
      %v3482 = vsel %vm3194, %v3418, %v3450
      %v3483 = vsel %vm3195, %v3419, %v3451
      %v3484 = vsel %vm3196, %v3420, %v3452
      %v3485 = vsel %vm3197, %v3421, %v3453
      %v3486 = vsel %vm3198, %v3422, %v3454
      %v3487 = vsel %vm3199, %v3423, %v3455
      %v3488 = vsel %vm3200, %v3424, %v3456
      %v3489 = vsel %vm3201, %v3425, %v3457
      %v3490 = vsel %vm3202, %v3426, %v3458
      %v3491 = vsel %vm3203, %v3427, %v3459
      %v3492 = vsel %vm3204, %v3428, %v3460
      %v3493 = vsel %vm3205, %v3429, %v3461
      %v3494 = vsel %vm3206, %v3430, %v3462
      %v3495 = vsel %vm3207, %v3431, %v3463
      %v3496 = vsel %vm3208, %v3432, %v3464
      %v3497 = vsel %vm3209, %v3433, %v3465
      %v3498 = vsel %vm3210, %v3434, %v3466
      %v3499 = vmul.f32 %v2925, %v3339
      %v3500 = vmul.f32 %v2928, %v3340
      %v3501 = vmul.f32 %v2933, %v3341
      %v3502 = vmul.f32 %v2936, %v3342
      %v3503 = vmul.f32 %v2941, %v3343
      %v3504 = vmul.f32 %v2944, %v3344
      %v3505 = vmul.f32 %v2949, %v3345
      %v3506 = vmul.f32 %v2952, %v3346
      %v3507 = vmul.f32 %v2957, %v3347
      %v3508 = vmul.f32 %v2960, %v3348
      %v3509 = vmul.f32 %v2965, %v3349
      %v3510 = vmul.f32 %v2968, %v3350
      %v3511 = vmul.f32 %v2973, %v3351
      %v3512 = vmul.f32 %v2976, %v3352
      %v3513 = vmul.f32 %v2981, %v3353
      %v3514 = vmul.f32 %v2984, %v3354
      %v3515 = vmul.f32 %v2989, %v3355
      %v3516 = vmul.f32 %v2992, %v3356
      %v3517 = vmul.f32 %v2997, %v3357
      %v3518 = vmul.f32 %v3000, %v3358
      %v3519 = vmul.f32 %v3005, %v3359
      %v3520 = vmul.f32 %v3008, %v3360
      %v3521 = vmul.f32 %v3013, %v3361
      %v3522 = vmul.f32 %v3016, %v3362
      %v3523 = vmul.f32 %v3021, %v3363
      %v3524 = vmul.f32 %v3024, %v3364
      %v3525 = vmul.f32 %v3029, %v3365
      %v3526 = vmul.f32 %v3032, %v3366
      %v3527 = vmul.f32 %v3037, %v3367
      %v3528 = vmul.f32 %v3040, %v3368
      %v3529 = vmul.f32 %v3045, %v3369
      %v3530 = vmul.f32 %v3048, %v3370
      %v3531 = vrcp.pop %v3467
      %v3532 = vrcp.pop %v3468
      %v3533 = vrcp.pop %v3469
      %v3534 = vrcp.pop %v3470
      %v3535 = vrcp.pop %v3471
      %v3536 = vrcp.pop %v3472
      %v3537 = vrcp.pop %v3473
      %v3538 = vrcp.pop %v3474
      %v3539 = vrcp.pop %v3475
      %v3540 = vrcp.pop %v3476
      %v3541 = vrcp.pop %v3477
      %v3542 = vrcp.pop %v3478
      %v3543 = vrcp.pop %v3479
      %v3544 = vrcp.pop %v3480
      %v3545 = vrcp.pop %v3481
      %v3546 = vrcp.pop %v3482
      %v3547 = vrcp.pop %v3483
      %v3548 = vrcp.pop %v3484
      %v3549 = vrcp.pop %v3485
      %v3550 = vrcp.pop %v3486
      %v3551 = vrcp.pop %v3487
      %v3552 = vrcp.pop %v3488
      %v3553 = vrcp.pop %v3489
      %v3554 = vrcp.pop %v3490
      %v3555 = vrcp.pop %v3491
      %v3556 = vrcp.pop %v3492
      %v3557 = vrcp.pop %v3493
      %v3558 = vrcp.pop %v3494
      %v3559 = vrcp.pop %v3495
      %v3560 = vrcp.pop %v3496
      %v3561 = vrcp.pop %v3497
      %v3562 = vrcp.pop %v3498
      %v3563 = vmul.f32 %v3499, %v3531
      %v3564 = vmul.f32 %v3500, %v3532
      %v3565 = vmul.f32 %v3501, %v3533
      %v3566 = vmul.f32 %v3502, %v3534
      %v3567 = vmul.f32 %v3503, %v3535
      %v3568 = vmul.f32 %v3504, %v3536
      %v3569 = vmul.f32 %v3505, %v3537
      %v3570 = vmul.f32 %v3506, %v3538
      %v3571 = vmul.f32 %v3507, %v3539
      %v3572 = vmul.f32 %v3508, %v3540
      %v3573 = vmul.f32 %v3509, %v3541
      %v3574 = vmul.f32 %v3510, %v3542
      %v3575 = vmul.f32 %v3511, %v3543
      %v3576 = vmul.f32 %v3512, %v3544
      %v3577 = vmul.f32 %v3513, %v3545
      %v3578 = vmul.f32 %v3514, %v3546
      %v3579 = vmul.f32 %v3515, %v3547
      %v3580 = vmul.f32 %v3516, %v3548
      %v3581 = vmul.f32 %v3517, %v3549
      %v3582 = vmul.f32 %v3518, %v3550
      %v3583 = vmul.f32 %v3519, %v3551
      %v3584 = vmul.f32 %v3520, %v3552
      %v3585 = vmul.f32 %v3521, %v3553
      %v3586 = vmul.f32 %v3522, %v3554
      %v3587 = vmul.f32 %v3523, %v3555
      %v3588 = vmul.f32 %v3524, %v3556
      %v3589 = vmul.f32 %v3525, %v3557
      %v3590 = vmul.f32 %v3526, %v3558
      %v3591 = vmul.f32 %v3527, %v3559
      %v3592 = vmul.f32 %v3528, %v3560
      %v3593 = vmul.f32 %v3529, %v3561
      %v3594 = vmul.f32 %v3530, %v3562
      %v3595 = vpack.c.bf16 %v3564, %v3563
      %v3596 = vpack.c.bf16 %v3566, %v3565
      %v3597 = vpack.c.bf16 %v3568, %v3567
      %v3598 = vpack.c.bf16 %v3570, %v3569
      %v3599 = vpack.c.bf16 %v3572, %v3571
      %v3600 = vpack.c.bf16 %v3574, %v3573
      %v3601 = vpack.c.bf16 %v3576, %v3575
      %v3602 = vpack.c.bf16 %v3578, %v3577
      %v3603 = vpack.c.bf16 %v3580, %v3579
      %v3604 = vpack.c.bf16 %v3582, %v3581
      %v3605 = vpack.c.bf16 %v3584, %v3583
      %v3606 = vpack.c.bf16 %v3586, %v3585
      %v3607 = vpack.c.bf16 %v3588, %v3587
      %v3608 = vpack.c.bf16 %v3590, %v3589
      %v3609 = vpack.c.bf16 %v3592, %v3591
      %v3610 = vpack.c.bf16 %v3594, %v3593
      %v3611 = vld [vmem:[%s8] sm:$0xf]
      %v3612 = vld [vmem:[%s8 + $0x4] sm:$0xf]
      %v3613 = vld [vmem:[%s9] sm:$0x1]
      %v3615 = vlaneseq
      %v3616 = vshrl.u32 %v3615, 7
      %v3617 = vsub.s32 0, %v3616
      %v3618 = vrot.slane %v3613, %v3617
      %v3622 = vunpack.c.l.b16 %v3611
      %v3623 = vunpack.c.l.b16 %v3612
      %v3624 = vpack.c.b16 %v3623, %v3622
      %v3627 = vsel %vm424, %v3595, 0
      %v3630 = vsel %vm424, %v3596, 0
      %v3633 = vsel %vm424, %v3597, 0
      %v3636 = vsel %vm424, %v3598, 0
      %v3639 = vsel %vm424, %v3599, 0
      %v3642 = vsel %vm424, %v3600, 0
      %v3645 = vsel %vm424, %v3601, 0
      %v3648 = vsel %vm424, %v3602, 0
      %v3651 = vsel %vm424, %v3603, 0
      %v3654 = vsel %vm424, %v3604, 0
      %v3657 = vsel %vm424, %v3605, 0
      %v3660 = vsel %vm424, %v3606, 0
      %v3663 = vsel %vm424, %v3607, 0
      %v3666 = vsel %vm424, %v3608, 0
      %v3669 = vsel %vm424, %v3609, 0
      %v3672 = vsel %vm424, %v3610, 0
      %3674 = vmatprep.subr.bf16.mxu0 0
      %3675 = vmatpush1.bf16.msra.mxu0 %v3624
      %3676 = vmatprep.subr.bf16.mxu0 0
      %3677 = vmatpush1.bf16.msra.mxu0 0
      %3678 = vmatprep.subr.bf16.mxu0 0
      %3679 = vmatpush1.bf16.msra.mxu0 0
      %3680 = vmatprep.subr.bf16.mxu0 0
      %3681 = vmatpush1.bf16.msra.mxu0 0
      %3682 = vmatprep.subr.bf16.mxu0 0
      %3683 = vmatpush1.bf16.msra.mxu0 0
      %3684 = vmatprep.subr.bf16.mxu0 0
      %3685 = vmatpush1.bf16.msra.mxu0 0
      %3686 = vmatprep.subr.bf16.mxu0 0
      %3687 = vmatpush1.bf16.msra.mxu0 0
      %3688 = vmatprep.subr.bf16.mxu0 0
      %3689 = vmatpush1.bf16.msra.mxu0 0
      %3690 = vmatprep.subr.bf16.mxu0 0
      %3691 = vmatpush1.bf16.msra.mxu0 0
      %3692 = vmatprep.subr.bf16.mxu0 0
      %3693 = vmatpush1.bf16.msra.mxu0 0
      %3694 = vmatprep.subr.bf16.mxu0 0
      %3695 = vmatpush1.bf16.msra.mxu0 0
      %3696 = vmatprep.subr.bf16.mxu0 0
      %3697 = vmatpush1.bf16.msra.mxu0 0
      %3698 = vmatprep.subr.bf16.mxu0 0
      %3699 = vmatpush1.bf16.msra.mxu0 0
      %3700 = vmatprep.subr.bf16.mxu0 0
      %3701 = vmatpush1.bf16.msra.mxu0 0
      %3702 = vmatprep.subr.bf16.mxu0 0
      %3703 = vmatpush1.bf16.msra.mxu0 0
      %3704 = vmatprep.subr.bf16.mxu0 0
      %3705 = vmatpush1.bf16.msra.mxu0 0
      %3706 = vmatprep.mubr.bf16.mxu0 0
      %3707 = vmatmul.mubr.bf16.gmra.mrb[0].mxu0 %v3627
      %v3708 = vpop.f32.mrb[0].mxu0
      %v3709 = vadd.f32 %v3618, %v3708
      %v3710 = vpop.f32.mrb[0].mxu0
      %v3711 = vpop.f32.mrb[0].mxu0
      %v3712 = vadd.f32 %v3618, %v3711
      %v3713 = vpop.f32.mrb[0].mxu0
      %3714 = vmatprep.mubr.bf16.mxu0 0
      %3715 = vmatmul.mubr.bf16.gmra.mrb[0].mxu0 %v3630
      %v3716 = vpop.f32.mrb[0].mxu0
      %v3717 = vadd.f32 %v3618, %v3716
      %v3718 = vpop.f32.mrb[0].mxu0
      %v3719 = vpop.f32.mrb[0].mxu0
      %v3720 = vadd.f32 %v3618, %v3719
      %v3721 = vpop.f32.mrb[0].mxu0
      %3722 = vmatprep.mubr.bf16.mxu0 0
      %3723 = vmatmul.mubr.bf16.gmra.mrb[0].mxu0 %v3633
      %v3724 = vpop.f32.mrb[0].mxu0
      %v3725 = vadd.f32 %v3618, %v3724
      %v3726 = vpop.f32.mrb[0].mxu0
      %v3727 = vpop.f32.mrb[0].mxu0
      %v3728 = vadd.f32 %v3618, %v3727
      %v3729 = vpop.f32.mrb[0].mxu0
      %3730 = vmatprep.mubr.bf16.mxu0 0
      %3731 = vmatmul.mubr.bf16.gmra.mrb[0].mxu0 %v3636
      %v3732 = vpop.f32.mrb[0].mxu0
      %v3733 = vadd.f32 %v3618, %v3732
      %v3734 = vpop.f32.mrb[0].mxu0
      %v3735 = vpop.f32.mrb[0].mxu0
      %v3736 = vadd.f32 %v3618, %v3735
      %v3737 = vpop.f32.mrb[0].mxu0
      %3738 = vmatprep.mubr.bf16.mxu0 0
      %3739 = vmatmul.mubr.bf16.gmra.mrb[0].mxu0 %v3639
      %v3740 = vpop.f32.mrb[0].mxu0
      %v3741 = vadd.f32 %v3618, %v3740
      %v3742 = vpop.f32.mrb[0].mxu0
      %v3743 = vpop.f32.mrb[0].mxu0
      %v3744 = vadd.f32 %v3618, %v3743
      %v3745 = vpop.f32.mrb[0].mxu0
      %3746 = vmatprep.mubr.bf16.mxu0 0
      %3747 = vmatmul.mubr.bf16.gmra.mrb[0].mxu0 %v3642
      %v3748 = vpop.f32.mrb[0].mxu0
      %v3749 = vadd.f32 %v3618, %v3748
      %v3750 = vpop.f32.mrb[0].mxu0
      %v3751 = vpop.f32.mrb[0].mxu0
      %v3752 = vadd.f32 %v3618, %v3751
      %v3753 = vpop.f32.mrb[0].mxu0
      %3754 = vmatprep.mubr.bf16.mxu0 0
      %3755 = vmatmul.mubr.bf16.gmra.mrb[0].mxu0 %v3645
      %v3756 = vpop.f32.mrb[0].mxu0
      %v3757 = vadd.f32 %v3618, %v3756
      %v3758 = vpop.f32.mrb[0].mxu0
      %v3759 = vpop.f32.mrb[0].mxu0
      %v3760 = vadd.f32 %v3618, %v3759
      %v3761 = vpop.f32.mrb[0].mxu0
      %3762 = vmatprep.mubr.bf16.mxu0 0
      %3763 = vmatmul.mubr.bf16.gmra.mrb[0].mxu0 %v3648
      %v3764 = vpop.f32.mrb[0].mxu0
      %v3765 = vadd.f32 %v3618, %v3764
      %v3766 = vpop.f32.mrb[0].mxu0
      %v3767 = vpop.f32.mrb[0].mxu0
      %v3768 = vadd.f32 %v3618, %v3767
      %v3769 = vpop.f32.mrb[0].mxu0
      %3770 = vmatprep.mubr.bf16.mxu0 0
      %3771 = vmatmul.mubr.bf16.gmra.mrb[0].mxu0 %v3651
      %v3772 = vpop.f32.mrb[0].mxu0
      %v3773 = vadd.f32 %v3618, %v3772
      %v3774 = vpop.f32.mrb[0].mxu0
      %v3775 = vpop.f32.mrb[0].mxu0
      %v3776 = vadd.f32 %v3618, %v3775
      %v3777 = vpop.f32.mrb[0].mxu0
      %3778 = vmatprep.mubr.bf16.mxu0 0
      %3779 = vmatmul.mubr.bf16.gmra.mrb[0].mxu0 %v3654
      %v3780 = vpop.f32.mrb[0].mxu0
      %v3781 = vadd.f32 %v3618, %v3780
      %v3782 = vpop.f32.mrb[0].mxu0
      %v3783 = vpop.f32.mrb[0].mxu0
      %v3784 = vadd.f32 %v3618, %v3783
      %v3785 = vpop.f32.mrb[0].mxu0
      %3786 = vmatprep.mubr.bf16.mxu0 0
      %3787 = vmatmul.mubr.bf16.gmra.mrb[0].mxu0 %v3657
      %v3788 = vpop.f32.mrb[0].mxu0
      %v3789 = vadd.f32 %v3618, %v3788
      %v3790 = vpop.f32.mrb[0].mxu0
      %v3791 = vpop.f32.mrb[0].mxu0
      %v3792 = vadd.f32 %v3618, %v3791
      %v3793 = vpop.f32.mrb[0].mxu0
      %3794 = vmatprep.mubr.bf16.mxu0 0
      %3795 = vmatmul.mubr.bf16.gmra.mrb[0].mxu0 %v3660
      %v3796 = vpop.f32.mrb[0].mxu0
      %v3797 = vadd.f32 %v3618, %v3796
      %v3798 = vpop.f32.mrb[0].mxu0
      %v3799 = vpop.f32.mrb[0].mxu0
      %v3800 = vadd.f32 %v3618, %v3799
      %v3801 = vpop.f32.mrb[0].mxu0
      %3802 = vmatprep.mubr.bf16.mxu0 0
      %3803 = vmatmul.mubr.bf16.gmra.mrb[0].mxu0 %v3663
      %v3804 = vpop.f32.mrb[0].mxu0
      %v3805 = vadd.f32 %v3618, %v3804
      %v3806 = vpop.f32.mrb[0].mxu0
      %v3807 = vpop.f32.mrb[0].mxu0
      %v3808 = vadd.f32 %v3618, %v3807
      %v3809 = vpop.f32.mrb[0].mxu0
      %3810 = vmatprep.mubr.bf16.mxu0 0
      %3811 = vmatmul.mubr.bf16.gmra.mrb[0].mxu0 %v3666
      %v3812 = vpop.f32.mrb[0].mxu0
      %v3813 = vadd.f32 %v3618, %v3812
      %v3814 = vpop.f32.mrb[0].mxu0
      %v3815 = vpop.f32.mrb[0].mxu0
      %v3816 = vadd.f32 %v3618, %v3815
      %v3817 = vpop.f32.mrb[0].mxu0
      %3818 = vmatprep.mubr.bf16.mxu0 0
      %3819 = vmatmul.mubr.bf16.gmra.mrb[0].mxu0 %v3669
      %v3820 = vpop.f32.mrb[0].mxu0
      %v3821 = vadd.f32 %v3618, %v3820
      %v3822 = vpop.f32.mrb[0].mxu0
      %v3823 = vpop.f32.mrb[0].mxu0
      %v3824 = vadd.f32 %v3618, %v3823
      %v3825 = vpop.f32.mrb[0].mxu0
      %3826 = vmatprep.mubr.bf16.mxu0 0
      %3827 = vmatmul.mubr.bf16.gmra.mrb[0].mxu0 %v3672
      %v3828 = vpop.f32.mrb[0].mxu0
      %v3829 = vadd.f32 %v3618, %v3828
      %v3830 = vpop.f32.mrb[0].mxu0
      %v3831 = vpop.f32.mrb[0].mxu0
      %v3832 = vadd.f32 %v3618, %v3831
      %v3833 = vpop.f32.mrb[0].mxu0
      %3834 = vdwg.mxu0
      %v3835 = vadd.f32 %v3709, %v361
      %v3836 = vadd.f32 %v3712, %v362
      %v3837 = vadd.f32 %v3717, %v363
      %v3838 = vadd.f32 %v3720, %v364
      %v3839 = vadd.f32 %v3725, %v365
      %v3840 = vadd.f32 %v3728, %v366
      %v3841 = vadd.f32 %v3733, %v367
      %v3842 = vadd.f32 %v3736, %v368
      %v3843 = vadd.f32 %v3741, %v369
      %v3844 = vadd.f32 %v3744, %v370
      %v3845 = vadd.f32 %v3749, %v371
      %v3846 = vadd.f32 %v3752, %v372
      %v3847 = vadd.f32 %v3757, %v373
      %v3848 = vadd.f32 %v3760, %v374
      %v3849 = vadd.f32 %v3765, %v375
      %v3850 = vadd.f32 %v3768, %v376
      %v3851 = vadd.f32 %v3773, %v377
      %v3852 = vadd.f32 %v3776, %v378
      %v3853 = vadd.f32 %v3781, %v379
      %v3854 = vadd.f32 %v3784, %v380
      %v3855 = vadd.f32 %v3789, %v381
      %v3856 = vadd.f32 %v3792, %v382
      %v3857 = vadd.f32 %v3797, %v383
      %v3858 = vadd.f32 %v3800, %v384
      %v3859 = vadd.f32 %v3805, %v385
      %v3860 = vadd.f32 %v3808, %v386
      %v3861 = vadd.f32 %v3813, %v387
      %v3862 = vadd.f32 %v3816, %v388
      %v3863 = vadd.f32 %v3821, %v389
      %v3864 = vadd.f32 %v3824, %v390
      %v3865 = vadd.f32 %v3829, %v391
      %v3866 = vadd.f32 %v3832, %v392
      %3867 = vst.msk [vmem:[%s359] sm:$0xff] %vm424, %v3835
      %3868 = vst.msk [vmem:[%s359 + $0x8] sm:$0xff] %vm424, %v3836
      %3869 = vst.msk [vmem:[%s359 + $0x10] sm:$0xff] %vm424, %v3837
      %3870 = vst.msk [vmem:[%s359 + $0x18] sm:$0xff] %vm424, %v3838
      %3871 = vst.msk [vmem:[%s359 + $0x20] sm:$0xff] %vm424, %v3839
      %3872 = vst.msk [vmem:[%s359 + $0x28] sm:$0xff] %vm424, %v3840
      %3873 = vst.msk [vmem:[%s359 + $0x30] sm:$0xff] %vm424, %v3841
      %3874 = vst.msk [vmem:[%s359 + $0x38] sm:$0xff] %vm424, %v3842
      %3875 = vst.msk [vmem:[%s359 + $0x40] sm:$0xff] %vm424, %v3843
      %3876 = vst.msk [vmem:[%s359 + $0x48] sm:$0xff] %vm424, %v3844
      %3877 = vst.msk [vmem:[%s359 + $0x50] sm:$0xff] %vm424, %v3845
      %3878 = vst.msk [vmem:[%s359 + $0x58] sm:$0xff] %vm424, %v3846
      %3879 = vst.msk [vmem:[%s359 + $0x60] sm:$0xff] %vm424, %v3847
      %3880 = vst.msk [vmem:[%s359 + $0x68] sm:$0xff] %vm424, %v3848
      %3881 = vst.msk [vmem:[%s359 + $0x70] sm:$0xff] %vm424, %v3849
      %3882 = vst.msk [vmem:[%s359 + $0x78] sm:$0xff] %vm424, %v3850
      %3883 = vst.msk [vmem:[%s359 + $0x80] sm:$0xff] %vm424, %v3851
      %3884 = vst.msk [vmem:[%s359 + $0x88] sm:$0xff] %vm424, %v3852
      %3885 = vst.msk [vmem:[%s359 + $0x90] sm:$0xff] %vm424, %v3853
      %3886 = vst.msk [vmem:[%s359 + $0x98] sm:$0xff] %vm424, %v3854
      %3887 = vst.msk [vmem:[%s359 + $0xa0] sm:$0xff] %vm424, %v3855
      %3888 = vst.msk [vmem:[%s359 + $0xa8] sm:$0xff] %vm424, %v3856
      %3889 = vst.msk [vmem:[%s359 + $0xb0] sm:$0xff] %vm424, %v3857
      %3890 = vst.msk [vmem:[%s359 + $0xb8] sm:$0xff] %vm424, %v3858
      %3891 = vst.msk [vmem:[%s359 + $0xc0] sm:$0xff] %vm424, %v3859
      %3892 = vst.msk [vmem:[%s359 + $0xc8] sm:$0xff] %vm424, %v3860
      %3893 = vst.msk [vmem:[%s359 + $0xd0] sm:$0xff] %vm424, %v3861
      %3894 = vst.msk [vmem:[%s359 + $0xd8] sm:$0xff] %vm424, %v3862
      %3895 = vst.msk [vmem:[%s359 + $0xe0] sm:$0xff] %vm424, %v3863
      %3896 = vst.msk [vmem:[%s359 + $0xe8] sm:$0xff] %vm424, %v3864
      %3897 = vst.msk [vmem:[%s359 + $0xf0] sm:$0xff] %vm424, %v3865
      %3898 = vst.msk [vmem:[%s359 + $0xf8] sm:$0xff] %vm424, %v3866
      %p3899 = scmp.lt.s32.totalorder %s21, 1
      %s3900 = scalar_select %p3899, %s21, 1
      %s3901 = smul.addr %s3900, 32
      %s3902 = smul.addr %s3901, 8
      %s3903 = scalar_lea.vmem %s10, %s3902
      // Predicated region
      $region61: #{skip_attention_forward.1} parent=59 // pred_check
        %p3904 = pneg %p254
      $region62: #{skip_attention_forward.1} parent=59 // pred_check_branch
        %3906 = sbr.rel (%p3904) target = $region64
      $region63: #{skip_attention_forward.1} parent=59 // pred_region
        _
      $region64: #{skip_attention_forward.1} parent=59 // pred_fallthru
        _
    $region60: #{skip_attention_forward.1} parent=5 // pred_fallthru
      _
    %p3907 = scmp.le.s32.totalorder 2, %s16
    // Predicated region
    $region65: #{skip_attention_forward.1} parent=5 // pred_check
      %p3908 = pneg %p3907
    $region66: #{skip_attention_forward.1} parent=5 // pred_check_branch
      %3910 = sbr.rel (%p3908) target = $region68
    $region67: #{skip_attention_forward.1} parent=5 // pred_region
      %s3911 = ssub.s32 %s16, 2
      // Predicated region
      $region69: #{skip_attention_forward.1} parent=67 // pred_check
        %p3912 = pneg %p260
      $region70: #{skip_attention_forward.1} parent=67 // pred_check_branch
        %3914 = sbr.rel (%p3912) target = $region72
      $region71: #{skip_attention_forward.1} parent=67 // pred_region
        %p3915 = scmp.lt.s32.totalorder %s22, 1
        %s3916 = scalar_select %p3915, %s22, 1
        %s3917 = smul.addr %s3916, 32
        %s3918 = smul.addr %s3917, 8
        %s3919 = scalar_lea.vmem %s10, %s3918
      $region72: #{skip_attention_forward.1} parent=67 // pred_fallthru
        _
    $region68: #{skip_attention_forward.1} parent=5 // pred_fallthru
      _
  $region6: #{skip_attention_forward.1} parent=0 // loop_footer
    %s20 = sadd.s32 1, %s16
  $region7: #{skip_attention_forward.1} parent=0 // loop_footer_branch
    %15 = sbr.rel target = $region3
  $region8: #{skip_attention_forward.1} parent=0 // loop_exit
    _

</llo_original>
